<compile_context>
chip_gen: v7x
topology: tpu7x:2x2x1
jax: 0.10.0
libtpu: 0.0.40
codegen_flags: <defaults>
</compile_context>

<pallas_src>
import functools

import jax
import jax.numpy as jnp
import numpy as np
from jax.experimental import pallas as pl
from jax.experimental.pallas import tpu as pltpu

_BN_EPS = 1e-5


# ----------------------------------------------------------------------------
# Fused Pallas kernel: the whole ContextModule for one batch element
# ----------------------------------------------------------------------------
def _context_kernel(x_ref, m_ref,
                    w_in_ref, b_in_ref, w_up_ref, b_up_ref,
                    w_dn_ref, b_dn_ref, w_dn2_ref, b_dn2_ref,
                    o_ref, *, H, W):
    # x_ref : (1, Cin, H*W)    input image, spatial flattened on lanes
    # m_ref : (9, 1, H*W)      per-tap 0/1 validity masks (zero padding)
    # w_*   : (9, Cout, Cin)   conv taps with BN scale pre-folded
    # b_*   : (Cout, 1)        folded BN bias
    # o_ref : (1, 2*bw, H*W)   rows [0:bw] = up, rows [bw:2bw] = down
    HW = H * W

    def cba(x_flat, w_ref, b_ref):
        cout = w_ref.shape[1]
        acc = jnp.zeros((cout, HW), jnp.float32)
        # 3x3 conv: 9 lane-rotations + mask, accumulated into one (Cout, HW)
        # lane-dense accumulator via MXU dots.
        for tap in range(9):
            dy, dx = tap // 3 - 1, tap % 3 - 1
            offset = dy * W + dx            # source = flat index p + offset
            if offset == 0:
                shifted = x_flat
            else:
                shifted = pltpu.roll(x_flat, shift=(-offset) % HW, axis=1)
            if dy == 0 and dx == 0:
                patch = shifted             # center tap: always valid
            else:
                patch = shifted * m_ref[tap]      # zero out-of-image sources
            acc = acc + jnp.dot(w_ref[tap], patch,
                                preferred_element_type=jnp.float32)
        # folded-BN bias + ReLU (f32 epilogue)
        return jnp.maximum(acc + b_ref[...], 0.0)

    x = x_ref[0]                                  # (Cin, HW)
    x1 = cba(x, w_in_ref, b_in_ref)               # inconv
    up = cba(x1, w_up_ref, b_up_ref)              # upconv
    dn = cba(x1, w_dn_ref, b_dn_ref)              # downconv
    dn = cba(dn, w_dn2_ref, b_dn2_ref)            # downconv2
    bw = up.shape[0]
    # concat(dim=channels) == writing the two channel-row ranges of the output
    o_ref[0, 0:bw, :] = up.astype(o_ref.dtype)
    o_ref[0, bw:2 * bw, :] = dn.astype(o_ref.dtype)


def _make_tap_masks(H, W):
    """(9, 1, H*W) float32 masks: 1 where the tap's source pixel is in-image."""
    hh, ww = np.meshgrid(np.arange(H), np.arange(W), indexing="ij")
    masks = np.zeros((9, 1, H * W), np.float32)
    for tap in range(9):
        dy, dx = tap // 3 - 1, tap % 3 - 1
        valid = ((hh + dy >= 0) & (hh + dy < H) &
                 (ww + dx >= 0) & (ww + dx < W))
        masks[tap, 0] = valid.reshape(-1).astype(np.float32)
    return jnp.asarray(masks)


def context_module_pallas(x_nchw, params):
    """x_nchw: (N, C, H, W) float32 -> (N, 2*(C//4), H, W)."""
    N, C, H, W = x_nchw.shape
    bw = C // 4
    HW = H * W
    x_flat = x_nchw.reshape(N, C, HW)             # NCHW kept; reshape is free
    masks = _make_tap_masks(H, W)

    kernel = functools.partial(_context_kernel, H=H, W=W)

    def const_spec(shape):                         # resident across the grid
        return pl.BlockSpec(shape, lambda n, _s=len(shape): (0,) * _s)

    out = pl.pallas_call(
        kernel,
        out_shape=jax.ShapeDtypeStruct((N, 2 * bw, HW), x_nchw.dtype),
        grid_spec=pltpu.PrefetchScalarGridSpec(
            num_scalar_prefetch=0,
            grid=(N,),
            in_specs=[
                pl.BlockSpec((1, C, HW), lambda n: (n, 0, 0)),
                const_spec((9, 1, HW)),
                const_spec((9, bw, C)),  const_spec((bw, 1)),
                const_spec((9, bw, bw)), const_spec((bw, 1)),
                const_spec((9, bw, bw)), const_spec((bw, 1)),
                const_spec((9, bw, bw)), const_spec((bw, 1)),
            ],
            out_specs=pl.BlockSpec((1, 2 * bw, HW), lambda n: (n, 0, 0)),
        ),
        compiler_params=pltpu.CompilerParams(
            dimension_semantics=("parallel",)),
    )(x_flat, masks,
      params["inconv"]["w9s"], params["inconv"]["b2"],
      params["upconv"]["w9s"], params["upconv"]["b2"],
      params["downconv"]["w9s"], params["downconv"]["b2"],
      params["downconv2"]["w9s"], params["downconv2"]["b2"])
    return out.reshape(N, 2 * bw, H, W)


context_module_forward = jax.jit(context_module_pallas)


# ----------------------------------------------------------------------------
# Parameter setup (deterministic, synthetic) — matches PyTorch layouts
# ----------------------------------------------------------------------------
def _make_cba_params(key, cin, cout):
    kw, kg, kb, km, kv = jax.random.split(key, 5)
    w_oihw = jax.random.normal(kw, (cout, cin, 3, 3), jnp.float32) * 0.1
    gamma = 0.5 + jax.random.uniform(kg, (cout,), jnp.float32)
    beta = jax.random.normal(kb, (cout,), jnp.float32) * 0.1
    mean = jax.random.normal(km, (cout,), jnp.float32) * 0.1
    var = 0.5 + jax.random.uniform(kv, (cout,), jnp.float32)
    scale = gamma / jnp.sqrt(var + _BN_EPS)
    bias = beta - mean * scale
    # Fold BN scale into the conv weights and lay out as (9, Cout, Cin),
    # tap index = ky*3 + kx (matches the kernel's (dy,dx) enumeration).
    w9s = jnp.transpose(w_oihw * scale[:, None, None, None],
                        (2, 3, 0, 1)).reshape(9, cout, cin)
    return {"w_oihw": w_oihw, "scale": scale, "bias": bias,
            "w9s": w9s, "b2": bias.reshape(cout, 1)}


def make_context_module_params(key, in_channels):
    bw = in_channels // 4
    k1, k2, k3, k4 = jax.random.split(key, 4)
    return {
        "inconv": _make_cba_params(k1, in_channels, bw),
        "upconv": _make_cba_params(k2, bw, bw),
        "downconv": _make_cba_params(k3, bw, bw),
        "downconv2": _make_cba_params(k4, bw, bw),
    }


# ----------------------------------------------------------------------------
# Pure-JAX reference (correctness check)
# ----------------------------------------------------------------------------
def _ref_cba(x_nchw, p):
    y = jax.lax.conv_general_dilated(
        x_nchw, p["w_oihw"], window_strides=(1, 1), padding="SAME",
        dimension_numbers=("NCHW", "OIHW", "NCHW"))
    y = y * p["scale"][None, :, None, None] + p["bias"][None, :, None, None]
    return jnp.maximum(y, 0.0)


def context_module_reference(x_nchw, params):
    x1 = _ref_cba(x_nchw, params["inconv"])
    up = _ref_cba(x1, params["upconv"])
    down = _ref_cba(_ref_cba(x1, params["downconv"]), params["downconv2"])
    return jnp.concatenate([up, down], axis=1)


if __name__ == "__main__":
    key = jax.random.PRNGKey(0)
    kx, kp = jax.random.split(key)

    N, C, H, W = 2, 8, 16, 16            # in_channels=8 -> block_wide=2
    x = jax.random.normal(kx, (N, C, H, W), jnp.float32)
    params = make_context_module_params(kp, C)

    out = jax.block_until_ready(context_module_forward(x, params))
    ref = jax.block_until_ready(context_module_reference(x, params))

    assert out.shape == (N, (C // 4) * 2, H, W), out.shape
    np.testing.assert_allclose(np.asarray(out), np.asarray(ref),
                               rtol=1e-3, atol=1e-3)
    print("KERNEL_OK")
</pallas_src>

<mosaic_0001>
module attributes {stable_mosaic.version = 11 : i64} {
  func.func @_context_kernel(%arg0: i32, %arg1: memref<1x8x256xf32, #tpu.memory_space<vmem>>, %arg2: memref<9x1x256xf32, #tpu.memory_space<vmem>>, %arg3: memref<9x2x8xf32, #tpu.memory_space<vmem>>, %arg4: memref<2x1xf32, #tpu.memory_space<vmem>>, %arg5: memref<9x2x2xf32, #tpu.memory_space<vmem>>, %arg6: memref<2x1xf32, #tpu.memory_space<vmem>>, %arg7: memref<9x2x2xf32, #tpu.memory_space<vmem>>, %arg8: memref<2x1xf32, #tpu.memory_space<vmem>>, %arg9: memref<9x2x2xf32, #tpu.memory_space<vmem>>, %arg10: memref<2x1xf32, #tpu.memory_space<vmem>>, %arg11: memref<1x4x256xf32, #tpu.memory_space<vmem>>) attributes {dimension_semantics = [#tpu.dimension_semantics<parallel>], iteration_bounds = array<i64: 2>, scalar_prefetch = 0 : i64, scratch_operands = 0 : i64, tpu.core_type = #tpu.core_type<tc>, window_params = [{transform_indices = @transform_0, window_bounds = array<i64: 1, 8, 256>}, {pipeline_mode = #tpu.pipeline_mode<synchronous>, transform_indices = @transform_1, window_bounds = array<i64: 9, 1, 256>}, {pipeline_mode = #tpu.pipeline_mode<synchronous>, transform_indices = @transform_2, window_bounds = array<i64: 9, 2, 8>}, {pipeline_mode = #tpu.pipeline_mode<synchronous>, transform_indices = @transform_3, window_bounds = array<i64: 2, 1>}, {pipeline_mode = #tpu.pipeline_mode<synchronous>, transform_indices = @transform_4, window_bounds = array<i64: 9, 2, 2>}, {pipeline_mode = #tpu.pipeline_mode<synchronous>, transform_indices = @transform_5, window_bounds = array<i64: 2, 1>}, {pipeline_mode = #tpu.pipeline_mode<synchronous>, transform_indices = @transform_6, window_bounds = array<i64: 9, 2, 2>}, {pipeline_mode = #tpu.pipeline_mode<synchronous>, transform_indices = @transform_7, window_bounds = array<i64: 2, 1>}, {pipeline_mode = #tpu.pipeline_mode<synchronous>, transform_indices = @transform_8, window_bounds = array<i64: 9, 2, 2>}, {pipeline_mode = #tpu.pipeline_mode<synchronous>, transform_indices = @transform_9, window_bounds = array<i64: 2, 1>}, {transform_indices = @transform_10, window_bounds = array<i64: 1, 4, 256>}]} {
    %c0 = arith.constant 0 : index
    %c0_0 = arith.constant 0 : index
    %c0_1 = arith.constant 0 : index
    %0 = vector.load %arg1[%c0, %c0_0, %c0_1] : memref<1x8x256xf32, #tpu.memory_space<vmem>>, vector<1x8x256xf32>
    %1 = vector.shape_cast %0 : vector<1x8x256xf32> to vector<8x256xf32>
    %cst = arith.constant 0.000000e+00 : f32
    %2 = vector.broadcast %cst : f32 to vector<2x256xf32>
    %c17_i32 = arith.constant 17 : i32
    %3 = tpu.dynamic_rotate %1 by %c17_i32 dim 1 : vector<8x256xf32>, i32 -> vector<8x256xf32>
    %c0_2 = arith.constant 0 : index
    %c0_3 = arith.constant 0 : index
    %c0_4 = arith.constant 0 : index
    %4 = vector.load %arg2[%c0_2, %c0_3, %c0_4] : memref<9x1x256xf32, #tpu.memory_space<vmem>>, vector<1x1x256xf32>
    %5 = vector.shape_cast %4 : vector<1x1x256xf32> to vector<1x256xf32>
    %6 = vector.broadcast %5 : vector<1x256xf32> to vector<8x256xf32>
    %7 = arith.mulf %3, %6 : vector<8x256xf32>
    %c0_5 = arith.constant 0 : index
    %c0_6 = arith.constant 0 : index
    %c0_7 = arith.constant 0 : index
    %8 = vector.load %arg3[%c0_5, %c0_6, %c0_7] : memref<9x2x8xf32, #tpu.memory_space<vmem>>, vector<1x2x8xf32>
    %9 = vector.shape_cast %8 : vector<1x2x8xf32> to vector<2x8xf32>
    %cst_8 = arith.constant dense<0.000000e+00> : vector<2x256xf32>
    %10 = tpu.matmul %9, %7, %cst_8 {dimension_numbers = #tpu.dot_dimension_numbers<[1], [0], [0], [1], [0, 0, 1, 1], [], []>} : vector<2x8xf32>, vector<8x256xf32>, vector<2x256xf32> -> vector<2x256xf32>
    %11 = arith.addf %2, %10 : vector<2x256xf32>
    %c16_i32 = arith.constant 16 : i32
    %12 = tpu.dynamic_rotate %1 by %c16_i32 dim 1 : vector<8x256xf32>, i32 -> vector<8x256xf32>
    %c1 = arith.constant 1 : index
    %c0_9 = arith.constant 0 : index
    %c0_10 = arith.constant 0 : index
    %13 = vector.load %arg2[%c1, %c0_9, %c0_10] : memref<9x1x256xf32, #tpu.memory_space<vmem>>, vector<1x1x256xf32>
    %14 = vector.shape_cast %13 : vector<1x1x256xf32> to vector<1x256xf32>
    %15 = vector.broadcast %14 : vector<1x256xf32> to vector<8x256xf32>
    %16 = arith.mulf %12, %15 : vector<8x256xf32>
    %c1_11 = arith.constant 1 : index
    %c0_12 = arith.constant 0 : index
    %c0_13 = arith.constant 0 : index
    %17 = vector.load %arg3[%c1_11, %c0_12, %c0_13] : memref<9x2x8xf32, #tpu.memory_space<vmem>>, vector<1x2x8xf32>
    %18 = vector.shape_cast %17 : vector<1x2x8xf32> to vector<2x8xf32>
    %cst_14 = arith.constant dense<0.000000e+00> : vector<2x256xf32>
    %19 = tpu.matmul %18, %16, %cst_14 {dimension_numbers = #tpu.dot_dimension_numbers<[1], [0], [0], [1], [0, 0, 1, 1], [], []>} : vector<2x8xf32>, vector<8x256xf32>, vector<2x256xf32> -> vector<2x256xf32>
    %20 = arith.addf %11, %19 : vector<2x256xf32>
    %c15_i32 = arith.constant 15 : i32
    %21 = tpu.dynamic_rotate %1 by %c15_i32 dim 1 : vector<8x256xf32>, i32 -> vector<8x256xf32>
    %c2 = arith.constant 2 : index
    %c0_15 = arith.constant 0 : index
    %c0_16 = arith.constant 0 : index
    %22 = vector.load %arg2[%c2, %c0_15, %c0_16] : memref<9x1x256xf32, #tpu.memory_space<vmem>>, vector<1x1x256xf32>
    %23 = vector.shape_cast %22 : vector<1x1x256xf32> to vector<1x256xf32>
    %24 = vector.broadcast %23 : vector<1x256xf32> to vector<8x256xf32>
    %25 = arith.mulf %21, %24 : vector<8x256xf32>
    %c2_17 = arith.constant 2 : index
    %c0_18 = arith.constant 0 : index
    %c0_19 = arith.constant 0 : index
    %26 = vector.load %arg3[%c2_17, %c0_18, %c0_19] : memref<9x2x8xf32, #tpu.memory_space<vmem>>, vector<1x2x8xf32>
    %27 = vector.shape_cast %26 : vector<1x2x8xf32> to vector<2x8xf32>
    %cst_20 = arith.constant dense<0.000000e+00> : vector<2x256xf32>
    %28 = tpu.matmul %27, %25, %cst_20 {dimension_numbers = #tpu.dot_dimension_numbers<[1], [0], [0], [1], [0, 0, 1, 1], [], []>} : vector<2x8xf32>, vector<8x256xf32>, vector<2x256xf32> -> vector<2x256xf32>
    %29 = arith.addf %20, %28 : vector<2x256xf32>
    %c1_i32 = arith.constant 1 : i32
    %30 = tpu.dynamic_rotate %1 by %c1_i32 dim 1 : vector<8x256xf32>, i32 -> vector<8x256xf32>
    %c3 = arith.constant 3 : index
    %c0_21 = arith.constant 0 : index
    %c0_22 = arith.constant 0 : index
    %31 = vector.load %arg2[%c3, %c0_21, %c0_22] : memref<9x1x256xf32, #tpu.memory_space<vmem>>, vector<1x1x256xf32>
    %32 = vector.shape_cast %31 : vector<1x1x256xf32> to vector<1x256xf32>
    %33 = vector.broadcast %32 : vector<1x256xf32> to vector<8x256xf32>
    %34 = arith.mulf %30, %33 : vector<8x256xf32>
    %c3_23 = arith.constant 3 : index
    %c0_24 = arith.constant 0 : index
    %c0_25 = arith.constant 0 : index
    %35 = vector.load %arg3[%c3_23, %c0_24, %c0_25] : memref<9x2x8xf32, #tpu.memory_space<vmem>>, vector<1x2x8xf32>
    %36 = vector.shape_cast %35 : vector<1x2x8xf32> to vector<2x8xf32>
    %cst_26 = arith.constant dense<0.000000e+00> : vector<2x256xf32>
    %37 = tpu.matmul %36, %34, %cst_26 {dimension_numbers = #tpu.dot_dimension_numbers<[1], [0], [0], [1], [0, 0, 1, 1], [], []>} : vector<2x8xf32>, vector<8x256xf32>, vector<2x256xf32> -> vector<2x256xf32>
    %38 = arith.addf %29, %37 : vector<2x256xf32>
    %c4 = arith.constant 4 : index
    %c0_27 = arith.constant 0 : index
    %c0_28 = arith.constant 0 : index
    %39 = vector.load %arg3[%c4, %c0_27, %c0_28] : memref<9x2x8xf32, #tpu.memory_space<vmem>>, vector<1x2x8xf32>
    %40 = vector.shape_cast %39 : vector<1x2x8xf32> to vector<2x8xf32>
    %cst_29 = arith.constant dense<0.000000e+00> : vector<2x256xf32>
    %41 = tpu.matmul %40, %1, %cst_29 {dimension_numbers = #tpu.dot_dimension_numbers<[1], [0], [0], [1], [0, 0, 1, 1], [], []>} : vector<2x8xf32>, vector<8x256xf32>, vector<2x256xf32> -> vector<2x256xf32>
    %42 = arith.addf %38, %41 : vector<2x256xf32>
    %c255_i32 = arith.constant 255 : i32
    %43 = tpu.dynamic_rotate %1 by %c255_i32 dim 1 : vector<8x256xf32>, i32 -> vector<8x256xf32>
    %c5 = arith.constant 5 : index
    %c0_30 = arith.constant 0 : index
    %c0_31 = arith.constant 0 : index
    %44 = vector.load %arg2[%c5, %c0_30, %c0_31] : memref<9x1x256xf32, #tpu.memory_space<vmem>>, vector<1x1x256xf32>
    %45 = vector.shape_cast %44 : vector<1x1x256xf32> to vector<1x256xf32>
    %46 = vector.broadcast %45 : vector<1x256xf32> to vector<8x256xf32>
    %47 = arith.mulf %43, %46 : vector<8x256xf32>
    %c5_32 = arith.constant 5 : index
    %c0_33 = arith.constant 0 : index
    %c0_34 = arith.constant 0 : index
    %48 = vector.load %arg3[%c5_32, %c0_33, %c0_34] : memref<9x2x8xf32, #tpu.memory_space<vmem>>, vector<1x2x8xf32>
    %49 = vector.shape_cast %48 : vector<1x2x8xf32> to vector<2x8xf32>
    %cst_35 = arith.constant dense<0.000000e+00> : vector<2x256xf32>
    %50 = tpu.matmul %49, %47, %cst_35 {dimension_numbers = #tpu.dot_dimension_numbers<[1], [0], [0], [1], [0, 0, 1, 1], [], []>} : vector<2x8xf32>, vector<8x256xf32>, vector<2x256xf32> -> vector<2x256xf32>
    %51 = arith.addf %42, %50 : vector<2x256xf32>
    %c241_i32 = arith.constant 241 : i32
    %52 = tpu.dynamic_rotate %1 by %c241_i32 dim 1 : vector<8x256xf32>, i32 -> vector<8x256xf32>
    %c6 = arith.constant 6 : index
    %c0_36 = arith.constant 0 : index
    %c0_37 = arith.constant 0 : index
    %53 = vector.load %arg2[%c6, %c0_36, %c0_37] : memref<9x1x256xf32, #tpu.memory_space<vmem>>, vector<1x1x256xf32>
    %54 = vector.shape_cast %53 : vector<1x1x256xf32> to vector<1x256xf32>
    %55 = vector.broadcast %54 : vector<1x256xf32> to vector<8x256xf32>
    %56 = arith.mulf %52, %55 : vector<8x256xf32>
    %c6_38 = arith.constant 6 : index
    %c0_39 = arith.constant 0 : index
    %c0_40 = arith.constant 0 : index
    %57 = vector.load %arg3[%c6_38, %c0_39, %c0_40] : memref<9x2x8xf32, #tpu.memory_space<vmem>>, vector<1x2x8xf32>
    %58 = vector.shape_cast %57 : vector<1x2x8xf32> to vector<2x8xf32>
    %cst_41 = arith.constant dense<0.000000e+00> : vector<2x256xf32>
    %59 = tpu.matmul %58, %56, %cst_41 {dimension_numbers = #tpu.dot_dimension_numbers<[1], [0], [0], [1], [0, 0, 1, 1], [], []>} : vector<2x8xf32>, vector<8x256xf32>, vector<2x256xf32> -> vector<2x256xf32>
    %60 = arith.addf %51, %59 : vector<2x256xf32>
    %c240_i32 = arith.constant 240 : i32
    %61 = tpu.dynamic_rotate %1 by %c240_i32 dim 1 : vector<8x256xf32>, i32 -> vector<8x256xf32>
    %c7 = arith.constant 7 : index
    %c0_42 = arith.constant 0 : index
    %c0_43 = arith.constant 0 : index
    %62 = vector.load %arg2[%c7, %c0_42, %c0_43] : memref<9x1x256xf32, #tpu.memory_space<vmem>>, vector<1x1x256xf32>
    %63 = vector.shape_cast %62 : vector<1x1x256xf32> to vector<1x256xf32>
    %64 = vector.broadcast %63 : vector<1x256xf32> to vector<8x256xf32>
    %65 = arith.mulf %61, %64 : vector<8x256xf32>
    %c7_44 = arith.constant 7 : index
    %c0_45 = arith.constant 0 : index
    %c0_46 = arith.constant 0 : index
    %66 = vector.load %arg3[%c7_44, %c0_45, %c0_46] : memref<9x2x8xf32, #tpu.memory_space<vmem>>, vector<1x2x8xf32>
    %67 = vector.shape_cast %66 : vector<1x2x8xf32> to vector<2x8xf32>
    %cst_47 = arith.constant dense<0.000000e+00> : vector<2x256xf32>
    %68 = tpu.matmul %67, %65, %cst_47 {dimension_numbers = #tpu.dot_dimension_numbers<[1], [0], [0], [1], [0, 0, 1, 1], [], []>} : vector<2x8xf32>, vector<8x256xf32>, vector<2x256xf32> -> vector<2x256xf32>
    %69 = arith.addf %60, %68 : vector<2x256xf32>
    %c239_i32 = arith.constant 239 : i32
    %70 = tpu.dynamic_rotate %1 by %c239_i32 dim 1 : vector<8x256xf32>, i32 -> vector<8x256xf32>
    %c8 = arith.constant 8 : index
    %c0_48 = arith.constant 0 : index
    %c0_49 = arith.constant 0 : index
    %71 = vector.load %arg2[%c8, %c0_48, %c0_49] : memref<9x1x256xf32, #tpu.memory_space<vmem>>, vector<1x1x256xf32>
    %72 = vector.shape_cast %71 : vector<1x1x256xf32> to vector<1x256xf32>
    %73 = vector.broadcast %72 : vector<1x256xf32> to vector<8x256xf32>
    %74 = arith.mulf %70, %73 : vector<8x256xf32>
    %c8_50 = arith.constant 8 : index
    %c0_51 = arith.constant 0 : index
    %c0_52 = arith.constant 0 : index
    %75 = vector.load %arg3[%c8_50, %c0_51, %c0_52] : memref<9x2x8xf32, #tpu.memory_space<vmem>>, vector<1x2x8xf32>
    %76 = vector.shape_cast %75 : vector<1x2x8xf32> to vector<2x8xf32>
    %cst_53 = arith.constant dense<0.000000e+00> : vector<2x256xf32>
    %77 = tpu.matmul %76, %74, %cst_53 {dimension_numbers = #tpu.dot_dimension_numbers<[1], [0], [0], [1], [0, 0, 1, 1], [], []>} : vector<2x8xf32>, vector<8x256xf32>, vector<2x256xf32> -> vector<2x256xf32>
    %78 = arith.addf %69, %77 : vector<2x256xf32>
    %c0_54 = arith.constant 0 : index
    %c0_55 = arith.constant 0 : index
    %79 = vector.load %arg4[%c0_54, %c0_55] : memref<2x1xf32, #tpu.memory_space<vmem>>, vector<2x1xf32>
    %80 = vector.broadcast %79 : vector<2x1xf32> to vector<2x256xf32>
    %81 = arith.addf %78, %80 : vector<2x256xf32>
    %cst_56 = arith.constant 0.000000e+00 : f32
    %82 = vector.broadcast %cst_56 : f32 to vector<2x256xf32>
    %83 = arith.maximumf %81, %82 : vector<2x256xf32>
    %cst_57 = arith.constant 0.000000e+00 : f32
    %84 = vector.broadcast %cst_57 : f32 to vector<2x256xf32>
    %c17_i32_58 = arith.constant 17 : i32
    %85 = tpu.dynamic_rotate %83 by %c17_i32_58 dim 1 : vector<2x256xf32>, i32 -> vector<2x256xf32>
    %c0_59 = arith.constant 0 : index
    %c0_60 = arith.constant 0 : index
    %c0_61 = arith.constant 0 : index
    %86 = vector.load %arg2[%c0_59, %c0_60, %c0_61] : memref<9x1x256xf32, #tpu.memory_space<vmem>>, vector<1x1x256xf32>
    %87 = vector.shape_cast %86 : vector<1x1x256xf32> to vector<1x256xf32>
    %88 = vector.broadcast %87 : vector<1x256xf32> to vector<2x256xf32>
    %89 = arith.mulf %85, %88 : vector<2x256xf32>
    %c0_62 = arith.constant 0 : index
    %c0_63 = arith.constant 0 : index
    %c0_64 = arith.constant 0 : index
    %90 = vector.load %arg5[%c0_62, %c0_63, %c0_64] : memref<9x2x2xf32, #tpu.memory_space<vmem>>, vector<1x2x2xf32>
    %91 = vector.shape_cast %90 : vector<1x2x2xf32> to vector<2x2xf32>
    %cst_65 = arith.constant dense<0.000000e+00> : vector<2x256xf32>
    %92 = tpu.matmul %91, %89, %cst_65 {dimension_numbers = #tpu.dot_dimension_numbers<[1], [0], [0], [1], [0, 0, 1, 1], [], []>} : vector<2x2xf32>, vector<2x256xf32>, vector<2x256xf32> -> vector<2x256xf32>
    %93 = arith.addf %84, %92 : vector<2x256xf32>
    %c16_i32_66 = arith.constant 16 : i32
    %94 = tpu.dynamic_rotate %83 by %c16_i32_66 dim 1 : vector<2x256xf32>, i32 -> vector<2x256xf32>
    %c1_67 = arith.constant 1 : index
    %c0_68 = arith.constant 0 : index
    %c0_69 = arith.constant 0 : index
    %95 = vector.load %arg2[%c1_67, %c0_68, %c0_69] : memref<9x1x256xf32, #tpu.memory_space<vmem>>, vector<1x1x256xf32>
    %96 = vector.shape_cast %95 : vector<1x1x256xf32> to vector<1x256xf32>
    %97 = vector.broadcast %96 : vector<1x256xf32> to vector<2x256xf32>
    %98 = arith.mulf %94, %97 : vector<2x256xf32>
    %c1_70 = arith.constant 1 : index
    %c0_71 = arith.constant 0 : index
    %c0_72 = arith.constant 0 : index
    %99 = vector.load %arg5[%c1_70, %c0_71, %c0_72] : memref<9x2x2xf32, #tpu.memory_space<vmem>>, vector<1x2x2xf32>
    %100 = vector.shape_cast %99 : vector<1x2x2xf32> to vector<2x2xf32>
    %cst_73 = arith.constant dense<0.000000e+00> : vector<2x256xf32>
    %101 = tpu.matmul %100, %98, %cst_73 {dimension_numbers = #tpu.dot_dimension_numbers<[1], [0], [0], [1], [0, 0, 1, 1], [], []>} : vector<2x2xf32>, vector<2x256xf32>, vector<2x256xf32> -> vector<2x256xf32>
    %102 = arith.addf %93, %101 : vector<2x256xf32>
    %c15_i32_74 = arith.constant 15 : i32
    %103 = tpu.dynamic_rotate %83 by %c15_i32_74 dim 1 : vector<2x256xf32>, i32 -> vector<2x256xf32>
    %c2_75 = arith.constant 2 : index
    %c0_76 = arith.constant 0 : index
    %c0_77 = arith.constant 0 : index
    %104 = vector.load %arg2[%c2_75, %c0_76, %c0_77] : memref<9x1x256xf32, #tpu.memory_space<vmem>>, vector<1x1x256xf32>
    %105 = vector.shape_cast %104 : vector<1x1x256xf32> to vector<1x256xf32>
    %106 = vector.broadcast %105 : vector<1x256xf32> to vector<2x256xf32>
    %107 = arith.mulf %103, %106 : vector<2x256xf32>
    %c2_78 = arith.constant 2 : index
    %c0_79 = arith.constant 0 : index
    %c0_80 = arith.constant 0 : index
    %108 = vector.load %arg5[%c2_78, %c0_79, %c0_80] : memref<9x2x2xf32, #tpu.memory_space<vmem>>, vector<1x2x2xf32>
    %109 = vector.shape_cast %108 : vector<1x2x2xf32> to vector<2x2xf32>
    %cst_81 = arith.constant dense<0.000000e+00> : vector<2x256xf32>
    %110 = tpu.matmul %109, %107, %cst_81 {dimension_numbers = #tpu.dot_dimension_numbers<[1], [0], [0], [1], [0, 0, 1, 1], [], []>} : vector<2x2xf32>, vector<2x256xf32>, vector<2x256xf32> -> vector<2x256xf32>
    %111 = arith.addf %102, %110 : vector<2x256xf32>
    %c1_i32_82 = arith.constant 1 : i32
    %112 = tpu.dynamic_rotate %83 by %c1_i32_82 dim 1 : vector<2x256xf32>, i32 -> vector<2x256xf32>
    %c3_83 = arith.constant 3 : index
    %c0_84 = arith.constant 0 : index
    %c0_85 = arith.constant 0 : index
    %113 = vector.load %arg2[%c3_83, %c0_84, %c0_85] : memref<9x1x256xf32, #tpu.memory_space<vmem>>, vector<1x1x256xf32>
    %114 = vector.shape_cast %113 : vector<1x1x256xf32> to vector<1x256xf32>
    %115 = vector.broadcast %114 : vector<1x256xf32> to vector<2x256xf32>
    %116 = arith.mulf %112, %115 : vector<2x256xf32>
    %c3_86 = arith.constant 3 : index
    %c0_87 = arith.constant 0 : index
    %c0_88 = arith.constant 0 : index
    %117 = vector.load %arg5[%c3_86, %c0_87, %c0_88] : memref<9x2x2xf32, #tpu.memory_space<vmem>>, vector<1x2x2xf32>
    %118 = vector.shape_cast %117 : vector<1x2x2xf32> to vector<2x2xf32>
    %cst_89 = arith.constant dense<0.000000e+00> : vector<2x256xf32>
    %119 = tpu.matmul %118, %116, %cst_89 {dimension_numbers = #tpu.dot_dimension_numbers<[1], [0], [0], [1], [0, 0, 1, 1], [], []>} : vector<2x2xf32>, vector<2x256xf32>, vector<2x256xf32> -> vector<2x256xf32>
    %120 = arith.addf %111, %119 : vector<2x256xf32>
    %c4_90 = arith.constant 4 : index
    %c0_91 = arith.constant 0 : index
    %c0_92 = arith.constant 0 : index
    %121 = vector.load %arg5[%c4_90, %c0_91, %c0_92] : memref<9x2x2xf32, #tpu.memory_space<vmem>>, vector<1x2x2xf32>
    %122 = vector.shape_cast %121 : vector<1x2x2xf32> to vector<2x2xf32>
    %cst_93 = arith.constant dense<0.000000e+00> : vector<2x256xf32>
    %123 = tpu.matmul %122, %83, %cst_93 {dimension_numbers = #tpu.dot_dimension_numbers<[1], [0], [0], [1], [0, 0, 1, 1], [], []>} : vector<2x2xf32>, vector<2x256xf32>, vector<2x256xf32> -> vector<2x256xf32>
    %124 = arith.addf %120, %123 : vector<2x256xf32>
    %c255_i32_94 = arith.constant 255 : i32
    %125 = tpu.dynamic_rotate %83 by %c255_i32_94 dim 1 : vector<2x256xf32>, i32 -> vector<2x256xf32>
    %c5_95 = arith.constant 5 : index
    %c0_96 = arith.constant 0 : index
    %c0_97 = arith.constant 0 : index
    %126 = vector.load %arg2[%c5_95, %c0_96, %c0_97] : memref<9x1x256xf32, #tpu.memory_space<vmem>>, vector<1x1x256xf32>
    %127 = vector.shape_cast %126 : vector<1x1x256xf32> to vector<1x256xf32>
    %128 = vector.broadcast %127 : vector<1x256xf32> to vector<2x256xf32>
    %129 = arith.mulf %125, %128 : vector<2x256xf32>
    %c5_98 = arith.constant 5 : index
    %c0_99 = arith.constant 0 : index
    %c0_100 = arith.constant 0 : index
    %130 = vector.load %arg5[%c5_98, %c0_99, %c0_100] : memref<9x2x2xf32, #tpu.memory_space<vmem>>, vector<1x2x2xf32>
    %131 = vector.shape_cast %130 : vector<1x2x2xf32> to vector<2x2xf32>
    %cst_101 = arith.constant dense<0.000000e+00> : vector<2x256xf32>
    %132 = tpu.matmul %131, %129, %cst_101 {dimension_numbers = #tpu.dot_dimension_numbers<[1], [0], [0], [1], [0, 0, 1, 1], [], []>} : vector<2x2xf32>, vector<2x256xf32>, vector<2x256xf32> -> vector<2x256xf32>
    %133 = arith.addf %124, %132 : vector<2x256xf32>
    %c241_i32_102 = arith.constant 241 : i32
    %134 = tpu.dynamic_rotate %83 by %c241_i32_102 dim 1 : vector<2x256xf32>, i32 -> vector<2x256xf32>
    %c6_103 = arith.constant 6 : index
    %c0_104 = arith.constant 0 : index
    %c0_105 = arith.constant 0 : index
    %135 = vector.load %arg2[%c6_103, %c0_104, %c0_105] : memref<9x1x256xf32, #tpu.memory_space<vmem>>, vector<1x1x256xf32>
    %136 = vector.shape_cast %135 : vector<1x1x256xf32> to vector<1x256xf32>
    %137 = vector.broadcast %136 : vector<1x256xf32> to vector<2x256xf32>
    %138 = arith.mulf %134, %137 : vector<2x256xf32>
    %c6_106 = arith.constant 6 : index
    %c0_107 = arith.constant 0 : index
    %c0_108 = arith.constant 0 : index
    %139 = vector.load %arg5[%c6_106, %c0_107, %c0_108] : memref<9x2x2xf32, #tpu.memory_space<vmem>>, vector<1x2x2xf32>
    %140 = vector.shape_cast %139 : vector<1x2x2xf32> to vector<2x2xf32>
    %cst_109 = arith.constant dense<0.000000e+00> : vector<2x256xf32>
    %141 = tpu.matmul %140, %138, %cst_109 {dimension_numbers = #tpu.dot_dimension_numbers<[1], [0], [0], [1], [0, 0, 1, 1], [], []>} : vector<2x2xf32>, vector<2x256xf32>, vector<2x256xf32> -> vector<2x256xf32>
    %142 = arith.addf %133, %141 : vector<2x256xf32>
    %c240_i32_110 = arith.constant 240 : i32
    %143 = tpu.dynamic_rotate %83 by %c240_i32_110 dim 1 : vector<2x256xf32>, i32 -> vector<2x256xf32>
    %c7_111 = arith.constant 7 : index
    %c0_112 = arith.constant 0 : index
    %c0_113 = arith.constant 0 : index
    %144 = vector.load %arg2[%c7_111, %c0_112, %c0_113] : memref<9x1x256xf32, #tpu.memory_space<vmem>>, vector<1x1x256xf32>
    %145 = vector.shape_cast %144 : vector<1x1x256xf32> to vector<1x256xf32>
    %146 = vector.broadcast %145 : vector<1x256xf32> to vector<2x256xf32>
    %147 = arith.mulf %143, %146 : vector<2x256xf32>
    %c7_114 = arith.constant 7 : index
    %c0_115 = arith.constant 0 : index
    %c0_116 = arith.constant 0 : index
    %148 = vector.load %arg5[%c7_114, %c0_115, %c0_116] : memref<9x2x2xf32, #tpu.memory_space<vmem>>, vector<1x2x2xf32>
    %149 = vector.shape_cast %148 : vector<1x2x2xf32> to vector<2x2xf32>
    %cst_117 = arith.constant dense<0.000000e+00> : vector<2x256xf32>
    %150 = tpu.matmul %149, %147, %cst_117 {dimension_numbers = #tpu.dot_dimension_numbers<[1], [0], [0], [1], [0, 0, 1, 1], [], []>} : vector<2x2xf32>, vector<2x256xf32>, vector<2x256xf32> -> vector<2x256xf32>
    %151 = arith.addf %142, %150 : vector<2x256xf32>
    %c239_i32_118 = arith.constant 239 : i32
    %152 = tpu.dynamic_rotate %83 by %c239_i32_118 dim 1 : vector<2x256xf32>, i32 -> vector<2x256xf32>
    %c8_119 = arith.constant 8 : index
    %c0_120 = arith.constant 0 : index
    %c0_121 = arith.constant 0 : index
    %153 = vector.load %arg2[%c8_119, %c0_120, %c0_121] : memref<9x1x256xf32, #tpu.memory_space<vmem>>, vector<1x1x256xf32>
    %154 = vector.shape_cast %153 : vector<1x1x256xf32> to vector<1x256xf32>
    %155 = vector.broadcast %154 : vector<1x256xf32> to vector<2x256xf32>
    %156 = arith.mulf %152, %155 : vector<2x256xf32>
    %c8_122 = arith.constant 8 : index
    %c0_123 = arith.constant 0 : index
    %c0_124 = arith.constant 0 : index
    %157 = vector.load %arg5[%c8_122, %c0_123, %c0_124] : memref<9x2x2xf32, #tpu.memory_space<vmem>>, vector<1x2x2xf32>
    %158 = vector.shape_cast %157 : vector<1x2x2xf32> to vector<2x2xf32>
    %cst_125 = arith.constant dense<0.000000e+00> : vector<2x256xf32>
    %159 = tpu.matmul %158, %156, %cst_125 {dimension_numbers = #tpu.dot_dimension_numbers<[1], [0], [0], [1], [0, 0, 1, 1], [], []>} : vector<2x2xf32>, vector<2x256xf32>, vector<2x256xf32> -> vector<2x256xf32>
    %160 = arith.addf %151, %159 : vector<2x256xf32>
    %c0_126 = arith.constant 0 : index
    %c0_127 = arith.constant 0 : index
    %161 = vector.load %arg6[%c0_126, %c0_127] : memref<2x1xf32, #tpu.memory_space<vmem>>, vector<2x1xf32>
    %162 = vector.broadcast %161 : vector<2x1xf32> to vector<2x256xf32>
    %163 = arith.addf %160, %162 : vector<2x256xf32>
    %cst_128 = arith.constant 0.000000e+00 : f32
    %164 = vector.broadcast %cst_128 : f32 to vector<2x256xf32>
    %165 = arith.maximumf %163, %164 : vector<2x256xf32>
    %cst_129 = arith.constant 0.000000e+00 : f32
    %166 = vector.broadcast %cst_129 : f32 to vector<2x256xf32>
    %c17_i32_130 = arith.constant 17 : i32
    %167 = tpu.dynamic_rotate %83 by %c17_i32_130 dim 1 : vector<2x256xf32>, i32 -> vector<2x256xf32>
    %c0_131 = arith.constant 0 : index
    %c0_132 = arith.constant 0 : index
    %c0_133 = arith.constant 0 : index
    %168 = vector.load %arg2[%c0_131, %c0_132, %c0_133] : memref<9x1x256xf32, #tpu.memory_space<vmem>>, vector<1x1x256xf32>
    %169 = vector.shape_cast %168 : vector<1x1x256xf32> to vector<1x256xf32>
    %170 = vector.broadcast %169 : vector<1x256xf32> to vector<2x256xf32>
    %171 = arith.mulf %167, %170 : vector<2x256xf32>
    %c0_134 = arith.constant 0 : index
    %c0_135 = arith.constant 0 : index
    %c0_136 = arith.constant 0 : index
    %172 = vector.load %arg7[%c0_134, %c0_135, %c0_136] : memref<9x2x2xf32, #tpu.memory_space<vmem>>, vector<1x2x2xf32>
    %173 = vector.shape_cast %172 : vector<1x2x2xf32> to vector<2x2xf32>
    %cst_137 = arith.constant dense<0.000000e+00> : vector<2x256xf32>
    %174 = tpu.matmul %173, %171, %cst_137 {dimension_numbers = #tpu.dot_dimension_numbers<[1], [0], [0], [1], [0, 0, 1, 1], [], []>} : vector<2x2xf32>, vector<2x256xf32>, vector<2x256xf32> -> vector<2x256xf32>
    %175 = arith.addf %166, %174 : vector<2x256xf32>
    %c16_i32_138 = arith.constant 16 : i32
    %176 = tpu.dynamic_rotate %83 by %c16_i32_138 dim 1 : vector<2x256xf32>, i32 -> vector<2x256xf32>
    %c1_139 = arith.constant 1 : index
    %c0_140 = arith.constant 0 : index
    %c0_141 = arith.constant 0 : index
    %177 = vector.load %arg2[%c1_139, %c0_140, %c0_141] : memref<9x1x256xf32, #tpu.memory_space<vmem>>, vector<1x1x256xf32>
    %178 = vector.shape_cast %177 : vector<1x1x256xf32> to vector<1x256xf32>
    %179 = vector.broadcast %178 : vector<1x256xf32> to vector<2x256xf32>
    %180 = arith.mulf %176, %179 : vector<2x256xf32>
    %c1_142 = arith.constant 1 : index
    %c0_143 = arith.constant 0 : index
    %c0_144 = arith.constant 0 : index
    %181 = vector.load %arg7[%c1_142, %c0_143, %c0_144] : memref<9x2x2xf32, #tpu.memory_space<vmem>>, vector<1x2x2xf32>
    %182 = vector.shape_cast %181 : vector<1x2x2xf32> to vector<2x2xf32>
    %cst_145 = arith.constant dense<0.000000e+00> : vector<2x256xf32>
    %183 = tpu.matmul %182, %180, %cst_145 {dimension_numbers = #tpu.dot_dimension_numbers<[1], [0], [0], [1], [0, 0, 1, 1], [], []>} : vector<2x2xf32>, vector<2x256xf32>, vector<2x256xf32> -> vector<2x256xf32>
    %184 = arith.addf %175, %183 : vector<2x256xf32>
    %c15_i32_146 = arith.constant 15 : i32
    %185 = tpu.dynamic_rotate %83 by %c15_i32_146 dim 1 : vector<2x256xf32>, i32 -> vector<2x256xf32>
    %c2_147 = arith.constant 2 : index
    %c0_148 = arith.constant 0 : index
    %c0_149 = arith.constant 0 : index
    %186 = vector.load %arg2[%c2_147, %c0_148, %c0_149] : memref<9x1x256xf32, #tpu.memory_space<vmem>>, vector<1x1x256xf32>
    %187 = vector.shape_cast %186 : vector<1x1x256xf32> to vector<1x256xf32>
    %188 = vector.broadcast %187 : vector<1x256xf32> to vector<2x256xf32>
    %189 = arith.mulf %185, %188 : vector<2x256xf32>
    %c2_150 = arith.constant 2 : index
    %c0_151 = arith.constant 0 : index
    %c0_152 = arith.constant 0 : index
    %190 = vector.load %arg7[%c2_150, %c0_151, %c0_152] : memref<9x2x2xf32, #tpu.memory_space<vmem>>, vector<1x2x2xf32>
    %191 = vector.shape_cast %190 : vector<1x2x2xf32> to vector<2x2xf32>
    %cst_153 = arith.constant dense<0.000000e+00> : vector<2x256xf32>
    %192 = tpu.matmul %191, %189, %cst_153 {dimension_numbers = #tpu.dot_dimension_numbers<[1], [0], [0], [1], [0, 0, 1, 1], [], []>} : vector<2x2xf32>, vector<2x256xf32>, vector<2x256xf32> -> vector<2x256xf32>
    %193 = arith.addf %184, %192 : vector<2x256xf32>
    %c1_i32_154 = arith.constant 1 : i32
    %194 = tpu.dynamic_rotate %83 by %c1_i32_154 dim 1 : vector<2x256xf32>, i32 -> vector<2x256xf32>
    %c3_155 = arith.constant 3 : index
    %c0_156 = arith.constant 0 : index
    %c0_157 = arith.constant 0 : index
    %195 = vector.load %arg2[%c3_155, %c0_156, %c0_157] : memref<9x1x256xf32, #tpu.memory_space<vmem>>, vector<1x1x256xf32>
    %196 = vector.shape_cast %195 : vector<1x1x256xf32> to vector<1x256xf32>
    %197 = vector.broadcast %196 : vector<1x256xf32> to vector<2x256xf32>
    %198 = arith.mulf %194, %197 : vector<2x256xf32>
    %c3_158 = arith.constant 3 : index
    %c0_159 = arith.constant 0 : index
    %c0_160 = arith.constant 0 : index
    %199 = vector.load %arg7[%c3_158, %c0_159, %c0_160] : memref<9x2x2xf32, #tpu.memory_space<vmem>>, vector<1x2x2xf32>
    %200 = vector.shape_cast %199 : vector<1x2x2xf32> to vector<2x2xf32>
    %cst_161 = arith.constant dense<0.000000e+00> : vector<2x256xf32>
    %201 = tpu.matmul %200, %198, %cst_161 {dimension_numbers = #tpu.dot_dimension_numbers<[1], [0], [0], [1], [0, 0, 1, 1], [], []>} : vector<2x2xf32>, vector<2x256xf32>, vector<2x256xf32> -> vector<2x256xf32>
    %202 = arith.addf %193, %201 : vector<2x256xf32>
    %c4_162 = arith.constant 4 : index
    %c0_163 = arith.constant 0 : index
    %c0_164 = arith.constant 0 : index
    %203 = vector.load %arg7[%c4_162, %c0_163, %c0_164] : memref<9x2x2xf32, #tpu.memory_space<vmem>>, vector<1x2x2xf32>
    %204 = vector.shape_cast %203 : vector<1x2x2xf32> to vector<2x2xf32>
    %cst_165 = arith.constant dense<0.000000e+00> : vector<2x256xf32>
    %205 = tpu.matmul %204, %83, %cst_165 {dimension_numbers = #tpu.dot_dimension_numbers<[1], [0], [0], [1], [0, 0, 1, 1], [], []>} : vector<2x2xf32>, vector<2x256xf32>, vector<2x256xf32> -> vector<2x256xf32>
    %206 = arith.addf %202, %205 : vector<2x256xf32>
    %c255_i32_166 = arith.constant 255 : i32
    %207 = tpu.dynamic_rotate %83 by %c255_i32_166 dim 1 : vector<2x256xf32>, i32 -> vector<2x256xf32>
    %c5_167 = arith.constant 5 : index
    %c0_168 = arith.constant 0 : index
    %c0_169 = arith.constant 0 : index
    %208 = vector.load %arg2[%c5_167, %c0_168, %c0_169] : memref<9x1x256xf32, #tpu.memory_space<vmem>>, vector<1x1x256xf32>
    %209 = vector.shape_cast %208 : vector<1x1x256xf32> to vector<1x256xf32>
    %210 = vector.broadcast %209 : vector<1x256xf32> to vector<2x256xf32>
    %211 = arith.mulf %207, %210 : vector<2x256xf32>
    %c5_170 = arith.constant 5 : index
    %c0_171 = arith.constant 0 : index
    %c0_172 = arith.constant 0 : index
    %212 = vector.load %arg7[%c5_170, %c0_171, %c0_172] : memref<9x2x2xf32, #tpu.memory_space<vmem>>, vector<1x2x2xf32>
    %213 = vector.shape_cast %212 : vector<1x2x2xf32> to vector<2x2xf32>
    %cst_173 = arith.constant dense<0.000000e+00> : vector<2x256xf32>
    %214 = tpu.matmul %213, %211, %cst_173 {dimension_numbers = #tpu.dot_dimension_numbers<[1], [0], [0], [1], [0, 0, 1, 1], [], []>} : vector<2x2xf32>, vector<2x256xf32>, vector<2x256xf32> -> vector<2x256xf32>
    %215 = arith.addf %206, %214 : vector<2x256xf32>
    %c241_i32_174 = arith.constant 241 : i32
    %216 = tpu.dynamic_rotate %83 by %c241_i32_174 dim 1 : vector<2x256xf32>, i32 -> vector<2x256xf32>
    %c6_175 = arith.constant 6 : index
    %c0_176 = arith.constant 0 : index
    %c0_177 = arith.constant 0 : index
    %217 = vector.load %arg2[%c6_175, %c0_176, %c0_177] : memref<9x1x256xf32, #tpu.memory_space<vmem>>, vector<1x1x256xf32>
    %218 = vector.shape_cast %217 : vector<1x1x256xf32> to vector<1x256xf32>
    %219 = vector.broadcast %218 : vector<1x256xf32> to vector<2x256xf32>
    %220 = arith.mulf %216, %219 : vector<2x256xf32>
    %c6_178 = arith.constant 6 : index
    %c0_179 = arith.constant 0 : index
    %c0_180 = arith.constant 0 : index
    %221 = vector.load %arg7[%c6_178, %c0_179, %c0_180] : memref<9x2x2xf32, #tpu.memory_space<vmem>>, vector<1x2x2xf32>
    %222 = vector.shape_cast %221 : vector<1x2x2xf32> to vector<2x2xf32>
    %cst_181 = arith.constant dense<0.000000e+00> : vector<2x256xf32>
    %223 = tpu.matmul %222, %220, %cst_181 {dimension_numbers = #tpu.dot_dimension_numbers<[1], [0], [0], [1], [0, 0, 1, 1], [], []>} : vector<2x2xf32>, vector<2x256xf32>, vector<2x256xf32> -> vector<2x256xf32>
    %224 = arith.addf %215, %223 : vector<2x256xf32>
    %c240_i32_182 = arith.constant 240 : i32
    %225 = tpu.dynamic_rotate %83 by %c240_i32_182 dim 1 : vector<2x256xf32>, i32 -> vector<2x256xf32>
    %c7_183 = arith.constant 7 : index
    %c0_184 = arith.constant 0 : index
    %c0_185 = arith.constant 0 : index
    %226 = vector.load %arg2[%c7_183, %c0_184, %c0_185] : memref<9x1x256xf32, #tpu.memory_space<vmem>>, vector<1x1x256xf32>
    %227 = vector.shape_cast %226 : vector<1x1x256xf32> to vector<1x256xf32>
    %228 = vector.broadcast %227 : vector<1x256xf32> to vector<2x256xf32>
    %229 = arith.mulf %225, %228 : vector<2x256xf32>
    %c7_186 = arith.constant 7 : index
    %c0_187 = arith.constant 0 : index
    %c0_188 = arith.constant 0 : index
    %230 = vector.load %arg7[%c7_186, %c0_187, %c0_188] : memref<9x2x2xf32, #tpu.memory_space<vmem>>, vector<1x2x2xf32>
    %231 = vector.shape_cast %230 : vector<1x2x2xf32> to vector<2x2xf32>
    %cst_189 = arith.constant dense<0.000000e+00> : vector<2x256xf32>
    %232 = tpu.matmul %231, %229, %cst_189 {dimension_numbers = #tpu.dot_dimension_numbers<[1], [0], [0], [1], [0, 0, 1, 1], [], []>} : vector<2x2xf32>, vector<2x256xf32>, vector<2x256xf32> -> vector<2x256xf32>
    %233 = arith.addf %224, %232 : vector<2x256xf32>
    %c239_i32_190 = arith.constant 239 : i32
    %234 = tpu.dynamic_rotate %83 by %c239_i32_190 dim 1 : vector<2x256xf32>, i32 -> vector<2x256xf32>
    %c8_191 = arith.constant 8 : index
    %c0_192 = arith.constant 0 : index
    %c0_193 = arith.constant 0 : index
    %235 = vector.load %arg2[%c8_191, %c0_192, %c0_193] : memref<9x1x256xf32, #tpu.memory_space<vmem>>, vector<1x1x256xf32>
    %236 = vector.shape_cast %235 : vector<1x1x256xf32> to vector<1x256xf32>
    %237 = vector.broadcast %236 : vector<1x256xf32> to vector<2x256xf32>
    %238 = arith.mulf %234, %237 : vector<2x256xf32>
    %c8_194 = arith.constant 8 : index
    %c0_195 = arith.constant 0 : index
    %c0_196 = arith.constant 0 : index
    %239 = vector.load %arg7[%c8_194, %c0_195, %c0_196] : memref<9x2x2xf32, #tpu.memory_space<vmem>>, vector<1x2x2xf32>
    %240 = vector.shape_cast %239 : vector<1x2x2xf32> to vector<2x2xf32>
    %cst_197 = arith.constant dense<0.000000e+00> : vector<2x256xf32>
    %241 = tpu.matmul %240, %238, %cst_197 {dimension_numbers = #tpu.dot_dimension_numbers<[1], [0], [0], [1], [0, 0, 1, 1], [], []>} : vector<2x2xf32>, vector<2x256xf32>, vector<2x256xf32> -> vector<2x256xf32>
    %242 = arith.addf %233, %241 : vector<2x256xf32>
    %c0_198 = arith.constant 0 : index
    %c0_199 = arith.constant 0 : index
    %243 = vector.load %arg8[%c0_198, %c0_199] : memref<2x1xf32, #tpu.memory_space<vmem>>, vector<2x1xf32>
    %244 = vector.broadcast %243 : vector<2x1xf32> to vector<2x256xf32>
    %245 = arith.addf %242, %244 : vector<2x256xf32>
    %cst_200 = arith.constant 0.000000e+00 : f32
    %246 = vector.broadcast %cst_200 : f32 to vector<2x256xf32>
    %247 = arith.maximumf %245, %246 : vector<2x256xf32>
    %cst_201 = arith.constant 0.000000e+00 : f32
    %248 = vector.broadcast %cst_201 : f32 to vector<2x256xf32>
    %c17_i32_202 = arith.constant 17 : i32
    %249 = tpu.dynamic_rotate %247 by %c17_i32_202 dim 1 : vector<2x256xf32>, i32 -> vector<2x256xf32>
    %c0_203 = arith.constant 0 : index
    %c0_204 = arith.constant 0 : index
    %c0_205 = arith.constant 0 : index
    %250 = vector.load %arg2[%c0_203, %c0_204, %c0_205] : memref<9x1x256xf32, #tpu.memory_space<vmem>>, vector<1x1x256xf32>
    %251 = vector.shape_cast %250 : vector<1x1x256xf32> to vector<1x256xf32>
    %252 = vector.broadcast %251 : vector<1x256xf32> to vector<2x256xf32>
    %253 = arith.mulf %249, %252 : vector<2x256xf32>
    %c0_206 = arith.constant 0 : index
    %c0_207 = arith.constant 0 : index
    %c0_208 = arith.constant 0 : index
    %254 = vector.load %arg9[%c0_206, %c0_207, %c0_208] : memref<9x2x2xf32, #tpu.memory_space<vmem>>, vector<1x2x2xf32>
    %255 = vector.shape_cast %254 : vector<1x2x2xf32> to vector<2x2xf32>
    %cst_209 = arith.constant dense<0.000000e+00> : vector<2x256xf32>
    %256 = tpu.matmul %255, %253, %cst_209 {dimension_numbers = #tpu.dot_dimension_numbers<[1], [0], [0], [1], [0, 0, 1, 1], [], []>} : vector<2x2xf32>, vector<2x256xf32>, vector<2x256xf32> -> vector<2x256xf32>
    %257 = arith.addf %248, %256 : vector<2x256xf32>
    %c16_i32_210 = arith.constant 16 : i32
    %258 = tpu.dynamic_rotate %247 by %c16_i32_210 dim 1 : vector<2x256xf32>, i32 -> vector<2x256xf32>
    %c1_211 = arith.constant 1 : index
    %c0_212 = arith.constant 0 : index
    %c0_213 = arith.constant 0 : index
    %259 = vector.load %arg2[%c1_211, %c0_212, %c0_213] : memref<9x1x256xf32, #tpu.memory_space<vmem>>, vector<1x1x256xf32>
    %260 = vector.shape_cast %259 : vector<1x1x256xf32> to vector<1x256xf32>
    %261 = vector.broadcast %260 : vector<1x256xf32> to vector<2x256xf32>
    %262 = arith.mulf %258, %261 : vector<2x256xf32>
    %c1_214 = arith.constant 1 : index
    %c0_215 = arith.constant 0 : index
    %c0_216 = arith.constant 0 : index
    %263 = vector.load %arg9[%c1_214, %c0_215, %c0_216] : memref<9x2x2xf32, #tpu.memory_space<vmem>>, vector<1x2x2xf32>
    %264 = vector.shape_cast %263 : vector<1x2x2xf32> to vector<2x2xf32>
    %cst_217 = arith.constant dense<0.000000e+00> : vector<2x256xf32>
    %265 = tpu.matmul %264, %262, %cst_217 {dimension_numbers = #tpu.dot_dimension_numbers<[1], [0], [0], [1], [0, 0, 1, 1], [], []>} : vector<2x2xf32>, vector<2x256xf32>, vector<2x256xf32> -> vector<2x256xf32>
    %266 = arith.addf %257, %265 : vector<2x256xf32>
    %c15_i32_218 = arith.constant 15 : i32
    %267 = tpu.dynamic_rotate %247 by %c15_i32_218 dim 1 : vector<2x256xf32>, i32 -> vector<2x256xf32>
    %c2_219 = arith.constant 2 : index
    %c0_220 = arith.constant 0 : index
    %c0_221 = arith.constant 0 : index
    %268 = vector.load %arg2[%c2_219, %c0_220, %c0_221] : memref<9x1x256xf32, #tpu.memory_space<vmem>>, vector<1x1x256xf32>
    %269 = vector.shape_cast %268 : vector<1x1x256xf32> to vector<1x256xf32>
    %270 = vector.broadcast %269 : vector<1x256xf32> to vector<2x256xf32>
    %271 = arith.mulf %267, %270 : vector<2x256xf32>
    %c2_222 = arith.constant 2 : index
    %c0_223 = arith.constant 0 : index
    %c0_224 = arith.constant 0 : index
    %272 = vector.load %arg9[%c2_222, %c0_223, %c0_224] : memref<9x2x2xf32, #tpu.memory_space<vmem>>, vector<1x2x2xf32>
    %273 = vector.shape_cast %272 : vector<1x2x2xf32> to vector<2x2xf32>
    %cst_225 = arith.constant dense<0.000000e+00> : vector<2x256xf32>
    %274 = tpu.matmul %273, %271, %cst_225 {dimension_numbers = #tpu.dot_dimension_numbers<[1], [0], [0], [1], [0, 0, 1, 1], [], []>} : vector<2x2xf32>, vector<2x256xf32>, vector<2x256xf32> -> vector<2x256xf32>
    %275 = arith.addf %266, %274 : vector<2x256xf32>
    %c1_i32_226 = arith.constant 1 : i32
    %276 = tpu.dynamic_rotate %247 by %c1_i32_226 dim 1 : vector<2x256xf32>, i32 -> vector<2x256xf32>
    %c3_227 = arith.constant 3 : index
    %c0_228 = arith.constant 0 : index
    %c0_229 = arith.constant 0 : index
    %277 = vector.load %arg2[%c3_227, %c0_228, %c0_229] : memref<9x1x256xf32, #tpu.memory_space<vmem>>, vector<1x1x256xf32>
    %278 = vector.shape_cast %277 : vector<1x1x256xf32> to vector<1x256xf32>
    %279 = vector.broadcast %278 : vector<1x256xf32> to vector<2x256xf32>
    %280 = arith.mulf %276, %279 : vector<2x256xf32>
    %c3_230 = arith.constant 3 : index
    %c0_231 = arith.constant 0 : index
    %c0_232 = arith.constant 0 : index
    %281 = vector.load %arg9[%c3_230, %c0_231, %c0_232] : memref<9x2x2xf32, #tpu.memory_space<vmem>>, vector<1x2x2xf32>
    %282 = vector.shape_cast %281 : vector<1x2x2xf32> to vector<2x2xf32>
    %cst_233 = arith.constant dense<0.000000e+00> : vector<2x256xf32>
    %283 = tpu.matmul %282, %280, %cst_233 {dimension_numbers = #tpu.dot_dimension_numbers<[1], [0], [0], [1], [0, 0, 1, 1], [], []>} : vector<2x2xf32>, vector<2x256xf32>, vector<2x256xf32> -> vector<2x256xf32>
    %284 = arith.addf %275, %283 : vector<2x256xf32>
    %c4_234 = arith.constant 4 : index
    %c0_235 = arith.constant 0 : index
    %c0_236 = arith.constant 0 : index
    %285 = vector.load %arg9[%c4_234, %c0_235, %c0_236] : memref<9x2x2xf32, #tpu.memory_space<vmem>>, vector<1x2x2xf32>
    %286 = vector.shape_cast %285 : vector<1x2x2xf32> to vector<2x2xf32>
    %cst_237 = arith.constant dense<0.000000e+00> : vector<2x256xf32>
    %287 = tpu.matmul %286, %247, %cst_237 {dimension_numbers = #tpu.dot_dimension_numbers<[1], [0], [0], [1], [0, 0, 1, 1], [], []>} : vector<2x2xf32>, vector<2x256xf32>, vector<2x256xf32> -> vector<2x256xf32>
    %288 = arith.addf %284, %287 : vector<2x256xf32>
    %c255_i32_238 = arith.constant 255 : i32
    %289 = tpu.dynamic_rotate %247 by %c255_i32_238 dim 1 : vector<2x256xf32>, i32 -> vector<2x256xf32>
    %c5_239 = arith.constant 5 : index
    %c0_240 = arith.constant 0 : index
    %c0_241 = arith.constant 0 : index
    %290 = vector.load %arg2[%c5_239, %c0_240, %c0_241] : memref<9x1x256xf32, #tpu.memory_space<vmem>>, vector<1x1x256xf32>
    %291 = vector.shape_cast %290 : vector<1x1x256xf32> to vector<1x256xf32>
    %292 = vector.broadcast %291 : vector<1x256xf32> to vector<2x256xf32>
    %293 = arith.mulf %289, %292 : vector<2x256xf32>
    %c5_242 = arith.constant 5 : index
    %c0_243 = arith.constant 0 : index
    %c0_244 = arith.constant 0 : index
    %294 = vector.load %arg9[%c5_242, %c0_243, %c0_244] : memref<9x2x2xf32, #tpu.memory_space<vmem>>, vector<1x2x2xf32>
    %295 = vector.shape_cast %294 : vector<1x2x2xf32> to vector<2x2xf32>
    %cst_245 = arith.constant dense<0.000000e+00> : vector<2x256xf32>
    %296 = tpu.matmul %295, %293, %cst_245 {dimension_numbers = #tpu.dot_dimension_numbers<[1], [0], [0], [1], [0, 0, 1, 1], [], []>} : vector<2x2xf32>, vector<2x256xf32>, vector<2x256xf32> -> vector<2x256xf32>
    %297 = arith.addf %288, %296 : vector<2x256xf32>
    %c241_i32_246 = arith.constant 241 : i32
    %298 = tpu.dynamic_rotate %247 by %c241_i32_246 dim 1 : vector<2x256xf32>, i32 -> vector<2x256xf32>
    %c6_247 = arith.constant 6 : index
    %c0_248 = arith.constant 0 : index
    %c0_249 = arith.constant 0 : index
    %299 = vector.load %arg2[%c6_247, %c0_248, %c0_249] : memref<9x1x256xf32, #tpu.memory_space<vmem>>, vector<1x1x256xf32>
    %300 = vector.shape_cast %299 : vector<1x1x256xf32> to vector<1x256xf32>
    %301 = vector.broadcast %300 : vector<1x256xf32> to vector<2x256xf32>
    %302 = arith.mulf %298, %301 : vector<2x256xf32>
    %c6_250 = arith.constant 6 : index
    %c0_251 = arith.constant 0 : index
    %c0_252 = arith.constant 0 : index
    %303 = vector.load %arg9[%c6_250, %c0_251, %c0_252] : memref<9x2x2xf32, #tpu.memory_space<vmem>>, vector<1x2x2xf32>
    %304 = vector.shape_cast %303 : vector<1x2x2xf32> to vector<2x2xf32>
    %cst_253 = arith.constant dense<0.000000e+00> : vector<2x256xf32>
    %305 = tpu.matmul %304, %302, %cst_253 {dimension_numbers = #tpu.dot_dimension_numbers<[1], [0], [0], [1], [0, 0, 1, 1], [], []>} : vector<2x2xf32>, vector<2x256xf32>, vector<2x256xf32> -> vector<2x256xf32>
    %306 = arith.addf %297, %305 : vector<2x256xf32>
    %c240_i32_254 = arith.constant 240 : i32
    %307 = tpu.dynamic_rotate %247 by %c240_i32_254 dim 1 : vector<2x256xf32>, i32 -> vector<2x256xf32>
    %c7_255 = arith.constant 7 : index
    %c0_256 = arith.constant 0 : index
    %c0_257 = arith.constant 0 : index
    %308 = vector.load %arg2[%c7_255, %c0_256, %c0_257] : memref<9x1x256xf32, #tpu.memory_space<vmem>>, vector<1x1x256xf32>
    %309 = vector.shape_cast %308 : vector<1x1x256xf32> to vector<1x256xf32>
    %310 = vector.broadcast %309 : vector<1x256xf32> to vector<2x256xf32>
    %311 = arith.mulf %307, %310 : vector<2x256xf32>
    %c7_258 = arith.constant 7 : index
    %c0_259 = arith.constant 0 : index
    %c0_260 = arith.constant 0 : index
    %312 = vector.load %arg9[%c7_258, %c0_259, %c0_260] : memref<9x2x2xf32, #tpu.memory_space<vmem>>, vector<1x2x2xf32>
    %313 = vector.shape_cast %312 : vector<1x2x2xf32> to vector<2x2xf32>
    %cst_261 = arith.constant dense<0.000000e+00> : vector<2x256xf32>
    %314 = tpu.matmul %313, %311, %cst_261 {dimension_numbers = #tpu.dot_dimension_numbers<[1], [0], [0], [1], [0, 0, 1, 1], [], []>} : vector<2x2xf32>, vector<2x256xf32>, vector<2x256xf32> -> vector<2x256xf32>
    %315 = arith.addf %306, %314 : vector<2x256xf32>
    %c239_i32_262 = arith.constant 239 : i32
    %316 = tpu.dynamic_rotate %247 by %c239_i32_262 dim 1 : vector<2x256xf32>, i32 -> vector<2x256xf32>
    %c8_263 = arith.constant 8 : index
    %c0_264 = arith.constant 0 : index
    %c0_265 = arith.constant 0 : index
    %317 = vector.load %arg2[%c8_263, %c0_264, %c0_265] : memref<9x1x256xf32, #tpu.memory_space<vmem>>, vector<1x1x256xf32>
    %318 = vector.shape_cast %317 : vector<1x1x256xf32> to vector<1x256xf32>
    %319 = vector.broadcast %318 : vector<1x256xf32> to vector<2x256xf32>
    %320 = arith.mulf %316, %319 : vector<2x256xf32>
    %c8_266 = arith.constant 8 : index
    %c0_267 = arith.constant 0 : index
    %c0_268 = arith.constant 0 : index
    %321 = vector.load %arg9[%c8_266, %c0_267, %c0_268] : memref<9x2x2xf32, #tpu.memory_space<vmem>>, vector<1x2x2xf32>
    %322 = vector.shape_cast %321 : vector<1x2x2xf32> to vector<2x2xf32>
    %cst_269 = arith.constant dense<0.000000e+00> : vector<2x256xf32>
    %323 = tpu.matmul %322, %320, %cst_269 {dimension_numbers = #tpu.dot_dimension_numbers<[1], [0], [0], [1], [0, 0, 1, 1], [], []>} : vector<2x2xf32>, vector<2x256xf32>, vector<2x256xf32> -> vector<2x256xf32>
    %324 = arith.addf %315, %323 : vector<2x256xf32>
    %c0_270 = arith.constant 0 : index
    %c0_271 = arith.constant 0 : index
    %325 = vector.load %arg10[%c0_270, %c0_271] : memref<2x1xf32, #tpu.memory_space<vmem>>, vector<2x1xf32>
    %326 = vector.broadcast %325 : vector<2x1xf32> to vector<2x256xf32>
    %327 = arith.addf %324, %326 : vector<2x256xf32>
    %cst_272 = arith.constant 0.000000e+00 : f32
    %328 = vector.broadcast %cst_272 : f32 to vector<2x256xf32>
    %329 = arith.maximumf %327, %328 : vector<2x256xf32>
    %c0_273 = arith.constant 0 : index
    %c0_274 = arith.constant 0 : index
    %c0_275 = arith.constant 0 : index
    %330 = vector.load %arg11[%c0_273, %c0_274, %c0_275] : memref<1x4x256xf32, #tpu.memory_space<vmem>>, vector<1x2x256xf32>
    %331 = vector.shape_cast %330 : vector<1x2x256xf32> to vector<2x256xf32>
    %332 = vector.shape_cast %165 : vector<2x256xf32> to vector<1x2x256xf32>
    tpu.vector_store %arg11[%c0_273, %c0_274, %c0_275], %332 {strides = array<i32>} : memref<1x4x256xf32, #tpu.memory_space<vmem>>, vector<1x2x256xf32>,
    %c0_276 = arith.constant 0 : index
    %c2_277 = arith.constant 2 : index
    %c0_278 = arith.constant 0 : index
    %333 = vector.load %arg11[%c0_276, %c2_277, %c0_278] : memref<1x4x256xf32, #tpu.memory_space<vmem>>, vector<1x2x256xf32>
    %334 = vector.shape_cast %333 : vector<1x2x256xf32> to vector<2x256xf32>
    %335 = vector.shape_cast %329 : vector<2x256xf32> to vector<1x2x256xf32>
    tpu.vector_store %arg11[%c0_276, %c2_277, %c0_278], %335 {strides = array<i32>} : memref<1x4x256xf32, #tpu.memory_space<vmem>>, vector<1x2x256xf32>,
    return
  }
  func.func @transform_0(%arg0: i32) -> (i32, i32, i32) {
    %c0_i32 = arith.constant 0 : i32
    %c0_i32_0 = arith.constant 0 : i32
    %c0_i32_1 = arith.constant 0 : i32
    return %arg0, %c0_i32, %c0_i32_0 : i32, i32, i32
  }
  func.func @transform_1(%arg0: i32) -> (i32, i32, i32) {
    %c0_i32 = arith.constant 0 : i32
    %c0_i32_0 = arith.constant 0 : i32
    %c0_i32_1 = arith.constant 0 : i32
    %c0_i32_2 = arith.constant 0 : i32
    return %c0_i32, %c0_i32_0, %c0_i32_1 : i32, i32, i32
  }
  func.func @transform_2(%arg0: i32) -> (i32, i32, i32) {
    %c0_i32 = arith.constant 0 : i32
    %c0_i32_0 = arith.constant 0 : i32
    %c0_i32_1 = arith.constant 0 : i32
    %c0_i32_2 = arith.constant 0 : i32
    return %c0_i32, %c0_i32_0, %c0_i32_1 : i32, i32, i32
  }
  func.func @transform_3(%arg0: i32) -> (i32, i32) {
    %c0_i32 = arith.constant 0 : i32
    %c0_i32_0 = arith.constant 0 : i32
    %c0_i32_1 = arith.constant 0 : i32
    return %c0_i32, %c0_i32_0 : i32, i32
  }
  func.func @transform_4(%arg0: i32) -> (i32, i32, i32) {
    %c0_i32 = arith.constant 0 : i32
    %c0_i32_0 = arith.constant 0 : i32
    %c0_i32_1 = arith.constant 0 : i32
    %c0_i32_2 = arith.constant 0 : i32
    return %c0_i32, %c0_i32_0, %c0_i32_1 : i32, i32, i32
  }
  func.func @transform_5(%arg0: i32) -> (i32, i32) {
    %c0_i32 = arith.constant 0 : i32
    %c0_i32_0 = arith.constant 0 : i32
    %c0_i32_1 = arith.constant 0 : i32
    return %c0_i32, %c0_i32_0 : i32, i32
  }
  func.func @transform_6(%arg0: i32) -> (i32, i32, i32) {
    %c0_i32 = arith.constant 0 : i32
    %c0_i32_0 = arith.constant 0 : i32
    %c0_i32_1 = arith.constant 0 : i32
    %c0_i32_2 = arith.constant 0 : i32
    return %c0_i32, %c0_i32_0, %c0_i32_1 : i32, i32, i32
  }
  func.func @transform_7(%arg0: i32) -> (i32, i32) {
    %c0_i32 = arith.constant 0 : i32
    %c0_i32_0 = arith.constant 0 : i32
    %c0_i32_1 = arith.constant 0 : i32
    return %c0_i32, %c0_i32_0 : i32, i32
  }
  func.func @transform_8(%arg0: i32) -> (i32, i32, i32) {
    %c0_i32 = arith.constant 0 : i32
    %c0_i32_0 = arith.constant 0 : i32
    %c0_i32_1 = arith.constant 0 : i32
    %c0_i32_2 = arith.constant 0 : i32
    return %c0_i32, %c0_i32_0, %c0_i32_1 : i32, i32, i32
  }
  func.func @transform_9(%arg0: i32) -> (i32, i32) {
    %c0_i32 = arith.constant 0 : i32
    %c0_i32_0 = arith.constant 0 : i32
    %c0_i32_1 = arith.constant 0 : i32
    return %c0_i32, %c0_i32_0 : i32, i32
  }
  func.func @transform_10(%arg0: i32) -> (i32, i32, i32) {
    %c0_i32 = arith.constant 0 : i32
    %c0_i32_0 = arith.constant 0 : i32
    %c0_i32_1 = arith.constant 0 : i32
    return %arg0, %c0_i32, %c0_i32_0 : i32, i32, i32
  }
}

</mosaic_0001>

<llo_original>
// kernel: context_module_pallas.1
$region0: #{context_module_pallas.1}
  #allocation0 [shape = 'u32[]', space=smem, size = 0x4, offset = 0x4, fixed_abs, tag = 'smem constant byte address 0x4 - core index']
  #allocation1 [shape = 'u32[144,128]{1,0:T(1,128)}', space=vmem, size = 0x12000, scoped, tag = 'internal scratch']
  %s0 = inlined_call_operand.vmem [shape: f32[2,8,256], index: 0, kind: input, shape index: {}]
  %s1 = inlined_call_operand.vmem [shape: f32[9,1,256], index: 1, kind: input, shape index: {}]
  %s2 = inlined_call_operand.vmem [shape: f32[9,2,8], index: 2, kind: input, shape index: {}]
  %s3 = inlined_call_operand.vmem [shape: f32[2,1], index: 3, kind: input, shape index: {}]
  %s4 = inlined_call_operand.vmem [shape: f32[9,2,2], index: 4, kind: input, shape index: {}]
  %s5 = inlined_call_operand.vmem [shape: f32[2,1], index: 5, kind: input, shape index: {}]
  %s6 = inlined_call_operand.vmem [shape: f32[9,2,2], index: 6, kind: input, shape index: {}]
  %s7 = inlined_call_operand.vmem [shape: f32[2,1], index: 7, kind: input, shape index: {}]
  %s8 = inlined_call_operand.vmem [shape: f32[9,2,2], index: 8, kind: input, shape index: {}]
  %s9 = inlined_call_operand.vmem [shape: f32[2,1], index: 9, kind: input, shape index: {}]
  %s10 = inlined_call_operand.vmem [shape: f32[2,4,256], index: 10, kind: output, shape index: {}]
  %s11 = sld [smem:[#allocation0]]
  $region73: #{context_module_pallas.1} parent=0
    _
  %s13 = ssub.s32 1, %s11
  %s14 = scalar_select 0, %s13, %s11
  loop: start=0, step=1, limit=4
  $region2: #{context_module_pallas.1} parent=0 // loop_pre_header
    _
  $region3: #{context_module_pallas.1} parent=0 // loop_header
    %s16 = sphi 0, %s20
    %p17 = scmp.ge.s32.totalorder %s16, 4
    %s26 = sphi 0, %s28
    %s29 = sphi 0, %s26
    %s30 = sphi 0, %s29
    %s46 = sphi 0, %s30
    %s50 = sphi 0, %s50
    %s52 = sphi 0, %s50
    %s53 = sphi 0, %s52
    %s67 = sphi 0, %s53
    %s71 = sphi 0, %s71
    %s73 = sphi 0, %s71
    %s74 = sphi 0, %s73
    %s88 = sphi 0, %s74
    %s92 = sphi 0, %s92
    %s94 = sphi 0, %s92
    %s95 = sphi 0, %s94
    %s109 = sphi 0, %s95
    %s113 = sphi 0, %s113
    %s115 = sphi 0, %s113
    %s116 = sphi 0, %s115
    %s130 = sphi 0, %s116
    %s134 = sphi 0, %s134
    %s136 = sphi 0, %s134
    %s137 = sphi 0, %s136
    %s151 = sphi 0, %s137
    %s155 = sphi 0, %s155
    %s157 = sphi 0, %s155
    %s158 = sphi 0, %s157
    %s172 = sphi 0, %s158
    %s176 = sphi 0, %s176
    %s178 = sphi 0, %s176
    %s179 = sphi 0, %s178
    %s193 = sphi 0, %s179
    %s197 = sphi 0, %s197
    %s199 = sphi 0, %s197
    %s200 = sphi 0, %s199
    %s214 = sphi 0, %s200
    %s218 = sphi 0, %s218
    %s220 = sphi 0, %s218
    %s221 = sphi 0, %s220
    %s235 = sphi 0, %s221
    %s241 = sphi 0, %s243
    %s244 = sphi 0, %s241
    %s245 = sphi 0, %s244
    %s261 = sphi 0, %s245
  $region4: #{context_module_pallas.1} parent=0 // loop_header_branch
    %19 = sbr.rel (%p17) target = $region8
  $region5: #{context_module_pallas.1} parent=0 // loop_body
    %s21 = ssub.s32 %s16, 1
    %s22 = ssub.s32 %s16, 2
    %s23 = sadd.s32 %s16, 1
    %s24 = ssub.s32 %s16, %s23
    %p25 = scmp.eq.s32.totalorder %s24, 0
    %s27 = sadd.s32 %s26, 1
    %s28 = scalar_select %p25, %s26, %s27
    %p31 = pneg %p25
    %p32 = scmp.eq.s32.totalorder %s16, 1
    %p33 = por %p31, %p32
    %p34 = scmp.ne.s32.totalorder %s26, %s29
    %p35 = scmp.eq.s32.totalorder %s16, 0
    %p36 = por %p34, %p35
    %p37 = scmp.ne.s32.totalorder %s26, %s29
    %p38 = scmp.eq.s32.totalorder %s21, 1
    %p39 = por %p37, %p38
    %p40 = scmp.ne.s32.totalorder %s29, %s30
    %p41 = scmp.eq.s32.totalorder %s21, 0
    %p42 = por %p40, %p41
    %p43 = scmp.ne.s32.totalorder %s29, %s30
    %p44 = scmp.eq.s32.totalorder %s22, 1
    %p45 = por %p43, %p44
    %p47 = scmp.ne.s32.totalorder %s30, %s46
    %p48 = scmp.eq.s32.totalorder %s22, 0
    %p49 = por %p47, %p48
    %s51 = sadd.s32 %s50, 1
    %p54 = scmp.eq.s32.totalorder %s16, 1
    %p55 = scmp.ne.s32.totalorder %s50, %s52
    %p56 = scmp.eq.s32.totalorder %s16, 0
    %p57 = por %p55, %p56
    %p58 = scmp.ne.s32.totalorder %s50, %s52
    %p59 = scmp.eq.s32.totalorder %s21, 1
    %p60 = por %p58, %p59
    %p61 = scmp.ne.s32.totalorder %s52, %s53
    %p62 = scmp.eq.s32.totalorder %s21, 0
    %p63 = por %p61, %p62
    %p64 = scmp.ne.s32.totalorder %s52, %s53
    %p65 = scmp.eq.s32.totalorder %s22, 1
    %p66 = por %p64, %p65
    %p68 = scmp.ne.s32.totalorder %s53, %s67
    %p69 = scmp.eq.s32.totalorder %s22, 0
    %p70 = por %p68, %p69
    %s72 = sadd.s32 %s71, 1
    %p75 = scmp.eq.s32.totalorder %s16, 1
    %p76 = scmp.ne.s32.totalorder %s71, %s73
    %p77 = scmp.eq.s32.totalorder %s16, 0
    %p78 = por %p76, %p77
    %p79 = scmp.ne.s32.totalorder %s71, %s73
    %p80 = scmp.eq.s32.totalorder %s21, 1
    %p81 = por %p79, %p80
    %p82 = scmp.ne.s32.totalorder %s73, %s74
    %p83 = scmp.eq.s32.totalorder %s21, 0
    %p84 = por %p82, %p83
    %p85 = scmp.ne.s32.totalorder %s73, %s74
    %p86 = scmp.eq.s32.totalorder %s22, 1
    %p87 = por %p85, %p86
    %p89 = scmp.ne.s32.totalorder %s74, %s88
    %p90 = scmp.eq.s32.totalorder %s22, 0
    %p91 = por %p89, %p90
    %s93 = sadd.s32 %s92, 1
    %p96 = scmp.eq.s32.totalorder %s16, 1
    %p97 = scmp.ne.s32.totalorder %s92, %s94
    %p98 = scmp.eq.s32.totalorder %s16, 0
    %p99 = por %p97, %p98
    %p100 = scmp.ne.s32.totalorder %s92, %s94
    %p101 = scmp.eq.s32.totalorder %s21, 1
    %p102 = por %p100, %p101
    %p103 = scmp.ne.s32.totalorder %s94, %s95
    %p104 = scmp.eq.s32.totalorder %s21, 0
    %p105 = por %p103, %p104
    %p106 = scmp.ne.s32.totalorder %s94, %s95
    %p107 = scmp.eq.s32.totalorder %s22, 1
    %p108 = por %p106, %p107
    %p110 = scmp.ne.s32.totalorder %s95, %s109
    %p111 = scmp.eq.s32.totalorder %s22, 0
    %p112 = por %p110, %p111
    %s114 = sadd.s32 %s113, 1
    %p117 = scmp.eq.s32.totalorder %s16, 1
    %p118 = scmp.ne.s32.totalorder %s113, %s115
    %p119 = scmp.eq.s32.totalorder %s16, 0
    %p120 = por %p118, %p119
    %p121 = scmp.ne.s32.totalorder %s113, %s115
    %p122 = scmp.eq.s32.totalorder %s21, 1
    %p123 = por %p121, %p122
    %p124 = scmp.ne.s32.totalorder %s115, %s116
    %p125 = scmp.eq.s32.totalorder %s21, 0
    %p126 = por %p124, %p125
    %p127 = scmp.ne.s32.totalorder %s115, %s116
    %p128 = scmp.eq.s32.totalorder %s22, 1
    %p129 = por %p127, %p128
    %p131 = scmp.ne.s32.totalorder %s116, %s130
    %p132 = scmp.eq.s32.totalorder %s22, 0
    %p133 = por %p131, %p132
    %s135 = sadd.s32 %s134, 1
    %p138 = scmp.eq.s32.totalorder %s16, 1
    %p139 = scmp.ne.s32.totalorder %s134, %s136
    %p140 = scmp.eq.s32.totalorder %s16, 0
    %p141 = por %p139, %p140
    %p142 = scmp.ne.s32.totalorder %s134, %s136
    %p143 = scmp.eq.s32.totalorder %s21, 1
    %p144 = por %p142, %p143
    %p145 = scmp.ne.s32.totalorder %s136, %s137
    %p146 = scmp.eq.s32.totalorder %s21, 0
    %p147 = por %p145, %p146
    %p148 = scmp.ne.s32.totalorder %s136, %s137
    %p149 = scmp.eq.s32.totalorder %s22, 1
    %p150 = por %p148, %p149
    %p152 = scmp.ne.s32.totalorder %s137, %s151
    %p153 = scmp.eq.s32.totalorder %s22, 0
    %p154 = por %p152, %p153
    %s156 = sadd.s32 %s155, 1
    %p159 = scmp.eq.s32.totalorder %s16, 1
    %p160 = scmp.ne.s32.totalorder %s155, %s157
    %p161 = scmp.eq.s32.totalorder %s16, 0
    %p162 = por %p160, %p161
    %p163 = scmp.ne.s32.totalorder %s155, %s157
    %p164 = scmp.eq.s32.totalorder %s21, 1
    %p165 = por %p163, %p164
    %p166 = scmp.ne.s32.totalorder %s157, %s158
    %p167 = scmp.eq.s32.totalorder %s21, 0
    %p168 = por %p166, %p167
    %p169 = scmp.ne.s32.totalorder %s157, %s158
    %p170 = scmp.eq.s32.totalorder %s22, 1
    %p171 = por %p169, %p170
    %p173 = scmp.ne.s32.totalorder %s158, %s172
    %p174 = scmp.eq.s32.totalorder %s22, 0
    %p175 = por %p173, %p174
    %s177 = sadd.s32 %s176, 1
    %p180 = scmp.eq.s32.totalorder %s16, 1
    %p181 = scmp.ne.s32.totalorder %s176, %s178
    %p182 = scmp.eq.s32.totalorder %s16, 0
    %p183 = por %p181, %p182
    %p184 = scmp.ne.s32.totalorder %s176, %s178
    %p185 = scmp.eq.s32.totalorder %s21, 1
    %p186 = por %p184, %p185
    %p187 = scmp.ne.s32.totalorder %s178, %s179
    %p188 = scmp.eq.s32.totalorder %s21, 0
    %p189 = por %p187, %p188
    %p190 = scmp.ne.s32.totalorder %s178, %s179
    %p191 = scmp.eq.s32.totalorder %s22, 1
    %p192 = por %p190, %p191
    %p194 = scmp.ne.s32.totalorder %s179, %s193
    %p195 = scmp.eq.s32.totalorder %s22, 0
    %p196 = por %p194, %p195
    %s198 = sadd.s32 %s197, 1
    %p201 = scmp.eq.s32.totalorder %s16, 1
    %p202 = scmp.ne.s32.totalorder %s197, %s199
    %p203 = scmp.eq.s32.totalorder %s16, 0
    %p204 = por %p202, %p203
    %p205 = scmp.ne.s32.totalorder %s197, %s199
    %p206 = scmp.eq.s32.totalorder %s21, 1
    %p207 = por %p205, %p206
    %p208 = scmp.ne.s32.totalorder %s199, %s200
    %p209 = scmp.eq.s32.totalorder %s21, 0
    %p210 = por %p208, %p209
    %p211 = scmp.ne.s32.totalorder %s199, %s200
    %p212 = scmp.eq.s32.totalorder %s22, 1
    %p213 = por %p211, %p212
    %p215 = scmp.ne.s32.totalorder %s200, %s214
    %p216 = scmp.eq.s32.totalorder %s22, 0
    %p217 = por %p215, %p216
    %s219 = sadd.s32 %s218, 1
    %p222 = scmp.eq.s32.totalorder %s16, 1
    %p223 = scmp.ne.s32.totalorder %s218, %s220
    %p224 = scmp.eq.s32.totalorder %s16, 0
    %p225 = por %p223, %p224
    %p226 = scmp.ne.s32.totalorder %s218, %s220
    %p227 = scmp.eq.s32.totalorder %s21, 1
    %p228 = por %p226, %p227
    %p229 = scmp.ne.s32.totalorder %s220, %s221
    %p230 = scmp.eq.s32.totalorder %s21, 0
    %p231 = por %p229, %p230
    %p232 = scmp.ne.s32.totalorder %s220, %s221
    %p233 = scmp.eq.s32.totalorder %s22, 1
    %p234 = por %p232, %p233
    %p236 = scmp.ne.s32.totalorder %s221, %s235
    %p237 = scmp.eq.s32.totalorder %s22, 0
    %p238 = por %p236, %p237
    %s239 = ssub.s32 %s16, %s23
    %p240 = scmp.eq.s32.totalorder %s239, 0
    %s242 = sadd.s32 %s241, 1
    %s243 = scalar_select %p240, %s241, %s242
    %p246 = pneg %p240
    %p247 = scmp.eq.s32.totalorder %s16, 1
    %p248 = por %p246, %p247
    %p249 = scmp.ne.s32.totalorder %s241, %s244
    %p250 = scmp.eq.s32.totalorder %s16, 0
    %p251 = por %p249, %p250
    %p252 = scmp.ne.s32.totalorder %s241, %s244
    %p253 = scmp.eq.s32.totalorder %s21, 1
    %p254 = por %p252, %p253
    %p255 = scmp.ne.s32.totalorder %s244, %s245
    %p256 = scmp.eq.s32.totalorder %s21, 0
    %p257 = por %p255, %p256
    %p258 = scmp.ne.s32.totalorder %s244, %s245
    %p259 = scmp.eq.s32.totalorder %s22, 1
    %p260 = por %p258, %p259
    %p262 = scmp.ne.s32.totalorder %s245, %s261
    %p263 = scmp.eq.s32.totalorder %s22, 0
    %p264 = por %p262, %p263
    %p265 = scmp.le.s32.totalorder 1, %s16
    %p266 = scmp.lt.s32.totalorder %s16, 3
    %p267 = pnand %p265, %p266
    %p268 = pneg %p267
    // Predicated region
    $region9: #{context_module_pallas.1} parent=5 // pred_check
      _
    $region10: #{context_module_pallas.1} parent=5 // pred_check_branch
      %270 = sbr.rel (%p267) target = $region12
    $region11: #{context_module_pallas.1} parent=5 // pred_region
      %s271 = ssub.s32 %s16, 1
      // Predicated region
      $region13: #{context_module_pallas.1} parent=11 // pred_check
        %p272 = pneg %p63
      $region14: #{context_module_pallas.1} parent=11 // pred_check_branch
        %274 = sbr.rel (%p272) target = $region16
      $region15: #{context_module_pallas.1} parent=11 // pred_region
        _
      $region16: #{context_module_pallas.1} parent=11 // pred_fallthru
        _
      // Predicated region
      $region17: #{context_module_pallas.1} parent=11 // pred_check
        %p275 = pneg %p84
      $region18: #{context_module_pallas.1} parent=11 // pred_check_branch
        %277 = sbr.rel (%p275) target = $region20
      $region19: #{context_module_pallas.1} parent=11 // pred_region
        _
      $region20: #{context_module_pallas.1} parent=11 // pred_fallthru
        _
      // Predicated region
      $region21: #{context_module_pallas.1} parent=11 // pred_check
        %p278 = pneg %p105
      $region22: #{context_module_pallas.1} parent=11 // pred_check_branch
        %280 = sbr.rel (%p278) target = $region24
      $region23: #{context_module_pallas.1} parent=11 // pred_region
        _
      $region24: #{context_module_pallas.1} parent=11 // pred_fallthru
        _
      // Predicated region
      $region25: #{context_module_pallas.1} parent=11 // pred_check
        %p281 = pneg %p126
      $region26: #{context_module_pallas.1} parent=11 // pred_check_branch
        %283 = sbr.rel (%p281) target = $region28
      $region27: #{context_module_pallas.1} parent=11 // pred_region
        _
      $region28: #{context_module_pallas.1} parent=11 // pred_fallthru
        _
      // Predicated region
      $region29: #{context_module_pallas.1} parent=11 // pred_check
        %p284 = pneg %p147
      $region30: #{context_module_pallas.1} parent=11 // pred_check_branch
        %286 = sbr.rel (%p284) target = $region32
      $region31: #{context_module_pallas.1} parent=11 // pred_region
        _
      $region32: #{context_module_pallas.1} parent=11 // pred_fallthru
        _
      // Predicated region
      $region33: #{context_module_pallas.1} parent=11 // pred_check
        %p287 = pneg %p168
      $region34: #{context_module_pallas.1} parent=11 // pred_check_branch
        %289 = sbr.rel (%p287) target = $region36
      $region35: #{context_module_pallas.1} parent=11 // pred_region
        _
      $region36: #{context_module_pallas.1} parent=11 // pred_fallthru
        _
      // Predicated region
      $region37: #{context_module_pallas.1} parent=11 // pred_check
        %p290 = pneg %p189
      $region38: #{context_module_pallas.1} parent=11 // pred_check_branch
        %292 = sbr.rel (%p290) target = $region40
      $region39: #{context_module_pallas.1} parent=11 // pred_region
        _
      $region40: #{context_module_pallas.1} parent=11 // pred_fallthru
        _
      // Predicated region
      $region41: #{context_module_pallas.1} parent=11 // pred_check
        %p293 = pneg %p210
      $region42: #{context_module_pallas.1} parent=11 // pred_check_branch
        %295 = sbr.rel (%p293) target = $region44
      $region43: #{context_module_pallas.1} parent=11 // pred_region
        _
      $region44: #{context_module_pallas.1} parent=11 // pred_fallthru
        _
      // Predicated region
      $region45: #{context_module_pallas.1} parent=11 // pred_check
        %p296 = pneg %p231
      $region46: #{context_module_pallas.1} parent=11 // pred_check_branch
        %298 = sbr.rel (%p296) target = $region48
      $region47: #{context_module_pallas.1} parent=11 // pred_region
        _
      $region48: #{context_module_pallas.1} parent=11 // pred_fallthru
        _
    $region12: #{context_module_pallas.1} parent=5 // pred_fallthru
      _
    %p299 = scmp.lt.s32.totalorder %s16, 2
    // Predicated region
    $region49: #{context_module_pallas.1} parent=5 // pred_check
      %p300 = pneg %p299
    $region50: #{context_module_pallas.1} parent=5 // pred_check_branch
      %302 = sbr.rel (%p300) target = $region52
    $region51: #{context_module_pallas.1} parent=5 // pred_region
      // Predicated region
      $region53: #{context_module_pallas.1} parent=51 // pred_check
        %p303 = pneg %p36
      $region54: #{context_module_pallas.1} parent=51 // pred_check_branch
        %305 = sbr.rel (%p303) target = $region56
      $region55: #{context_module_pallas.1} parent=51 // pred_region
        %p306 = scmp.lt.s32.totalorder %s16, 1
        %s307 = scalar_select %p306, %s16, 1
        %s308 = smul.addr %s307, 2
        %s309 = smul.addr %s308, 8
        %s310 = scalar_lea.vmem %s0, %s309
      $region56: #{context_module_pallas.1} parent=51 // pred_fallthru
        _
    $region52: #{context_module_pallas.1} parent=5 // pred_fallthru
      _
    %p311 = scmp.le.s32.totalorder 1, %s16
    %p312 = scmp.lt.s32.totalorder %s16, 3
    %p313 = pnand %p311, %p312
    %p314 = pneg %p313
    // Predicated region
    $region57: #{context_module_pallas.1} parent=5 // pred_check
      _
    $region58: #{context_module_pallas.1} parent=5 // pred_check_branch
      %316 = sbr.rel (%p313) target = $region60
    $region59: #{context_module_pallas.1} parent=5 // pred_region
      %s317 = ssub.s32 %s16, 1
      %p318 = scmp.lt.s32.totalorder %s21, 1
      %s319 = scalar_select %p318, %s21, 1
      %s320 = smul.addr %s319, 2
      %s321 = smul.addr %s320, 8
      %s322 = scalar_lea.vmem %s0, %s321
      %p323 = pneg %p42
      %p324 = pneg %p39
      %p325 = pneg %p63
      %p326 = pneg %p60
      %p327 = pneg %p84
      %p328 = pneg %p81
      %p329 = pneg %p105
      %p330 = pneg %p102
      %p331 = pneg %p126
      %p332 = pneg %p123
      %p333 = pneg %p147
      %p334 = pneg %p144
      %p335 = pneg %p168
      %p336 = pneg %p165
      %p337 = pneg %p189
      %p338 = pneg %p186
      %p339 = pneg %p210
      %p340 = pneg %p207
      %p341 = pneg %p231
      %p342 = pneg %p228
      %p343 = pneg %p257
      %p344 = pneg %p254
      %p345 = scmp.lt.s32.totalorder %s21, 1
      %s346 = scalar_select %p345, %s21, 1
      %s347 = smul.addr %s346, 2
      %s348 = smul.addr %s347, 4
      %s349 = scalar_lea.vmem %s10, %s348
      %p350 = scmp.lt.s32.totalorder %s21, 1
      %s351 = scalar_select %p350, %s21, 1
      %s352 = smul.addr %s351, 2
      %s353 = smul.addr %s352, 8
      %s354 = scalar_lea.vmem %s0, %s353
      %p355 = scmp.lt.s32.totalorder %s21, 1
      %s356 = scalar_select %p355, %s21, 1
      %s357 = smul.addr %s356, 2
      %s358 = smul.addr %s357, 4
      %s359 = scalar_lea.vmem %s10, %s358
      %v360 = vld [vmem:[%s354] sm:$0xff]
      %v361 = vld [vmem:[%s354 + $0x8] sm:$0xff]
      %362 = vrot.lane.b32.xlu0 %v360, 17
      %v363 = vpop.permute.xlu0 %362
      %364 = vrot.lane.b32.xlu0 %v361, 17
      %v365 = vpop.permute.xlu0 %364
      %v366 = vlaneseq
      %v367 = vand.u32 %v366, 127
      %vm368 = vcmp.lt.s32.totalorder %v367, 17
      %v369 = vsel %vm368, %v363, %v365
      %v370 = vsel %vm368, %v365, %v363
      %v371 = vld [vmem:[%s1] sm:$0x3]
      %v373 = vlaneseq
      %v374 = vshrl.u32 %v373, 7
      %v375 = vsub.s32 0, %v374
      %v376 = vrot.slane %v371, %v375
      %v377 = vlaneseq
      %v378 = vshrl.u32 %v377, 7
      %v379 = vsub.s32 1, %v378
      %v380 = vrot.slane %v371, %v379
      %v383 = vmul.f32 %v370, %v376
      %v384 = vmul.f32 %v369, %v380
      %v385 = vld [vmem:[%s2] sm:$0x3]
      %386 = vrot.lane.b32.xlu0 %v360, 16
      %v387 = vpop.permute.xlu0 %386
      %388 = vrot.lane.b32.xlu0 %v361, 16
      %v389 = vpop.permute.xlu0 %388
      %vm390 = vcmp.lt.s32.totalorder %v367, 16
      %v391 = vsel %vm390, %v387, %v389
      %v392 = vsel %vm390, %v389, %v387
      %s393 = scalar_lea.vmem %s1, 2
      %v394 = vld [vmem:[%s393] sm:$0x3]
      %v396 = vlaneseq
      %v397 = vshrl.u32 %v396, 7
      %v398 = vsub.s32 0, %v397
      %v399 = vrot.slane %v394, %v398
      %v400 = vlaneseq
      %v401 = vshrl.u32 %v400, 7
      %v402 = vsub.s32 1, %v401
      %v403 = vrot.slane %v394, %v402
      %v406 = vmul.f32 %v392, %v399
      %v407 = vmul.f32 %v391, %v403
      %s408 = scalar_lea.vmem %s2, 2
      %v409 = vld [vmem:[%s408] sm:$0x3]
      %vm410 = vcmask 64512
      %v412 = vsel %vm410, %v409, 0
      %414 = vmatprep.subr.mxu0 %v407
      %415 = vmatpush1.msra.mxu0 %v406
      %416 = vmatprep.subr.mxu0 0.0
      %417 = vmatpush1.msra.mxu0 0.0
      %418 = vmatprep.subr.mxu0 0.0
      %419 = vmatpush1.msra.mxu0 0.0
      %420 = vmatprep.subr.mxu0 0.0
      %421 = vmatpush1.msra.mxu0 0.0
      %422 = vmatprep.subr.mxu0 0.0
      %423 = vmatpush1.msra.mxu0 0.0
      %424 = vmatprep.subr.mxu0 0.0
      %425 = vmatpush1.msra.mxu0 0.0
      %426 = vmatprep.subr.mxu0 0.0
      %427 = vmatpush1.msra.mxu0 0.0
      %428 = vmatprep.subr.mxu0 0.0
      %429 = vmatpush1.msra.mxu0 0.0
      %430 = vmatprep.subr.mxu0 0.0
      %431 = vmatpush1.msra.mxu0 0.0
      %432 = vmatprep.subr.mxu0 0.0
      %433 = vmatpush1.msra.mxu0 0.0
      %434 = vmatprep.subr.mxu0 0.0
      %435 = vmatpush1.msra.mxu0 0.0
      %436 = vmatprep.subr.mxu0 0.0
      %437 = vmatpush1.msra.mxu0 0.0
      %438 = vmatprep.subr.mxu0 0.0
      %439 = vmatpush1.msra.mxu0 0.0
      %440 = vmatprep.subr.mxu0 0.0
      %441 = vmatpush1.msra.mxu0 0.0
      %442 = vmatprep.subr.mxu0 0.0
      %443 = vmatpush1.msra.mxu0 0.0
      %444 = vmatprep.subr.mxu0 0.0
      %445 = vmatpush1.msra.mxu0 0.0
      %446 = vmatprep.subr.mxu0 0.0
      %447 = vmatpush1.msra.mxu0 0.0
      %448 = vmatprep.subr.mxu0 0.0
      %449 = vmatpush1.msra.mxu0 0.0
      %450 = vmatprep.subr.mxu0 0.0
      %451 = vmatpush1.msra.mxu0 0.0
      %452 = vmatprep.subr.mxu0 0.0
      %453 = vmatpush1.msra.mxu0 0.0
      %454 = vmatprep.subr.mxu0 0.0
      %455 = vmatpush1.msra.mxu0 0.0
      %456 = vmatprep.subr.mxu0 0.0
      %457 = vmatpush1.msra.mxu0 0.0
      %458 = vmatprep.subr.mxu0 0.0
      %459 = vmatpush1.msra.mxu0 0.0
      %460 = vmatprep.subr.mxu0 0.0
      %461 = vmatpush1.msra.mxu0 0.0
      %462 = vmatprep.subr.mxu0 0.0
      %463 = vmatpush1.msra.mxu0 0.0
      %464 = vmatprep.subr.mxu0 0.0
      %465 = vmatpush1.msra.mxu0 0.0
      %466 = vmatprep.subr.mxu0 0.0
      %467 = vmatpush1.msra.mxu0 0.0
      %468 = vmatprep.subr.mxu0 0.0
      %469 = vmatpush1.msra.mxu0 0.0
      %470 = vmatprep.subr.mxu0 0.0
      %471 = vmatpush1.msra.mxu0 0.0
      %472 = vmatprep.subr.mxu0 0.0
      %473 = vmatpush1.msra.mxu0 0.0
      %474 = vmatprep.subr.mxu0 0.0
      %475 = vmatpush1.msra.mxu0 0.0
      %476 = vmatprep.subr.mxu0 0.0
      %477 = vmatpush1.msra.mxu0 0.0
      %478 = vmatprep.mubr.f32.mxu0 0.0
      %479 = vmatmul.mubr.f32.gmra.mrb[0].mxu0 %v412
      %v480 = vpop.f32.mrb[0].mxu0
      %v481 = vadd.f32 0.0, %v480
      %v482 = vpop.f32.mrb[0].mxu0
      %v483 = vadd.f32 0.0, %v482
      %484 = vdwg.mxu0
      %v486 = vsel %vm410, %v385, 0
      %488 = vmatprep.subr.mxu0 %v384
      %489 = vmatpush1.msra.mxu0 %v383
      %490 = vmatprep.subr.mxu0 0.0
      %491 = vmatpush1.msra.mxu0 0.0
      %492 = vmatprep.subr.mxu0 0.0
      %493 = vmatpush1.msra.mxu0 0.0
      %494 = vmatprep.subr.mxu0 0.0
      %495 = vmatpush1.msra.mxu0 0.0
      %496 = vmatprep.subr.mxu0 0.0
      %497 = vmatpush1.msra.mxu0 0.0
      %498 = vmatprep.subr.mxu0 0.0
      %499 = vmatpush1.msra.mxu0 0.0
      %500 = vmatprep.subr.mxu0 0.0
      %501 = vmatpush1.msra.mxu0 0.0
      %502 = vmatprep.subr.mxu0 0.0
      %503 = vmatpush1.msra.mxu0 0.0
      %504 = vmatprep.subr.mxu0 0.0
      %505 = vmatpush1.msra.mxu0 0.0
      %506 = vmatprep.subr.mxu0 0.0
      %507 = vmatpush1.msra.mxu0 0.0
      %508 = vmatprep.subr.mxu0 0.0
      %509 = vmatpush1.msra.mxu0 0.0
      %510 = vmatprep.subr.mxu0 0.0
      %511 = vmatpush1.msra.mxu0 0.0
      %512 = vmatprep.subr.mxu0 0.0
      %513 = vmatpush1.msra.mxu0 0.0
      %514 = vmatprep.subr.mxu0 0.0
      %515 = vmatpush1.msra.mxu0 0.0
      %516 = vmatprep.subr.mxu0 0.0
      %517 = vmatpush1.msra.mxu0 0.0
      %518 = vmatprep.subr.mxu0 0.0
      %519 = vmatpush1.msra.mxu0 0.0
      %520 = vmatprep.subr.mxu0 0.0
      %521 = vmatpush1.msra.mxu0 0.0
      %522 = vmatprep.subr.mxu0 0.0
      %523 = vmatpush1.msra.mxu0 0.0
      %524 = vmatprep.subr.mxu0 0.0
      %525 = vmatpush1.msra.mxu0 0.0
      %526 = vmatprep.subr.mxu0 0.0
      %527 = vmatpush1.msra.mxu0 0.0
      %528 = vmatprep.subr.mxu0 0.0
      %529 = vmatpush1.msra.mxu0 0.0
      %530 = vmatprep.subr.mxu0 0.0
      %531 = vmatpush1.msra.mxu0 0.0
      %532 = vmatprep.subr.mxu0 0.0
      %533 = vmatpush1.msra.mxu0 0.0
      %534 = vmatprep.subr.mxu0 0.0
      %535 = vmatpush1.msra.mxu0 0.0
      %536 = vmatprep.subr.mxu0 0.0
      %537 = vmatpush1.msra.mxu0 0.0
      %538 = vmatprep.subr.mxu0 0.0
      %539 = vmatpush1.msra.mxu0 0.0
      %540 = vmatprep.subr.mxu0 0.0
      %541 = vmatpush1.msra.mxu0 0.0
      %542 = vmatprep.subr.mxu0 0.0
      %543 = vmatpush1.msra.mxu0 0.0
      %544 = vmatprep.subr.mxu0 0.0
      %545 = vmatpush1.msra.mxu0 0.0
      %546 = vmatprep.subr.mxu0 0.0
      %547 = vmatpush1.msra.mxu0 0.0
      %548 = vmatprep.subr.mxu0 0.0
      %549 = vmatpush1.msra.mxu0 0.0
      %550 = vmatprep.subr.mxu0 0.0
      %551 = vmatpush1.msra.mxu0 0.0
      %552 = vmatprep.mubr.f32.mxu0 0.0
      %553 = vmatmul.mubr.f32.gmra.mrb[0].mxu0 %v486
      %v554 = vpop.f32.mrb[0].mxu0
      %v555 = vadd.f32 %v481, %v554
      %v556 = vpop.f32.mrb[0].mxu0
      %v557 = vadd.f32 %v483, %v556
      %558 = vdwg.mxu0
      %559 = vrot.lane.b32.xlu0 %v360, 15
      %v560 = vpop.permute.xlu0 %559
      %561 = vrot.lane.b32.xlu0 %v361, 15
      %v562 = vpop.permute.xlu0 %561
      %vm563 = vcmp.lt.s32.totalorder %v367, 15
      %v564 = vsel %vm563, %v560, %v562
      %v565 = vsel %vm563, %v562, %v560
      %s566 = scalar_lea.vmem %s1, 4
      %v567 = vld [vmem:[%s566] sm:$0x3]
      %v569 = vlaneseq
      %v570 = vshrl.u32 %v569, 7
      %v571 = vsub.s32 0, %v570
      %v572 = vrot.slane %v567, %v571
      %v573 = vlaneseq
      %v574 = vshrl.u32 %v573, 7
      %v575 = vsub.s32 1, %v574
      %v576 = vrot.slane %v567, %v575
      %v579 = vmul.f32 %v565, %v572
      %v580 = vmul.f32 %v564, %v576
      %s581 = scalar_lea.vmem %s2, 4
      %v582 = vld [vmem:[%s581] sm:$0x3]
      %v584 = vsel %vm410, %v582, 0
      %586 = vmatprep.subr.mxu0 %v580
      %587 = vmatpush1.msra.mxu0 %v579
      %588 = vmatprep.subr.mxu0 0.0
      %589 = vmatpush1.msra.mxu0 0.0
      %590 = vmatprep.subr.mxu0 0.0
      %591 = vmatpush1.msra.mxu0 0.0
      %592 = vmatprep.subr.mxu0 0.0
      %593 = vmatpush1.msra.mxu0 0.0
      %594 = vmatprep.subr.mxu0 0.0
      %595 = vmatpush1.msra.mxu0 0.0
      %596 = vmatprep.subr.mxu0 0.0
      %597 = vmatpush1.msra.mxu0 0.0
      %598 = vmatprep.subr.mxu0 0.0
      %599 = vmatpush1.msra.mxu0 0.0
      %600 = vmatprep.subr.mxu0 0.0
      %601 = vmatpush1.msra.mxu0 0.0
      %602 = vmatprep.subr.mxu0 0.0
      %603 = vmatpush1.msra.mxu0 0.0
      %604 = vmatprep.subr.mxu0 0.0
      %605 = vmatpush1.msra.mxu0 0.0
      %606 = vmatprep.subr.mxu0 0.0
      %607 = vmatpush1.msra.mxu0 0.0
      %608 = vmatprep.subr.mxu0 0.0
      %609 = vmatpush1.msra.mxu0 0.0
      %610 = vmatprep.subr.mxu0 0.0
      %611 = vmatpush1.msra.mxu0 0.0
      %612 = vmatprep.subr.mxu0 0.0
      %613 = vmatpush1.msra.mxu0 0.0
      %614 = vmatprep.subr.mxu0 0.0
      %615 = vmatpush1.msra.mxu0 0.0
      %616 = vmatprep.subr.mxu0 0.0
      %617 = vmatpush1.msra.mxu0 0.0
      %618 = vmatprep.subr.mxu0 0.0
      %619 = vmatpush1.msra.mxu0 0.0
      %620 = vmatprep.subr.mxu0 0.0
      %621 = vmatpush1.msra.mxu0 0.0
      %622 = vmatprep.subr.mxu0 0.0
      %623 = vmatpush1.msra.mxu0 0.0
      %624 = vmatprep.subr.mxu0 0.0
      %625 = vmatpush1.msra.mxu0 0.0
      %626 = vmatprep.subr.mxu0 0.0
      %627 = vmatpush1.msra.mxu0 0.0
      %628 = vmatprep.subr.mxu0 0.0
      %629 = vmatpush1.msra.mxu0 0.0
      %630 = vmatprep.subr.mxu0 0.0
      %631 = vmatpush1.msra.mxu0 0.0
      %632 = vmatprep.subr.mxu0 0.0
      %633 = vmatpush1.msra.mxu0 0.0
      %634 = vmatprep.subr.mxu0 0.0
      %635 = vmatpush1.msra.mxu0 0.0
      %636 = vmatprep.subr.mxu0 0.0
      %637 = vmatpush1.msra.mxu0 0.0
      %638 = vmatprep.subr.mxu0 0.0
      %639 = vmatpush1.msra.mxu0 0.0
      %640 = vmatprep.subr.mxu0 0.0
      %641 = vmatpush1.msra.mxu0 0.0
      %642 = vmatprep.subr.mxu0 0.0
      %643 = vmatpush1.msra.mxu0 0.0
      %644 = vmatprep.subr.mxu0 0.0
      %645 = vmatpush1.msra.mxu0 0.0
      %646 = vmatprep.subr.mxu0 0.0
      %647 = vmatpush1.msra.mxu0 0.0
      %648 = vmatprep.subr.mxu0 0.0
      %649 = vmatpush1.msra.mxu0 0.0
      %650 = vmatprep.mubr.f32.mxu0 0.0
      %651 = vmatmul.mubr.f32.gmra.mrb[0].mxu0 %v584
      %v652 = vpop.f32.mrb[0].mxu0
      %v653 = vadd.f32 0.0, %v652
      %v654 = vpop.f32.mrb[0].mxu0
      %v655 = vadd.f32 0.0, %v654
      %656 = vdwg.mxu0
      %v657 = vadd.f32 %v555, %v653
      %v658 = vadd.f32 %v557, %v655
      %659 = vrot.lane.b32.xlu0 %v360, 1
      %v660 = vpop.permute.xlu0 %659
      %661 = vrot.lane.b32.xlu0 %v361, 1
      %v662 = vpop.permute.xlu0 %661
      %vm663 = vcmp.lt.s32.totalorder %v367, 1
      %v664 = vsel %vm663, %v660, %v662
      %v665 = vsel %vm663, %v662, %v660
      %s666 = scalar_lea.vmem %s1, 6
      %v667 = vld [vmem:[%s666] sm:$0x3]
      %v669 = vlaneseq
      %v670 = vshrl.u32 %v669, 7
      %v671 = vsub.s32 0, %v670
      %v672 = vrot.slane %v667, %v671
      %v673 = vlaneseq
      %v674 = vshrl.u32 %v673, 7
      %v675 = vsub.s32 1, %v674
      %v676 = vrot.slane %v667, %v675
      %v679 = vmul.f32 %v665, %v672
      %v680 = vmul.f32 %v664, %v676
      %s681 = scalar_lea.vmem %s2, 6
      %v682 = vld [vmem:[%s681] sm:$0x3]
      %v684 = vsel %vm410, %v682, 0
      %686 = vmatprep.subr.mxu0 %v680
      %687 = vmatpush1.msra.mxu0 %v679
      %688 = vmatprep.subr.mxu0 0.0
      %689 = vmatpush1.msra.mxu0 0.0
      %690 = vmatprep.subr.mxu0 0.0
      %691 = vmatpush1.msra.mxu0 0.0
      %692 = vmatprep.subr.mxu0 0.0
      %693 = vmatpush1.msra.mxu0 0.0
      %694 = vmatprep.subr.mxu0 0.0
      %695 = vmatpush1.msra.mxu0 0.0
      %696 = vmatprep.subr.mxu0 0.0
      %697 = vmatpush1.msra.mxu0 0.0
      %698 = vmatprep.subr.mxu0 0.0
      %699 = vmatpush1.msra.mxu0 0.0
      %700 = vmatprep.subr.mxu0 0.0
      %701 = vmatpush1.msra.mxu0 0.0
      %702 = vmatprep.subr.mxu0 0.0
      %703 = vmatpush1.msra.mxu0 0.0
      %704 = vmatprep.subr.mxu0 0.0
      %705 = vmatpush1.msra.mxu0 0.0
      %706 = vmatprep.subr.mxu0 0.0
      %707 = vmatpush1.msra.mxu0 0.0
      %708 = vmatprep.subr.mxu0 0.0
      %709 = vmatpush1.msra.mxu0 0.0
      %710 = vmatprep.subr.mxu0 0.0
      %711 = vmatpush1.msra.mxu0 0.0
      %712 = vmatprep.subr.mxu0 0.0
      %713 = vmatpush1.msra.mxu0 0.0
      %714 = vmatprep.subr.mxu0 0.0
      %715 = vmatpush1.msra.mxu0 0.0
      %716 = vmatprep.subr.mxu0 0.0
      %717 = vmatpush1.msra.mxu0 0.0
      %718 = vmatprep.subr.mxu0 0.0
      %719 = vmatpush1.msra.mxu0 0.0
      %720 = vmatprep.subr.mxu0 0.0
      %721 = vmatpush1.msra.mxu0 0.0
      %722 = vmatprep.subr.mxu0 0.0
      %723 = vmatpush1.msra.mxu0 0.0
      %724 = vmatprep.subr.mxu0 0.0
      %725 = vmatpush1.msra.mxu0 0.0
      %726 = vmatprep.subr.mxu0 0.0
      %727 = vmatpush1.msra.mxu0 0.0
      %728 = vmatprep.subr.mxu0 0.0
      %729 = vmatpush1.msra.mxu0 0.0
      %730 = vmatprep.subr.mxu0 0.0
      %731 = vmatpush1.msra.mxu0 0.0
      %732 = vmatprep.subr.mxu0 0.0
      %733 = vmatpush1.msra.mxu0 0.0
      %734 = vmatprep.subr.mxu0 0.0
      %735 = vmatpush1.msra.mxu0 0.0
      %736 = vmatprep.subr.mxu0 0.0
      %737 = vmatpush1.msra.mxu0 0.0
      %738 = vmatprep.subr.mxu0 0.0
      %739 = vmatpush1.msra.mxu0 0.0
      %740 = vmatprep.subr.mxu0 0.0
      %741 = vmatpush1.msra.mxu0 0.0
      %742 = vmatprep.subr.mxu0 0.0
      %743 = vmatpush1.msra.mxu0 0.0
      %744 = vmatprep.subr.mxu0 0.0
      %745 = vmatpush1.msra.mxu0 0.0
      %746 = vmatprep.subr.mxu0 0.0
      %747 = vmatpush1.msra.mxu0 0.0
      %748 = vmatprep.subr.mxu0 0.0
      %749 = vmatpush1.msra.mxu0 0.0
      %750 = vmatprep.mubr.f32.mxu0 0.0
      %751 = vmatmul.mubr.f32.gmra.mrb[0].mxu0 %v684
      %v752 = vpop.f32.mrb[0].mxu0
      %v753 = vadd.f32 0.0, %v752
      %v754 = vpop.f32.mrb[0].mxu0
      %v755 = vadd.f32 0.0, %v754
      %756 = vdwg.mxu0
      %v757 = vadd.f32 %v657, %v753
      %v758 = vadd.f32 %v658, %v755
      %s759 = scalar_lea.vmem %s2, 8
      %v760 = vld [vmem:[%s759] sm:$0x3]
      %v762 = vsel %vm410, %v760, 0
      %764 = vmatprep.subr.mxu0 %v361
      %765 = vmatpush1.msra.mxu0 %v360
      %766 = vmatprep.subr.mxu0 0.0
      %767 = vmatpush1.msra.mxu0 0.0
      %768 = vmatprep.subr.mxu0 0.0
      %769 = vmatpush1.msra.mxu0 0.0
      %770 = vmatprep.subr.mxu0 0.0
      %771 = vmatpush1.msra.mxu0 0.0
      %772 = vmatprep.subr.mxu0 0.0
      %773 = vmatpush1.msra.mxu0 0.0
      %774 = vmatprep.subr.mxu0 0.0
      %775 = vmatpush1.msra.mxu0 0.0
      %776 = vmatprep.subr.mxu0 0.0
      %777 = vmatpush1.msra.mxu0 0.0
      %778 = vmatprep.subr.mxu0 0.0
      %779 = vmatpush1.msra.mxu0 0.0
      %780 = vmatprep.subr.mxu0 0.0
      %781 = vmatpush1.msra.mxu0 0.0
      %782 = vmatprep.subr.mxu0 0.0
      %783 = vmatpush1.msra.mxu0 0.0
      %784 = vmatprep.subr.mxu0 0.0
      %785 = vmatpush1.msra.mxu0 0.0
      %786 = vmatprep.subr.mxu0 0.0
      %787 = vmatpush1.msra.mxu0 0.0
      %788 = vmatprep.subr.mxu0 0.0
      %789 = vmatpush1.msra.mxu0 0.0
      %790 = vmatprep.subr.mxu0 0.0
      %791 = vmatpush1.msra.mxu0 0.0
      %792 = vmatprep.subr.mxu0 0.0
      %793 = vmatpush1.msra.mxu0 0.0
      %794 = vmatprep.subr.mxu0 0.0
      %795 = vmatpush1.msra.mxu0 0.0
      %796 = vmatprep.subr.mxu0 0.0
      %797 = vmatpush1.msra.mxu0 0.0
      %798 = vmatprep.subr.mxu0 0.0
      %799 = vmatpush1.msra.mxu0 0.0
      %800 = vmatprep.subr.mxu0 0.0
      %801 = vmatpush1.msra.mxu0 0.0
      %802 = vmatprep.subr.mxu0 0.0
      %803 = vmatpush1.msra.mxu0 0.0
      %804 = vmatprep.subr.mxu0 0.0
      %805 = vmatpush1.msra.mxu0 0.0
      %806 = vmatprep.subr.mxu0 0.0
      %807 = vmatpush1.msra.mxu0 0.0
      %808 = vmatprep.subr.mxu0 0.0
      %809 = vmatpush1.msra.mxu0 0.0
      %810 = vmatprep.subr.mxu0 0.0
      %811 = vmatpush1.msra.mxu0 0.0
      %812 = vmatprep.subr.mxu0 0.0
      %813 = vmatpush1.msra.mxu0 0.0
      %814 = vmatprep.subr.mxu0 0.0
      %815 = vmatpush1.msra.mxu0 0.0
      %816 = vmatprep.subr.mxu0 0.0
      %817 = vmatpush1.msra.mxu0 0.0
      %818 = vmatprep.subr.mxu0 0.0
      %819 = vmatpush1.msra.mxu0 0.0
      %820 = vmatprep.subr.mxu0 0.0
      %821 = vmatpush1.msra.mxu0 0.0
      %822 = vmatprep.subr.mxu0 0.0
      %823 = vmatpush1.msra.mxu0 0.0
      %824 = vmatprep.subr.mxu0 0.0
      %825 = vmatpush1.msra.mxu0 0.0
      %826 = vmatprep.subr.mxu0 0.0
      %827 = vmatpush1.msra.mxu0 0.0
      %828 = vmatprep.mubr.f32.mxu0 0.0
      %829 = vmatmul.mubr.f32.gmra.mrb[0].mxu0 %v762
      %v830 = vpop.f32.mrb[0].mxu0
      %v831 = vadd.f32 0.0, %v830
      %v832 = vpop.f32.mrb[0].mxu0
      %v833 = vadd.f32 0.0, %v832
      %834 = vdwg.mxu0
      %v835 = vadd.f32 %v757, %v831
      %v836 = vadd.f32 %v758, %v833
      %837 = vrot.lane.b32.xlu0 %v360, 127
      %v838 = vpop.permute.xlu0 %837
      %839 = vrot.lane.b32.xlu0 %v361, 127
      %v840 = vpop.permute.xlu0 %839
      %vm841 = vcmp.lt.s32.totalorder %v367, 127
      %v842 = vsel %vm841, %v838, %v840
      %v843 = vsel %vm841, %v840, %v838
      %s844 = scalar_lea.vmem %s1, 10
      %v845 = vld [vmem:[%s844] sm:$0x3]
      %v847 = vlaneseq
      %v848 = vshrl.u32 %v847, 7
      %v849 = vsub.s32 0, %v848
      %v850 = vrot.slane %v845, %v849
      %v851 = vlaneseq
      %v852 = vshrl.u32 %v851, 7
      %v853 = vsub.s32 1, %v852
      %v854 = vrot.slane %v845, %v853
      %v857 = vmul.f32 %v842, %v850
      %v858 = vmul.f32 %v843, %v854
      %s859 = scalar_lea.vmem %s2, 10
      %v860 = vld [vmem:[%s859] sm:$0x3]
      %v862 = vsel %vm410, %v860, 0
      %864 = vmatprep.subr.mxu0 %v858
      %865 = vmatpush1.msra.mxu0 %v857
      %866 = vmatprep.subr.mxu0 0.0
      %867 = vmatpush1.msra.mxu0 0.0
      %868 = vmatprep.subr.mxu0 0.0
      %869 = vmatpush1.msra.mxu0 0.0
      %870 = vmatprep.subr.mxu0 0.0
      %871 = vmatpush1.msra.mxu0 0.0
      %872 = vmatprep.subr.mxu0 0.0
      %873 = vmatpush1.msra.mxu0 0.0
      %874 = vmatprep.subr.mxu0 0.0
      %875 = vmatpush1.msra.mxu0 0.0
      %876 = vmatprep.subr.mxu0 0.0
      %877 = vmatpush1.msra.mxu0 0.0
      %878 = vmatprep.subr.mxu0 0.0
      %879 = vmatpush1.msra.mxu0 0.0
      %880 = vmatprep.subr.mxu0 0.0
      %881 = vmatpush1.msra.mxu0 0.0
      %882 = vmatprep.subr.mxu0 0.0
      %883 = vmatpush1.msra.mxu0 0.0
      %884 = vmatprep.subr.mxu0 0.0
      %885 = vmatpush1.msra.mxu0 0.0
      %886 = vmatprep.subr.mxu0 0.0
      %887 = vmatpush1.msra.mxu0 0.0
      %888 = vmatprep.subr.mxu0 0.0
      %889 = vmatpush1.msra.mxu0 0.0
      %890 = vmatprep.subr.mxu0 0.0
      %891 = vmatpush1.msra.mxu0 0.0
      %892 = vmatprep.subr.mxu0 0.0
      %893 = vmatpush1.msra.mxu0 0.0
      %894 = vmatprep.subr.mxu0 0.0
      %895 = vmatpush1.msra.mxu0 0.0
      %896 = vmatprep.subr.mxu0 0.0
      %897 = vmatpush1.msra.mxu0 0.0
      %898 = vmatprep.subr.mxu0 0.0
      %899 = vmatpush1.msra.mxu0 0.0
      %900 = vmatprep.subr.mxu0 0.0
      %901 = vmatpush1.msra.mxu0 0.0
      %902 = vmatprep.subr.mxu0 0.0
      %903 = vmatpush1.msra.mxu0 0.0
      %904 = vmatprep.subr.mxu0 0.0
      %905 = vmatpush1.msra.mxu0 0.0
      %906 = vmatprep.subr.mxu0 0.0
      %907 = vmatpush1.msra.mxu0 0.0
      %908 = vmatprep.subr.mxu0 0.0
      %909 = vmatpush1.msra.mxu0 0.0
      %910 = vmatprep.subr.mxu0 0.0
      %911 = vmatpush1.msra.mxu0 0.0
      %912 = vmatprep.subr.mxu0 0.0
      %913 = vmatpush1.msra.mxu0 0.0
      %914 = vmatprep.subr.mxu0 0.0
      %915 = vmatpush1.msra.mxu0 0.0
      %916 = vmatprep.subr.mxu0 0.0
      %917 = vmatpush1.msra.mxu0 0.0
      %918 = vmatprep.subr.mxu0 0.0
      %919 = vmatpush1.msra.mxu0 0.0
      %920 = vmatprep.subr.mxu0 0.0
      %921 = vmatpush1.msra.mxu0 0.0
      %922 = vmatprep.subr.mxu0 0.0
      %923 = vmatpush1.msra.mxu0 0.0
      %924 = vmatprep.subr.mxu0 0.0
      %925 = vmatpush1.msra.mxu0 0.0
      %926 = vmatprep.subr.mxu0 0.0
      %927 = vmatpush1.msra.mxu0 0.0
      %928 = vmatprep.mubr.f32.mxu0 0.0
      %929 = vmatmul.mubr.f32.gmra.mrb[0].mxu0 %v862
      %v930 = vpop.f32.mrb[0].mxu0
      %v931 = vadd.f32 0.0, %v930
      %v932 = vpop.f32.mrb[0].mxu0
      %v933 = vadd.f32 0.0, %v932
      %934 = vdwg.mxu0
      %v935 = vadd.f32 %v835, %v931
      %v936 = vadd.f32 %v836, %v933
      %937 = vrot.lane.b32.xlu0 %v360, 113
      %v938 = vpop.permute.xlu0 %937
      %939 = vrot.lane.b32.xlu0 %v361, 113
      %v940 = vpop.permute.xlu0 %939
      %vm941 = vcmp.lt.s32.totalorder %v367, 113
      %v942 = vsel %vm941, %v938, %v940
      %v943 = vsel %vm941, %v940, %v938
      %s944 = scalar_lea.vmem %s1, 12
      %v945 = vld [vmem:[%s944] sm:$0x3]
      %v947 = vlaneseq
      %v948 = vshrl.u32 %v947, 7
      %v949 = vsub.s32 0, %v948
      %v950 = vrot.slane %v945, %v949
      %v951 = vlaneseq
      %v952 = vshrl.u32 %v951, 7
      %v953 = vsub.s32 1, %v952
      %v954 = vrot.slane %v945, %v953
      %v957 = vmul.f32 %v942, %v950
      %v958 = vmul.f32 %v943, %v954
      %s959 = scalar_lea.vmem %s2, 12
      %v960 = vld [vmem:[%s959] sm:$0x3]
      %v962 = vsel %vm410, %v960, 0
      %964 = vmatprep.subr.mxu0 %v958
      %965 = vmatpush1.msra.mxu0 %v957
      %966 = vmatprep.subr.mxu0 0.0
      %967 = vmatpush1.msra.mxu0 0.0
      %968 = vmatprep.subr.mxu0 0.0
      %969 = vmatpush1.msra.mxu0 0.0
      %970 = vmatprep.subr.mxu0 0.0
      %971 = vmatpush1.msra.mxu0 0.0
      %972 = vmatprep.subr.mxu0 0.0
      %973 = vmatpush1.msra.mxu0 0.0
      %974 = vmatprep.subr.mxu0 0.0
      %975 = vmatpush1.msra.mxu0 0.0
      %976 = vmatprep.subr.mxu0 0.0
      %977 = vmatpush1.msra.mxu0 0.0
      %978 = vmatprep.subr.mxu0 0.0
      %979 = vmatpush1.msra.mxu0 0.0
      %980 = vmatprep.subr.mxu0 0.0
      %981 = vmatpush1.msra.mxu0 0.0
      %982 = vmatprep.subr.mxu0 0.0
      %983 = vmatpush1.msra.mxu0 0.0
      %984 = vmatprep.subr.mxu0 0.0
      %985 = vmatpush1.msra.mxu0 0.0
      %986 = vmatprep.subr.mxu0 0.0
      %987 = vmatpush1.msra.mxu0 0.0
      %988 = vmatprep.subr.mxu0 0.0
      %989 = vmatpush1.msra.mxu0 0.0
      %990 = vmatprep.subr.mxu0 0.0
      %991 = vmatpush1.msra.mxu0 0.0
      %992 = vmatprep.subr.mxu0 0.0
      %993 = vmatpush1.msra.mxu0 0.0
      %994 = vmatprep.subr.mxu0 0.0
      %995 = vmatpush1.msra.mxu0 0.0
      %996 = vmatprep.subr.mxu0 0.0
      %997 = vmatpush1.msra.mxu0 0.0
      %998 = vmatprep.subr.mxu0 0.0
      %999 = vmatpush1.msra.mxu0 0.0
      %1000 = vmatprep.subr.mxu0 0.0
      %1001 = vmatpush1.msra.mxu0 0.0
      %1002 = vmatprep.subr.mxu0 0.0
      %1003 = vmatpush1.msra.mxu0 0.0
      %1004 = vmatprep.subr.mxu0 0.0
      %1005 = vmatpush1.msra.mxu0 0.0
      %1006 = vmatprep.subr.mxu0 0.0
      %1007 = vmatpush1.msra.mxu0 0.0
      %1008 = vmatprep.subr.mxu0 0.0
      %1009 = vmatpush1.msra.mxu0 0.0
      %1010 = vmatprep.subr.mxu0 0.0
      %1011 = vmatpush1.msra.mxu0 0.0
      %1012 = vmatprep.subr.mxu0 0.0
      %1013 = vmatpush1.msra.mxu0 0.0
      %1014 = vmatprep.subr.mxu0 0.0
      %1015 = vmatpush1.msra.mxu0 0.0
      %1016 = vmatprep.subr.mxu0 0.0
      %1017 = vmatpush1.msra.mxu0 0.0
      %1018 = vmatprep.subr.mxu0 0.0
      %1019 = vmatpush1.msra.mxu0 0.0
      %1020 = vmatprep.subr.mxu0 0.0
      %1021 = vmatpush1.msra.mxu0 0.0
      %1022 = vmatprep.subr.mxu0 0.0
      %1023 = vmatpush1.msra.mxu0 0.0
      %1024 = vmatprep.subr.mxu0 0.0
      %1025 = vmatpush1.msra.mxu0 0.0
      %1026 = vmatprep.subr.mxu0 0.0
      %1027 = vmatpush1.msra.mxu0 0.0
      %1028 = vmatprep.mubr.f32.mxu0 0.0
      %1029 = vmatmul.mubr.f32.gmra.mrb[0].mxu0 %v962
      %v1030 = vpop.f32.mrb[0].mxu0
      %v1031 = vadd.f32 0.0, %v1030
      %v1032 = vpop.f32.mrb[0].mxu0
      %v1033 = vadd.f32 0.0, %v1032
      %1034 = vdwg.mxu0
      %v1035 = vadd.f32 %v935, %v1031
      %v1036 = vadd.f32 %v936, %v1033
      %1037 = vrot.lane.b32.xlu0 %v360, 112
      %v1038 = vpop.permute.xlu0 %1037
      %1039 = vrot.lane.b32.xlu0 %v361, 112
      %v1040 = vpop.permute.xlu0 %1039
      %vm1041 = vcmp.lt.s32.totalorder %v367, 112
      %v1042 = vsel %vm1041, %v1038, %v1040
      %v1043 = vsel %vm1041, %v1040, %v1038
      %s1044 = scalar_lea.vmem %s1, 14
      %v1045 = vld [vmem:[%s1044] sm:$0x3]
      %v1047 = vlaneseq
      %v1048 = vshrl.u32 %v1047, 7
      %v1049 = vsub.s32 0, %v1048
      %v1050 = vrot.slane %v1045, %v1049
      %v1051 = vlaneseq
      %v1052 = vshrl.u32 %v1051, 7
      %v1053 = vsub.s32 1, %v1052
      %v1054 = vrot.slane %v1045, %v1053
      %v1057 = vmul.f32 %v1042, %v1050
      %v1058 = vmul.f32 %v1043, %v1054
      %s1059 = scalar_lea.vmem %s2, 14
      %v1060 = vld [vmem:[%s1059] sm:$0x3]
      %v1062 = vsel %vm410, %v1060, 0
      %1064 = vmatprep.subr.mxu0 %v1058
      %1065 = vmatpush1.msra.mxu0 %v1057
      %1066 = vmatprep.subr.mxu0 0.0
      %1067 = vmatpush1.msra.mxu0 0.0
      %1068 = vmatprep.subr.mxu0 0.0
      %1069 = vmatpush1.msra.mxu0 0.0
      %1070 = vmatprep.subr.mxu0 0.0
      %1071 = vmatpush1.msra.mxu0 0.0
      %1072 = vmatprep.subr.mxu0 0.0
      %1073 = vmatpush1.msra.mxu0 0.0
      %1074 = vmatprep.subr.mxu0 0.0
      %1075 = vmatpush1.msra.mxu0 0.0
      %1076 = vmatprep.subr.mxu0 0.0
      %1077 = vmatpush1.msra.mxu0 0.0
      %1078 = vmatprep.subr.mxu0 0.0
      %1079 = vmatpush1.msra.mxu0 0.0
      %1080 = vmatprep.subr.mxu0 0.0
      %1081 = vmatpush1.msra.mxu0 0.0
      %1082 = vmatprep.subr.mxu0 0.0
      %1083 = vmatpush1.msra.mxu0 0.0
      %1084 = vmatprep.subr.mxu0 0.0
      %1085 = vmatpush1.msra.mxu0 0.0
      %1086 = vmatprep.subr.mxu0 0.0
      %1087 = vmatpush1.msra.mxu0 0.0
      %1088 = vmatprep.subr.mxu0 0.0
      %1089 = vmatpush1.msra.mxu0 0.0
      %1090 = vmatprep.subr.mxu0 0.0
      %1091 = vmatpush1.msra.mxu0 0.0
      %1092 = vmatprep.subr.mxu0 0.0
      %1093 = vmatpush1.msra.mxu0 0.0
      %1094 = vmatprep.subr.mxu0 0.0
      %1095 = vmatpush1.msra.mxu0 0.0
      %1096 = vmatprep.subr.mxu0 0.0
      %1097 = vmatpush1.msra.mxu0 0.0
      %1098 = vmatprep.subr.mxu0 0.0
      %1099 = vmatpush1.msra.mxu0 0.0
      %1100 = vmatprep.subr.mxu0 0.0
      %1101 = vmatpush1.msra.mxu0 0.0
      %1102 = vmatprep.subr.mxu0 0.0
      %1103 = vmatpush1.msra.mxu0 0.0
      %1104 = vmatprep.subr.mxu0 0.0
      %1105 = vmatpush1.msra.mxu0 0.0
      %1106 = vmatprep.subr.mxu0 0.0
      %1107 = vmatpush1.msra.mxu0 0.0
      %1108 = vmatprep.subr.mxu0 0.0
      %1109 = vmatpush1.msra.mxu0 0.0
      %1110 = vmatprep.subr.mxu0 0.0
      %1111 = vmatpush1.msra.mxu0 0.0
      %1112 = vmatprep.subr.mxu0 0.0
      %1113 = vmatpush1.msra.mxu0 0.0
      %1114 = vmatprep.subr.mxu0 0.0
      %1115 = vmatpush1.msra.mxu0 0.0
      %1116 = vmatprep.subr.mxu0 0.0
      %1117 = vmatpush1.msra.mxu0 0.0
      %1118 = vmatprep.subr.mxu0 0.0
      %1119 = vmatpush1.msra.mxu0 0.0
      %1120 = vmatprep.subr.mxu0 0.0
      %1121 = vmatpush1.msra.mxu0 0.0
      %1122 = vmatprep.subr.mxu0 0.0
      %1123 = vmatpush1.msra.mxu0 0.0
      %1124 = vmatprep.subr.mxu0 0.0
      %1125 = vmatpush1.msra.mxu0 0.0
      %1126 = vmatprep.subr.mxu0 0.0
      %1127 = vmatpush1.msra.mxu0 0.0
      %1128 = vmatprep.mubr.f32.mxu0 0.0
      %1129 = vmatmul.mubr.f32.gmra.mrb[0].mxu0 %v1062
      %v1130 = vpop.f32.mrb[0].mxu0
      %v1131 = vadd.f32 0.0, %v1130
      %v1132 = vpop.f32.mrb[0].mxu0
      %v1133 = vadd.f32 0.0, %v1132
      %1134 = vdwg.mxu0
      %v1135 = vadd.f32 %v1035, %v1131
      %v1136 = vadd.f32 %v1036, %v1133
      %1137 = vrot.lane.b32.xlu0 %v360, 111
      %v1138 = vpop.permute.xlu0 %1137
      %1139 = vrot.lane.b32.xlu0 %v361, 111
      %v1140 = vpop.permute.xlu0 %1139
      %vm1141 = vcmp.lt.s32.totalorder %v367, 111
      %v1142 = vsel %vm1141, %v1138, %v1140
      %v1143 = vsel %vm1141, %v1140, %v1138
      %s1144 = scalar_lea.vmem %s1, 16
      %v1145 = vld [vmem:[%s1144] sm:$0x3]
      %v1147 = vlaneseq
      %v1148 = vshrl.u32 %v1147, 7
      %v1149 = vsub.s32 0, %v1148
      %v1150 = vrot.slane %v1145, %v1149
      %v1151 = vlaneseq
      %v1152 = vshrl.u32 %v1151, 7
      %v1153 = vsub.s32 1, %v1152
      %v1154 = vrot.slane %v1145, %v1153
      %v1157 = vmul.f32 %v1142, %v1150
      %v1158 = vmul.f32 %v1143, %v1154
      %s1159 = scalar_lea.vmem %s2, 16
      %v1160 = vld [vmem:[%s1159] sm:$0x3]
      %v1162 = vsel %vm410, %v1160, 0
      %1164 = vmatprep.subr.mxu0 %v1158
      %1165 = vmatpush1.msra.mxu0 %v1157
      %1166 = vmatprep.subr.mxu0 0.0
      %1167 = vmatpush1.msra.mxu0 0.0
      %1168 = vmatprep.subr.mxu0 0.0
      %1169 = vmatpush1.msra.mxu0 0.0
      %1170 = vmatprep.subr.mxu0 0.0
      %1171 = vmatpush1.msra.mxu0 0.0
      %1172 = vmatprep.subr.mxu0 0.0
      %1173 = vmatpush1.msra.mxu0 0.0
      %1174 = vmatprep.subr.mxu0 0.0
      %1175 = vmatpush1.msra.mxu0 0.0
      %1176 = vmatprep.subr.mxu0 0.0
      %1177 = vmatpush1.msra.mxu0 0.0
      %1178 = vmatprep.subr.mxu0 0.0
      %1179 = vmatpush1.msra.mxu0 0.0
      %1180 = vmatprep.subr.mxu0 0.0
      %1181 = vmatpush1.msra.mxu0 0.0
      %1182 = vmatprep.subr.mxu0 0.0
      %1183 = vmatpush1.msra.mxu0 0.0
      %1184 = vmatprep.subr.mxu0 0.0
      %1185 = vmatpush1.msra.mxu0 0.0
      %1186 = vmatprep.subr.mxu0 0.0
      %1187 = vmatpush1.msra.mxu0 0.0
      %1188 = vmatprep.subr.mxu0 0.0
      %1189 = vmatpush1.msra.mxu0 0.0
      %1190 = vmatprep.subr.mxu0 0.0
      %1191 = vmatpush1.msra.mxu0 0.0
      %1192 = vmatprep.subr.mxu0 0.0
      %1193 = vmatpush1.msra.mxu0 0.0
      %1194 = vmatprep.subr.mxu0 0.0
      %1195 = vmatpush1.msra.mxu0 0.0
      %1196 = vmatprep.subr.mxu0 0.0
      %1197 = vmatpush1.msra.mxu0 0.0
      %1198 = vmatprep.subr.mxu0 0.0
      %1199 = vmatpush1.msra.mxu0 0.0
      %1200 = vmatprep.subr.mxu0 0.0
      %1201 = vmatpush1.msra.mxu0 0.0
      %1202 = vmatprep.subr.mxu0 0.0
      %1203 = vmatpush1.msra.mxu0 0.0
      %1204 = vmatprep.subr.mxu0 0.0
      %1205 = vmatpush1.msra.mxu0 0.0
      %1206 = vmatprep.subr.mxu0 0.0
      %1207 = vmatpush1.msra.mxu0 0.0
      %1208 = vmatprep.subr.mxu0 0.0
      %1209 = vmatpush1.msra.mxu0 0.0
      %1210 = vmatprep.subr.mxu0 0.0
      %1211 = vmatpush1.msra.mxu0 0.0
      %1212 = vmatprep.subr.mxu0 0.0
      %1213 = vmatpush1.msra.mxu0 0.0
      %1214 = vmatprep.subr.mxu0 0.0
      %1215 = vmatpush1.msra.mxu0 0.0
      %1216 = vmatprep.subr.mxu0 0.0
      %1217 = vmatpush1.msra.mxu0 0.0
      %1218 = vmatprep.subr.mxu0 0.0
      %1219 = vmatpush1.msra.mxu0 0.0
      %1220 = vmatprep.subr.mxu0 0.0
      %1221 = vmatpush1.msra.mxu0 0.0
      %1222 = vmatprep.subr.mxu0 0.0
      %1223 = vmatpush1.msra.mxu0 0.0
      %1224 = vmatprep.subr.mxu0 0.0
      %1225 = vmatpush1.msra.mxu0 0.0
      %1226 = vmatprep.subr.mxu0 0.0
      %1227 = vmatpush1.msra.mxu0 0.0
      %1228 = vmatprep.mubr.f32.mxu0 0.0
      %1229 = vmatmul.mubr.f32.gmra.mrb[0].mxu0 %v1162
      %v1230 = vpop.f32.mrb[0].mxu0
      %v1231 = vadd.f32 0.0, %v1230
      %v1232 = vpop.f32.mrb[0].mxu0
      %v1233 = vadd.f32 0.0, %v1232
      %1234 = vdwg.mxu0
      %v1235 = vadd.f32 %v1135, %v1231
      %v1236 = vadd.f32 %v1136, %v1233
      %v1237 = vld [vmem:[%s3] sm:$0x3]
      %1239 = vset.pattern.permute.xlu0 0
      %1240 = vperm.xlu0 %1239, %v1237
      %v1241 = vpop.permute.xlu0 %1240
      %v1243 = vadd.f32 %v1235, %v1241
      %v1244 = vadd.f32 %v1236, %v1241
      %v1245 = vmax.f32 %v1243, 0.0
      %v1246 = vmax.f32 %v1244, 0.0
      %1247 = vrot.lane.b32.xlu0 %v1245, 17
      %v1248 = vpop.permute.xlu0 %1247
      %1249 = vrot.lane.b32.xlu0 %v1246, 17
      %v1250 = vpop.permute.xlu0 %1249
      %v1251 = vsel %vm368, %v1248, %v1250
      %v1252 = vsel %vm368, %v1250, %v1248
      %v1253 = vmul.f32 %v1252, %v376
      %v1254 = vmul.f32 %v1251, %v380
      %v1255 = vld [vmem:[%s4] sm:$0x3]
      %1256 = vrot.lane.b32.xlu0 %v1245, 16
      %v1257 = vpop.permute.xlu0 %1256
      %1258 = vrot.lane.b32.xlu0 %v1246, 16
      %v1259 = vpop.permute.xlu0 %1258
      %v1260 = vsel %vm390, %v1257, %v1259
      %v1261 = vsel %vm390, %v1259, %v1257
      %v1262 = vmul.f32 %v1261, %v399
      %v1263 = vmul.f32 %v1260, %v403
      %s1264 = scalar_lea.vmem %s4, 2
      %v1265 = vld [vmem:[%s1264] sm:$0x3]
      %vm1266 = vcmask 15360
      %v1268 = vsel %vm1266, %v1265, 0
      %vm1270 = vcmask 1041408
      %v1272 = vsel %vm1270, %v1262, 0
      %v1275 = vsel %vm1270, %v1263, 0
      %1277 = vmatprep.subr.mxu0 %v1275
      %1278 = vmatpush1.msra.mxu0 %v1272
      %1279 = vmatprep.subr.mxu0 0.0
      %1280 = vmatpush1.msra.mxu0 0.0
      %1281 = vmatprep.subr.mxu0 0.0
      %1282 = vmatpush1.msra.mxu0 0.0
      %1283 = vmatprep.subr.mxu0 0.0
      %1284 = vmatpush1.msra.mxu0 0.0
      %1285 = vmatprep.subr.mxu0 0.0
      %1286 = vmatpush1.msra.mxu0 0.0
      %1287 = vmatprep.subr.mxu0 0.0
      %1288 = vmatpush1.msra.mxu0 0.0
      %1289 = vmatprep.subr.mxu0 0.0
      %1290 = vmatpush1.msra.mxu0 0.0
      %1291 = vmatprep.subr.mxu0 0.0
      %1292 = vmatpush1.msra.mxu0 0.0
      %1293 = vmatprep.subr.mxu0 0.0
      %1294 = vmatpush1.msra.mxu0 0.0
      %1295 = vmatprep.subr.mxu0 0.0
      %1296 = vmatpush1.msra.mxu0 0.0
      %1297 = vmatprep.subr.mxu0 0.0
      %1298 = vmatpush1.msra.mxu0 0.0
      %1299 = vmatprep.subr.mxu0 0.0
      %1300 = vmatpush1.msra.mxu0 0.0
      %1301 = vmatprep.subr.mxu0 0.0
      %1302 = vmatpush1.msra.mxu0 0.0
      %1303 = vmatprep.subr.mxu0 0.0
      %1304 = vmatpush1.msra.mxu0 0.0
      %1305 = vmatprep.subr.mxu0 0.0
      %1306 = vmatpush1.msra.mxu0 0.0
      %1307 = vmatprep.subr.mxu0 0.0
      %1308 = vmatpush1.msra.mxu0 0.0
      %1309 = vmatprep.subr.mxu0 0.0
      %1310 = vmatpush1.msra.mxu0 0.0
      %1311 = vmatprep.subr.mxu0 0.0
      %1312 = vmatpush1.msra.mxu0 0.0
      %1313 = vmatprep.subr.mxu0 0.0
      %1314 = vmatpush1.msra.mxu0 0.0
      %1315 = vmatprep.subr.mxu0 0.0
      %1316 = vmatpush1.msra.mxu0 0.0
      %1317 = vmatprep.subr.mxu0 0.0
      %1318 = vmatpush1.msra.mxu0 0.0
      %1319 = vmatprep.subr.mxu0 0.0
      %1320 = vmatpush1.msra.mxu0 0.0
      %1321 = vmatprep.subr.mxu0 0.0
      %1322 = vmatpush1.msra.mxu0 0.0
      %1323 = vmatprep.subr.mxu0 0.0
      %1324 = vmatpush1.msra.mxu0 0.0
      %1325 = vmatprep.subr.mxu0 0.0
      %1326 = vmatpush1.msra.mxu0 0.0
      %1327 = vmatprep.subr.mxu0 0.0
      %1328 = vmatpush1.msra.mxu0 0.0
      %1329 = vmatprep.subr.mxu0 0.0
      %1330 = vmatpush1.msra.mxu0 0.0
      %1331 = vmatprep.subr.mxu0 0.0
      %1332 = vmatpush1.msra.mxu0 0.0
      %1333 = vmatprep.subr.mxu0 0.0
      %1334 = vmatpush1.msra.mxu0 0.0
      %1335 = vmatprep.subr.mxu0 0.0
      %1336 = vmatpush1.msra.mxu0 0.0
      %1337 = vmatprep.subr.mxu0 0.0
      %1338 = vmatpush1.msra.mxu0 0.0
      %1339 = vmatprep.subr.mxu0 0.0
      %1340 = vmatpush1.msra.mxu0 0.0
      %1341 = vmatprep.mubr.f32.mxu0 0.0
      %1342 = vmatmul.mubr.f32.gmra.mrb[0].mxu0 %v1268
      %v1343 = vpop.f32.mrb[0].mxu0
      %v1344 = vadd.f32 0.0, %v1343
      %v1345 = vpop.f32.mrb[0].mxu0
      %v1346 = vadd.f32 0.0, %v1345
      %1347 = vdwg.mxu0
      %v1349 = vsel %vm1266, %v1255, 0
      %v1352 = vsel %vm1270, %v1253, 0
      %v1355 = vsel %vm1270, %v1254, 0
      %1357 = vmatprep.subr.mxu0 %v1355
      %1358 = vmatpush1.msra.mxu0 %v1352
      %1359 = vmatprep.subr.mxu0 0.0
      %1360 = vmatpush1.msra.mxu0 0.0
      %1361 = vmatprep.subr.mxu0 0.0
      %1362 = vmatpush1.msra.mxu0 0.0
      %1363 = vmatprep.subr.mxu0 0.0
      %1364 = vmatpush1.msra.mxu0 0.0
      %1365 = vmatprep.subr.mxu0 0.0
      %1366 = vmatpush1.msra.mxu0 0.0
      %1367 = vmatprep.subr.mxu0 0.0
      %1368 = vmatpush1.msra.mxu0 0.0
      %1369 = vmatprep.subr.mxu0 0.0
      %1370 = vmatpush1.msra.mxu0 0.0
      %1371 = vmatprep.subr.mxu0 0.0
      %1372 = vmatpush1.msra.mxu0 0.0
      %1373 = vmatprep.subr.mxu0 0.0
      %1374 = vmatpush1.msra.mxu0 0.0
      %1375 = vmatprep.subr.mxu0 0.0
      %1376 = vmatpush1.msra.mxu0 0.0
      %1377 = vmatprep.subr.mxu0 0.0
      %1378 = vmatpush1.msra.mxu0 0.0
      %1379 = vmatprep.subr.mxu0 0.0
      %1380 = vmatpush1.msra.mxu0 0.0
      %1381 = vmatprep.subr.mxu0 0.0
      %1382 = vmatpush1.msra.mxu0 0.0
      %1383 = vmatprep.subr.mxu0 0.0
      %1384 = vmatpush1.msra.mxu0 0.0
      %1385 = vmatprep.subr.mxu0 0.0
      %1386 = vmatpush1.msra.mxu0 0.0
      %1387 = vmatprep.subr.mxu0 0.0
      %1388 = vmatpush1.msra.mxu0 0.0
      %1389 = vmatprep.subr.mxu0 0.0
      %1390 = vmatpush1.msra.mxu0 0.0
      %1391 = vmatprep.subr.mxu0 0.0
      %1392 = vmatpush1.msra.mxu0 0.0
      %1393 = vmatprep.subr.mxu0 0.0
      %1394 = vmatpush1.msra.mxu0 0.0
      %1395 = vmatprep.subr.mxu0 0.0
      %1396 = vmatpush1.msra.mxu0 0.0
      %1397 = vmatprep.subr.mxu0 0.0
      %1398 = vmatpush1.msra.mxu0 0.0
      %1399 = vmatprep.subr.mxu0 0.0
      %1400 = vmatpush1.msra.mxu0 0.0
      %1401 = vmatprep.subr.mxu0 0.0
      %1402 = vmatpush1.msra.mxu0 0.0
      %1403 = vmatprep.subr.mxu0 0.0
      %1404 = vmatpush1.msra.mxu0 0.0
      %1405 = vmatprep.subr.mxu0 0.0
      %1406 = vmatpush1.msra.mxu0 0.0
      %1407 = vmatprep.subr.mxu0 0.0
      %1408 = vmatpush1.msra.mxu0 0.0
      %1409 = vmatprep.subr.mxu0 0.0
      %1410 = vmatpush1.msra.mxu0 0.0
      %1411 = vmatprep.subr.mxu0 0.0
      %1412 = vmatpush1.msra.mxu0 0.0
      %1413 = vmatprep.subr.mxu0 0.0
      %1414 = vmatpush1.msra.mxu0 0.0
      %1415 = vmatprep.subr.mxu0 0.0
      %1416 = vmatpush1.msra.mxu0 0.0
      %1417 = vmatprep.subr.mxu0 0.0
      %1418 = vmatpush1.msra.mxu0 0.0
      %1419 = vmatprep.subr.mxu0 0.0
      %1420 = vmatpush1.msra.mxu0 0.0
      %1421 = vmatprep.mubr.f32.mxu0 0.0
      %1422 = vmatmul.mubr.f32.gmra.mrb[0].mxu0 %v1349
      %v1423 = vpop.f32.mrb[0].mxu0
      %v1424 = vadd.f32 %v1344, %v1423
      %v1425 = vpop.f32.mrb[0].mxu0
      %v1426 = vadd.f32 %v1346, %v1425
      %1427 = vdwg.mxu0
      %1428 = vrot.lane.b32.xlu0 %v1245, 15
      %v1429 = vpop.permute.xlu0 %1428
      %1430 = vrot.lane.b32.xlu0 %v1246, 15
      %v1431 = vpop.permute.xlu0 %1430
      %v1432 = vsel %vm563, %v1429, %v1431
      %v1433 = vsel %vm563, %v1431, %v1429
      %v1434 = vmul.f32 %v1433, %v572
      %v1435 = vmul.f32 %v1432, %v576
      %s1436 = scalar_lea.vmem %s4, 4
      %v1437 = vld [vmem:[%s1436] sm:$0x3]
      %v1439 = vsel %vm1266, %v1437, 0
      %v1442 = vsel %vm1270, %v1434, 0
      %v1445 = vsel %vm1270, %v1435, 0
      %1447 = vmatprep.subr.mxu0 %v1445
      %1448 = vmatpush1.msra.mxu0 %v1442
      %1449 = vmatprep.subr.mxu0 0.0
      %1450 = vmatpush1.msra.mxu0 0.0
      %1451 = vmatprep.subr.mxu0 0.0
      %1452 = vmatpush1.msra.mxu0 0.0
      %1453 = vmatprep.subr.mxu0 0.0
      %1454 = vmatpush1.msra.mxu0 0.0
      %1455 = vmatprep.subr.mxu0 0.0
      %1456 = vmatpush1.msra.mxu0 0.0
      %1457 = vmatprep.subr.mxu0 0.0
      %1458 = vmatpush1.msra.mxu0 0.0
      %1459 = vmatprep.subr.mxu0 0.0
      %1460 = vmatpush1.msra.mxu0 0.0
      %1461 = vmatprep.subr.mxu0 0.0
      %1462 = vmatpush1.msra.mxu0 0.0
      %1463 = vmatprep.subr.mxu0 0.0
      %1464 = vmatpush1.msra.mxu0 0.0
      %1465 = vmatprep.subr.mxu0 0.0
      %1466 = vmatpush1.msra.mxu0 0.0
      %1467 = vmatprep.subr.mxu0 0.0
      %1468 = vmatpush1.msra.mxu0 0.0
      %1469 = vmatprep.subr.mxu0 0.0
      %1470 = vmatpush1.msra.mxu0 0.0
      %1471 = vmatprep.subr.mxu0 0.0
      %1472 = vmatpush1.msra.mxu0 0.0
      %1473 = vmatprep.subr.mxu0 0.0
      %1474 = vmatpush1.msra.mxu0 0.0
      %1475 = vmatprep.subr.mxu0 0.0
      %1476 = vmatpush1.msra.mxu0 0.0
      %1477 = vmatprep.subr.mxu0 0.0
      %1478 = vmatpush1.msra.mxu0 0.0
      %1479 = vmatprep.subr.mxu0 0.0
      %1480 = vmatpush1.msra.mxu0 0.0
      %1481 = vmatprep.subr.mxu0 0.0
      %1482 = vmatpush1.msra.mxu0 0.0
      %1483 = vmatprep.subr.mxu0 0.0
      %1484 = vmatpush1.msra.mxu0 0.0
      %1485 = vmatprep.subr.mxu0 0.0
      %1486 = vmatpush1.msra.mxu0 0.0
      %1487 = vmatprep.subr.mxu0 0.0
      %1488 = vmatpush1.msra.mxu0 0.0
      %1489 = vmatprep.subr.mxu0 0.0
      %1490 = vmatpush1.msra.mxu0 0.0
      %1491 = vmatprep.subr.mxu0 0.0
      %1492 = vmatpush1.msra.mxu0 0.0
      %1493 = vmatprep.subr.mxu0 0.0
      %1494 = vmatpush1.msra.mxu0 0.0
      %1495 = vmatprep.subr.mxu0 0.0
      %1496 = vmatpush1.msra.mxu0 0.0
      %1497 = vmatprep.subr.mxu0 0.0
      %1498 = vmatpush1.msra.mxu0 0.0
      %1499 = vmatprep.subr.mxu0 0.0
      %1500 = vmatpush1.msra.mxu0 0.0
      %1501 = vmatprep.subr.mxu0 0.0
      %1502 = vmatpush1.msra.mxu0 0.0
      %1503 = vmatprep.subr.mxu0 0.0
      %1504 = vmatpush1.msra.mxu0 0.0
      %1505 = vmatprep.subr.mxu0 0.0
      %1506 = vmatpush1.msra.mxu0 0.0
      %1507 = vmatprep.subr.mxu0 0.0
      %1508 = vmatpush1.msra.mxu0 0.0
      %1509 = vmatprep.subr.mxu0 0.0
      %1510 = vmatpush1.msra.mxu0 0.0
      %1511 = vmatprep.mubr.f32.mxu0 0.0
      %1512 = vmatmul.mubr.f32.gmra.mrb[0].mxu0 %v1439
      %v1513 = vpop.f32.mrb[0].mxu0
      %v1514 = vadd.f32 0.0, %v1513
      %v1515 = vpop.f32.mrb[0].mxu0
      %v1516 = vadd.f32 0.0, %v1515
      %1517 = vdwg.mxu0
      %v1518 = vadd.f32 %v1424, %v1514
      %v1519 = vadd.f32 %v1426, %v1516
      %1520 = vrot.lane.b32.xlu0 %v1245, 1
      %v1521 = vpop.permute.xlu0 %1520
      %1522 = vrot.lane.b32.xlu0 %v1246, 1
      %v1523 = vpop.permute.xlu0 %1522
      %v1524 = vsel %vm663, %v1521, %v1523
      %v1525 = vsel %vm663, %v1523, %v1521
      %v1526 = vmul.f32 %v1525, %v672
      %v1527 = vmul.f32 %v1524, %v676
      %s1528 = scalar_lea.vmem %s4, 6
      %v1529 = vld [vmem:[%s1528] sm:$0x3]
      %v1531 = vsel %vm1266, %v1529, 0
      %v1534 = vsel %vm1270, %v1526, 0
      %v1537 = vsel %vm1270, %v1527, 0
      %1539 = vmatprep.subr.mxu0 %v1537
      %1540 = vmatpush1.msra.mxu0 %v1534
      %1541 = vmatprep.subr.mxu0 0.0
      %1542 = vmatpush1.msra.mxu0 0.0
      %1543 = vmatprep.subr.mxu0 0.0
      %1544 = vmatpush1.msra.mxu0 0.0
      %1545 = vmatprep.subr.mxu0 0.0
      %1546 = vmatpush1.msra.mxu0 0.0
      %1547 = vmatprep.subr.mxu0 0.0
      %1548 = vmatpush1.msra.mxu0 0.0
      %1549 = vmatprep.subr.mxu0 0.0
      %1550 = vmatpush1.msra.mxu0 0.0
      %1551 = vmatprep.subr.mxu0 0.0
      %1552 = vmatpush1.msra.mxu0 0.0
      %1553 = vmatprep.subr.mxu0 0.0
      %1554 = vmatpush1.msra.mxu0 0.0
      %1555 = vmatprep.subr.mxu0 0.0
      %1556 = vmatpush1.msra.mxu0 0.0
      %1557 = vmatprep.subr.mxu0 0.0
      %1558 = vmatpush1.msra.mxu0 0.0
      %1559 = vmatprep.subr.mxu0 0.0
      %1560 = vmatpush1.msra.mxu0 0.0
      %1561 = vmatprep.subr.mxu0 0.0
      %1562 = vmatpush1.msra.mxu0 0.0
      %1563 = vmatprep.subr.mxu0 0.0
      %1564 = vmatpush1.msra.mxu0 0.0
      %1565 = vmatprep.subr.mxu0 0.0
      %1566 = vmatpush1.msra.mxu0 0.0
      %1567 = vmatprep.subr.mxu0 0.0
      %1568 = vmatpush1.msra.mxu0 0.0
      %1569 = vmatprep.subr.mxu0 0.0
      %1570 = vmatpush1.msra.mxu0 0.0
      %1571 = vmatprep.subr.mxu0 0.0
      %1572 = vmatpush1.msra.mxu0 0.0
      %1573 = vmatprep.subr.mxu0 0.0
      %1574 = vmatpush1.msra.mxu0 0.0
      %1575 = vmatprep.subr.mxu0 0.0
      %1576 = vmatpush1.msra.mxu0 0.0
      %1577 = vmatprep.subr.mxu0 0.0
      %1578 = vmatpush1.msra.mxu0 0.0
      %1579 = vmatprep.subr.mxu0 0.0
      %1580 = vmatpush1.msra.mxu0 0.0
      %1581 = vmatprep.subr.mxu0 0.0
      %1582 = vmatpush1.msra.mxu0 0.0
      %1583 = vmatprep.subr.mxu0 0.0
      %1584 = vmatpush1.msra.mxu0 0.0
      %1585 = vmatprep.subr.mxu0 0.0
      %1586 = vmatpush1.msra.mxu0 0.0
      %1587 = vmatprep.subr.mxu0 0.0
      %1588 = vmatpush1.msra.mxu0 0.0
      %1589 = vmatprep.subr.mxu0 0.0
      %1590 = vmatpush1.msra.mxu0 0.0
      %1591 = vmatprep.subr.mxu0 0.0
      %1592 = vmatpush1.msra.mxu0 0.0
      %1593 = vmatprep.subr.mxu0 0.0
      %1594 = vmatpush1.msra.mxu0 0.0
      %1595 = vmatprep.subr.mxu0 0.0
      %1596 = vmatpush1.msra.mxu0 0.0
      %1597 = vmatprep.subr.mxu0 0.0
      %1598 = vmatpush1.msra.mxu0 0.0
      %1599 = vmatprep.subr.mxu0 0.0
      %1600 = vmatpush1.msra.mxu0 0.0
      %1601 = vmatprep.subr.mxu0 0.0
      %1602 = vmatpush1.msra.mxu0 0.0
      %1603 = vmatprep.mubr.f32.mxu0 0.0
      %1604 = vmatmul.mubr.f32.gmra.mrb[0].mxu0 %v1531
      %v1605 = vpop.f32.mrb[0].mxu0
      %v1606 = vadd.f32 0.0, %v1605
      %v1607 = vpop.f32.mrb[0].mxu0
      %v1608 = vadd.f32 0.0, %v1607
      %1609 = vdwg.mxu0
      %v1610 = vadd.f32 %v1518, %v1606
      %v1611 = vadd.f32 %v1519, %v1608
      %s1612 = scalar_lea.vmem %s4, 8
      %v1613 = vld [vmem:[%s1612] sm:$0x3]
      %v1615 = vsel %vm1266, %v1613, 0
      %v1618 = vsel %vm1270, %v1245, 0
      %v1621 = vsel %vm1270, %v1246, 0
      %1623 = vmatprep.subr.mxu0 %v1621
      %1624 = vmatpush1.msra.mxu0 %v1618
      %1625 = vmatprep.subr.mxu0 0.0
      %1626 = vmatpush1.msra.mxu0 0.0
      %1627 = vmatprep.subr.mxu0 0.0
      %1628 = vmatpush1.msra.mxu0 0.0
      %1629 = vmatprep.subr.mxu0 0.0
      %1630 = vmatpush1.msra.mxu0 0.0
      %1631 = vmatprep.subr.mxu0 0.0
      %1632 = vmatpush1.msra.mxu0 0.0
      %1633 = vmatprep.subr.mxu0 0.0
      %1634 = vmatpush1.msra.mxu0 0.0
      %1635 = vmatprep.subr.mxu0 0.0
      %1636 = vmatpush1.msra.mxu0 0.0
      %1637 = vmatprep.subr.mxu0 0.0
      %1638 = vmatpush1.msra.mxu0 0.0
      %1639 = vmatprep.subr.mxu0 0.0
      %1640 = vmatpush1.msra.mxu0 0.0
      %1641 = vmatprep.subr.mxu0 0.0
      %1642 = vmatpush1.msra.mxu0 0.0
      %1643 = vmatprep.subr.mxu0 0.0
      %1644 = vmatpush1.msra.mxu0 0.0
      %1645 = vmatprep.subr.mxu0 0.0
      %1646 = vmatpush1.msra.mxu0 0.0
      %1647 = vmatprep.subr.mxu0 0.0
      %1648 = vmatpush1.msra.mxu0 0.0
      %1649 = vmatprep.subr.mxu0 0.0
      %1650 = vmatpush1.msra.mxu0 0.0
      %1651 = vmatprep.subr.mxu0 0.0
      %1652 = vmatpush1.msra.mxu0 0.0
      %1653 = vmatprep.subr.mxu0 0.0
      %1654 = vmatpush1.msra.mxu0 0.0
      %1655 = vmatprep.subr.mxu0 0.0
      %1656 = vmatpush1.msra.mxu0 0.0
      %1657 = vmatprep.subr.mxu0 0.0
      %1658 = vmatpush1.msra.mxu0 0.0
      %1659 = vmatprep.subr.mxu0 0.0
      %1660 = vmatpush1.msra.mxu0 0.0
      %1661 = vmatprep.subr.mxu0 0.0
      %1662 = vmatpush1.msra.mxu0 0.0
      %1663 = vmatprep.subr.mxu0 0.0
      %1664 = vmatpush1.msra.mxu0 0.0
      %1665 = vmatprep.subr.mxu0 0.0
      %1666 = vmatpush1.msra.mxu0 0.0
      %1667 = vmatprep.subr.mxu0 0.0
      %1668 = vmatpush1.msra.mxu0 0.0
      %1669 = vmatprep.subr.mxu0 0.0
      %1670 = vmatpush1.msra.mxu0 0.0
      %1671 = vmatprep.subr.mxu0 0.0
      %1672 = vmatpush1.msra.mxu0 0.0
      %1673 = vmatprep.subr.mxu0 0.0
      %1674 = vmatpush1.msra.mxu0 0.0
      %1675 = vmatprep.subr.mxu0 0.0
      %1676 = vmatpush1.msra.mxu0 0.0
      %1677 = vmatprep.subr.mxu0 0.0
      %1678 = vmatpush1.msra.mxu0 0.0
      %1679 = vmatprep.subr.mxu0 0.0
      %1680 = vmatpush1.msra.mxu0 0.0
      %1681 = vmatprep.subr.mxu0 0.0
      %1682 = vmatpush1.msra.mxu0 0.0
      %1683 = vmatprep.subr.mxu0 0.0
      %1684 = vmatpush1.msra.mxu0 0.0
      %1685 = vmatprep.subr.mxu0 0.0
      %1686 = vmatpush1.msra.mxu0 0.0
      %1687 = vmatprep.mubr.f32.mxu0 0.0
      %1688 = vmatmul.mubr.f32.gmra.mrb[0].mxu0 %v1615
      %v1689 = vpop.f32.mrb[0].mxu0
      %v1690 = vadd.f32 0.0, %v1689
      %v1691 = vpop.f32.mrb[0].mxu0
      %v1692 = vadd.f32 0.0, %v1691
      %1693 = vdwg.mxu0
      %v1694 = vadd.f32 %v1610, %v1690
      %v1695 = vadd.f32 %v1611, %v1692
      %1696 = vrot.lane.b32.xlu0 %v1245, 127
      %v1697 = vpop.permute.xlu0 %1696
      %1698 = vrot.lane.b32.xlu0 %v1246, 127
      %v1699 = vpop.permute.xlu0 %1698
      %v1700 = vsel %vm841, %v1697, %v1699
      %v1701 = vsel %vm841, %v1699, %v1697
      %v1702 = vmul.f32 %v1700, %v850
      %v1703 = vmul.f32 %v1701, %v854
      %s1704 = scalar_lea.vmem %s4, 10
      %v1705 = vld [vmem:[%s1704] sm:$0x3]
      %v1707 = vsel %vm1266, %v1705, 0
      %v1710 = vsel %vm1270, %v1702, 0
      %v1713 = vsel %vm1270, %v1703, 0
      %1715 = vmatprep.subr.mxu0 %v1713
      %1716 = vmatpush1.msra.mxu0 %v1710
      %1717 = vmatprep.subr.mxu0 0.0
      %1718 = vmatpush1.msra.mxu0 0.0
      %1719 = vmatprep.subr.mxu0 0.0
      %1720 = vmatpush1.msra.mxu0 0.0
      %1721 = vmatprep.subr.mxu0 0.0
      %1722 = vmatpush1.msra.mxu0 0.0
      %1723 = vmatprep.subr.mxu0 0.0
      %1724 = vmatpush1.msra.mxu0 0.0
      %1725 = vmatprep.subr.mxu0 0.0
      %1726 = vmatpush1.msra.mxu0 0.0
      %1727 = vmatprep.subr.mxu0 0.0
      %1728 = vmatpush1.msra.mxu0 0.0
      %1729 = vmatprep.subr.mxu0 0.0
      %1730 = vmatpush1.msra.mxu0 0.0
      %1731 = vmatprep.subr.mxu0 0.0
      %1732 = vmatpush1.msra.mxu0 0.0
      %1733 = vmatprep.subr.mxu0 0.0
      %1734 = vmatpush1.msra.mxu0 0.0
      %1735 = vmatprep.subr.mxu0 0.0
      %1736 = vmatpush1.msra.mxu0 0.0
      %1737 = vmatprep.subr.mxu0 0.0
      %1738 = vmatpush1.msra.mxu0 0.0
      %1739 = vmatprep.subr.mxu0 0.0
      %1740 = vmatpush1.msra.mxu0 0.0
      %1741 = vmatprep.subr.mxu0 0.0
      %1742 = vmatpush1.msra.mxu0 0.0
      %1743 = vmatprep.subr.mxu0 0.0
      %1744 = vmatpush1.msra.mxu0 0.0
      %1745 = vmatprep.subr.mxu0 0.0
      %1746 = vmatpush1.msra.mxu0 0.0
      %1747 = vmatprep.subr.mxu0 0.0
      %1748 = vmatpush1.msra.mxu0 0.0
      %1749 = vmatprep.subr.mxu0 0.0
      %1750 = vmatpush1.msra.mxu0 0.0
      %1751 = vmatprep.subr.mxu0 0.0
      %1752 = vmatpush1.msra.mxu0 0.0
      %1753 = vmatprep.subr.mxu0 0.0
      %1754 = vmatpush1.msra.mxu0 0.0
      %1755 = vmatprep.subr.mxu0 0.0
      %1756 = vmatpush1.msra.mxu0 0.0
      %1757 = vmatprep.subr.mxu0 0.0
      %1758 = vmatpush1.msra.mxu0 0.0
      %1759 = vmatprep.subr.mxu0 0.0
      %1760 = vmatpush1.msra.mxu0 0.0
      %1761 = vmatprep.subr.mxu0 0.0
      %1762 = vmatpush1.msra.mxu0 0.0
      %1763 = vmatprep.subr.mxu0 0.0
      %1764 = vmatpush1.msra.mxu0 0.0
      %1765 = vmatprep.subr.mxu0 0.0
      %1766 = vmatpush1.msra.mxu0 0.0
      %1767 = vmatprep.subr.mxu0 0.0
      %1768 = vmatpush1.msra.mxu0 0.0
      %1769 = vmatprep.subr.mxu0 0.0
      %1770 = vmatpush1.msra.mxu0 0.0
      %1771 = vmatprep.subr.mxu0 0.0
      %1772 = vmatpush1.msra.mxu0 0.0
      %1773 = vmatprep.subr.mxu0 0.0
      %1774 = vmatpush1.msra.mxu0 0.0
      %1775 = vmatprep.subr.mxu0 0.0
      %1776 = vmatpush1.msra.mxu0 0.0
      %1777 = vmatprep.subr.mxu0 0.0
      %1778 = vmatpush1.msra.mxu0 0.0
      %1779 = vmatprep.mubr.f32.mxu0 0.0
      %1780 = vmatmul.mubr.f32.gmra.mrb[0].mxu0 %v1707
      %v1781 = vpop.f32.mrb[0].mxu0
      %v1782 = vadd.f32 0.0, %v1781
      %v1783 = vpop.f32.mrb[0].mxu0
      %v1784 = vadd.f32 0.0, %v1783
      %1785 = vdwg.mxu0
      %v1786 = vadd.f32 %v1694, %v1782
      %v1787 = vadd.f32 %v1695, %v1784
      %1788 = vrot.lane.b32.xlu0 %v1245, 113
      %v1789 = vpop.permute.xlu0 %1788
      %1790 = vrot.lane.b32.xlu0 %v1246, 113
      %v1791 = vpop.permute.xlu0 %1790
      %v1792 = vsel %vm941, %v1789, %v1791
      %v1793 = vsel %vm941, %v1791, %v1789
      %v1794 = vmul.f32 %v1792, %v950
      %v1795 = vmul.f32 %v1793, %v954
      %s1796 = scalar_lea.vmem %s4, 12
      %v1797 = vld [vmem:[%s1796] sm:$0x3]
      %v1799 = vsel %vm1266, %v1797, 0
      %v1802 = vsel %vm1270, %v1794, 0
      %v1805 = vsel %vm1270, %v1795, 0
      %1807 = vmatprep.subr.mxu0 %v1805
      %1808 = vmatpush1.msra.mxu0 %v1802
      %1809 = vmatprep.subr.mxu0 0.0
      %1810 = vmatpush1.msra.mxu0 0.0
      %1811 = vmatprep.subr.mxu0 0.0
      %1812 = vmatpush1.msra.mxu0 0.0
      %1813 = vmatprep.subr.mxu0 0.0
      %1814 = vmatpush1.msra.mxu0 0.0
      %1815 = vmatprep.subr.mxu0 0.0
      %1816 = vmatpush1.msra.mxu0 0.0
      %1817 = vmatprep.subr.mxu0 0.0
      %1818 = vmatpush1.msra.mxu0 0.0
      %1819 = vmatprep.subr.mxu0 0.0
      %1820 = vmatpush1.msra.mxu0 0.0
      %1821 = vmatprep.subr.mxu0 0.0
      %1822 = vmatpush1.msra.mxu0 0.0
      %1823 = vmatprep.subr.mxu0 0.0
      %1824 = vmatpush1.msra.mxu0 0.0
      %1825 = vmatprep.subr.mxu0 0.0
      %1826 = vmatpush1.msra.mxu0 0.0
      %1827 = vmatprep.subr.mxu0 0.0
      %1828 = vmatpush1.msra.mxu0 0.0
      %1829 = vmatprep.subr.mxu0 0.0
      %1830 = vmatpush1.msra.mxu0 0.0
      %1831 = vmatprep.subr.mxu0 0.0
      %1832 = vmatpush1.msra.mxu0 0.0
      %1833 = vmatprep.subr.mxu0 0.0
      %1834 = vmatpush1.msra.mxu0 0.0
      %1835 = vmatprep.subr.mxu0 0.0
      %1836 = vmatpush1.msra.mxu0 0.0
      %1837 = vmatprep.subr.mxu0 0.0
      %1838 = vmatpush1.msra.mxu0 0.0
      %1839 = vmatprep.subr.mxu0 0.0
      %1840 = vmatpush1.msra.mxu0 0.0
      %1841 = vmatprep.subr.mxu0 0.0
      %1842 = vmatpush1.msra.mxu0 0.0
      %1843 = vmatprep.subr.mxu0 0.0
      %1844 = vmatpush1.msra.mxu0 0.0
      %1845 = vmatprep.subr.mxu0 0.0
      %1846 = vmatpush1.msra.mxu0 0.0
      %1847 = vmatprep.subr.mxu0 0.0
      %1848 = vmatpush1.msra.mxu0 0.0
      %1849 = vmatprep.subr.mxu0 0.0
      %1850 = vmatpush1.msra.mxu0 0.0
      %1851 = vmatprep.subr.mxu0 0.0
      %1852 = vmatpush1.msra.mxu0 0.0
      %1853 = vmatprep.subr.mxu0 0.0
      %1854 = vmatpush1.msra.mxu0 0.0
      %1855 = vmatprep.subr.mxu0 0.0
      %1856 = vmatpush1.msra.mxu0 0.0
      %1857 = vmatprep.subr.mxu0 0.0
      %1858 = vmatpush1.msra.mxu0 0.0
      %1859 = vmatprep.subr.mxu0 0.0
      %1860 = vmatpush1.msra.mxu0 0.0
      %1861 = vmatprep.subr.mxu0 0.0
      %1862 = vmatpush1.msra.mxu0 0.0
      %1863 = vmatprep.subr.mxu0 0.0
      %1864 = vmatpush1.msra.mxu0 0.0
      %1865 = vmatprep.subr.mxu0 0.0
      %1866 = vmatpush1.msra.mxu0 0.0
      %1867 = vmatprep.subr.mxu0 0.0
      %1868 = vmatpush1.msra.mxu0 0.0
      %1869 = vmatprep.subr.mxu0 0.0
      %1870 = vmatpush1.msra.mxu0 0.0
      %1871 = vmatprep.mubr.f32.mxu0 0.0
      %1872 = vmatmul.mubr.f32.gmra.mrb[0].mxu0 %v1799
      %v1873 = vpop.f32.mrb[0].mxu0
      %v1874 = vadd.f32 0.0, %v1873
      %v1875 = vpop.f32.mrb[0].mxu0
      %v1876 = vadd.f32 0.0, %v1875
      %1877 = vdwg.mxu0
      %v1878 = vadd.f32 %v1786, %v1874
      %v1879 = vadd.f32 %v1787, %v1876
      %1880 = vrot.lane.b32.xlu0 %v1245, 112
      %v1881 = vpop.permute.xlu0 %1880
      %1882 = vrot.lane.b32.xlu0 %v1246, 112
      %v1883 = vpop.permute.xlu0 %1882
      %v1884 = vsel %vm1041, %v1881, %v1883
      %v1885 = vsel %vm1041, %v1883, %v1881
      %v1886 = vmul.f32 %v1884, %v1050
      %v1887 = vmul.f32 %v1885, %v1054
      %s1888 = scalar_lea.vmem %s4, 14
      %v1889 = vld [vmem:[%s1888] sm:$0x3]
      %v1891 = vsel %vm1266, %v1889, 0
      %v1894 = vsel %vm1270, %v1886, 0
      %v1897 = vsel %vm1270, %v1887, 0
      %1899 = vmatprep.subr.mxu0 %v1897
      %1900 = vmatpush1.msra.mxu0 %v1894
      %1901 = vmatprep.subr.mxu0 0.0
      %1902 = vmatpush1.msra.mxu0 0.0
      %1903 = vmatprep.subr.mxu0 0.0
      %1904 = vmatpush1.msra.mxu0 0.0
      %1905 = vmatprep.subr.mxu0 0.0
      %1906 = vmatpush1.msra.mxu0 0.0
      %1907 = vmatprep.subr.mxu0 0.0
      %1908 = vmatpush1.msra.mxu0 0.0
      %1909 = vmatprep.subr.mxu0 0.0
      %1910 = vmatpush1.msra.mxu0 0.0
      %1911 = vmatprep.subr.mxu0 0.0
      %1912 = vmatpush1.msra.mxu0 0.0
      %1913 = vmatprep.subr.mxu0 0.0
      %1914 = vmatpush1.msra.mxu0 0.0
      %1915 = vmatprep.subr.mxu0 0.0
      %1916 = vmatpush1.msra.mxu0 0.0
      %1917 = vmatprep.subr.mxu0 0.0
      %1918 = vmatpush1.msra.mxu0 0.0
      %1919 = vmatprep.subr.mxu0 0.0
      %1920 = vmatpush1.msra.mxu0 0.0
      %1921 = vmatprep.subr.mxu0 0.0
      %1922 = vmatpush1.msra.mxu0 0.0
      %1923 = vmatprep.subr.mxu0 0.0
      %1924 = vmatpush1.msra.mxu0 0.0
      %1925 = vmatprep.subr.mxu0 0.0
      %1926 = vmatpush1.msra.mxu0 0.0
      %1927 = vmatprep.subr.mxu0 0.0
      %1928 = vmatpush1.msra.mxu0 0.0
      %1929 = vmatprep.subr.mxu0 0.0
      %1930 = vmatpush1.msra.mxu0 0.0
      %1931 = vmatprep.subr.mxu0 0.0
      %1932 = vmatpush1.msra.mxu0 0.0
      %1933 = vmatprep.subr.mxu0 0.0
      %1934 = vmatpush1.msra.mxu0 0.0
      %1935 = vmatprep.subr.mxu0 0.0
      %1936 = vmatpush1.msra.mxu0 0.0
      %1937 = vmatprep.subr.mxu0 0.0
      %1938 = vmatpush1.msra.mxu0 0.0
      %1939 = vmatprep.subr.mxu0 0.0
      %1940 = vmatpush1.msra.mxu0 0.0
      %1941 = vmatprep.subr.mxu0 0.0
      %1942 = vmatpush1.msra.mxu0 0.0
      %1943 = vmatprep.subr.mxu0 0.0
      %1944 = vmatpush1.msra.mxu0 0.0
      %1945 = vmatprep.subr.mxu0 0.0
      %1946 = vmatpush1.msra.mxu0 0.0
      %1947 = vmatprep.subr.mxu0 0.0
      %1948 = vmatpush1.msra.mxu0 0.0
      %1949 = vmatprep.subr.mxu0 0.0
      %1950 = vmatpush1.msra.mxu0 0.0
      %1951 = vmatprep.subr.mxu0 0.0
      %1952 = vmatpush1.msra.mxu0 0.0
      %1953 = vmatprep.subr.mxu0 0.0
      %1954 = vmatpush1.msra.mxu0 0.0
      %1955 = vmatprep.subr.mxu0 0.0
      %1956 = vmatpush1.msra.mxu0 0.0
      %1957 = vmatprep.subr.mxu0 0.0
      %1958 = vmatpush1.msra.mxu0 0.0
      %1959 = vmatprep.subr.mxu0 0.0
      %1960 = vmatpush1.msra.mxu0 0.0
      %1961 = vmatprep.subr.mxu0 0.0
      %1962 = vmatpush1.msra.mxu0 0.0
      %1963 = vmatprep.mubr.f32.mxu0 0.0
      %1964 = vmatmul.mubr.f32.gmra.mrb[0].mxu0 %v1891
      %v1965 = vpop.f32.mrb[0].mxu0
      %v1966 = vadd.f32 0.0, %v1965
      %v1967 = vpop.f32.mrb[0].mxu0
      %v1968 = vadd.f32 0.0, %v1967
      %1969 = vdwg.mxu0
      %v1970 = vadd.f32 %v1878, %v1966
      %v1971 = vadd.f32 %v1879, %v1968
      %1972 = vrot.lane.b32.xlu0 %v1245, 111
      %v1973 = vpop.permute.xlu0 %1972
      %1974 = vrot.lane.b32.xlu0 %v1246, 111
      %v1975 = vpop.permute.xlu0 %1974
      %v1976 = vsel %vm1141, %v1973, %v1975
      %v1977 = vsel %vm1141, %v1975, %v1973
      %v1978 = vmul.f32 %v1976, %v1150
      %v1979 = vmul.f32 %v1977, %v1154
      %s1980 = scalar_lea.vmem %s4, 16
      %v1981 = vld [vmem:[%s1980] sm:$0x3]
      %v1983 = vsel %vm1266, %v1981, 0
      %v1986 = vsel %vm1270, %v1978, 0
      %v1989 = vsel %vm1270, %v1979, 0
      %1991 = vmatprep.subr.mxu0 %v1989
      %1992 = vmatpush1.msra.mxu0 %v1986
      %1993 = vmatprep.subr.mxu0 0.0
      %1994 = vmatpush1.msra.mxu0 0.0
      %1995 = vmatprep.subr.mxu0 0.0
      %1996 = vmatpush1.msra.mxu0 0.0
      %1997 = vmatprep.subr.mxu0 0.0
      %1998 = vmatpush1.msra.mxu0 0.0
      %1999 = vmatprep.subr.mxu0 0.0
      %2000 = vmatpush1.msra.mxu0 0.0
      %2001 = vmatprep.subr.mxu0 0.0
      %2002 = vmatpush1.msra.mxu0 0.0
      %2003 = vmatprep.subr.mxu0 0.0
      %2004 = vmatpush1.msra.mxu0 0.0
      %2005 = vmatprep.subr.mxu0 0.0
      %2006 = vmatpush1.msra.mxu0 0.0
      %2007 = vmatprep.subr.mxu0 0.0
      %2008 = vmatpush1.msra.mxu0 0.0
      %2009 = vmatprep.subr.mxu0 0.0
      %2010 = vmatpush1.msra.mxu0 0.0
      %2011 = vmatprep.subr.mxu0 0.0
      %2012 = vmatpush1.msra.mxu0 0.0
      %2013 = vmatprep.subr.mxu0 0.0
      %2014 = vmatpush1.msra.mxu0 0.0
      %2015 = vmatprep.subr.mxu0 0.0
      %2016 = vmatpush1.msra.mxu0 0.0
      %2017 = vmatprep.subr.mxu0 0.0
      %2018 = vmatpush1.msra.mxu0 0.0
      %2019 = vmatprep.subr.mxu0 0.0
      %2020 = vmatpush1.msra.mxu0 0.0
      %2021 = vmatprep.subr.mxu0 0.0
      %2022 = vmatpush1.msra.mxu0 0.0
      %2023 = vmatprep.subr.mxu0 0.0
      %2024 = vmatpush1.msra.mxu0 0.0
      %2025 = vmatprep.subr.mxu0 0.0
      %2026 = vmatpush1.msra.mxu0 0.0
      %2027 = vmatprep.subr.mxu0 0.0
      %2028 = vmatpush1.msra.mxu0 0.0
      %2029 = vmatprep.subr.mxu0 0.0
      %2030 = vmatpush1.msra.mxu0 0.0
      %2031 = vmatprep.subr.mxu0 0.0
      %2032 = vmatpush1.msra.mxu0 0.0
      %2033 = vmatprep.subr.mxu0 0.0
      %2034 = vmatpush1.msra.mxu0 0.0
      %2035 = vmatprep.subr.mxu0 0.0
      %2036 = vmatpush1.msra.mxu0 0.0
      %2037 = vmatprep.subr.mxu0 0.0
      %2038 = vmatpush1.msra.mxu0 0.0
      %2039 = vmatprep.subr.mxu0 0.0
      %2040 = vmatpush1.msra.mxu0 0.0
      %2041 = vmatprep.subr.mxu0 0.0
      %2042 = vmatpush1.msra.mxu0 0.0
      %2043 = vmatprep.subr.mxu0 0.0
      %2044 = vmatpush1.msra.mxu0 0.0
      %2045 = vmatprep.subr.mxu0 0.0
      %2046 = vmatpush1.msra.mxu0 0.0
      %2047 = vmatprep.subr.mxu0 0.0
      %2048 = vmatpush1.msra.mxu0 0.0
      %2049 = vmatprep.subr.mxu0 0.0
      %2050 = vmatpush1.msra.mxu0 0.0
      %2051 = vmatprep.subr.mxu0 0.0
      %2052 = vmatpush1.msra.mxu0 0.0
      %2053 = vmatprep.subr.mxu0 0.0
      %2054 = vmatpush1.msra.mxu0 0.0
      %2055 = vmatprep.mubr.f32.mxu0 0.0
      %2056 = vmatmul.mubr.f32.gmra.mrb[0].mxu0 %v1983
      %v2057 = vpop.f32.mrb[0].mxu0
      %v2058 = vadd.f32 0.0, %v2057
      %v2059 = vpop.f32.mrb[0].mxu0
      %v2060 = vadd.f32 0.0, %v2059
      %2061 = vdwg.mxu0
      %v2062 = vadd.f32 %v1970, %v2058
      %v2063 = vadd.f32 %v1971, %v2060
      %v2064 = vld [vmem:[%s5] sm:$0x3]
      %2066 = vset.pattern.permute.xlu0 0
      %2067 = vperm.xlu0 %2066, %v2064
      %v2068 = vpop.permute.xlu0 %2067
      %v2070 = vadd.f32 %v2062, %v2068
      %v2071 = vadd.f32 %v2063, %v2068
      %v2072 = vmax.f32 %v2070, 0.0
      %v2073 = vmax.f32 %v2071, 0.0
      %v2074 = vld [vmem:[%s6] sm:$0x3]
      %s2075 = scalar_lea.vmem %s6, 2
      %v2076 = vld [vmem:[%s2075] sm:$0x3]
      %v2078 = vsel %vm1266, %v2076, 0
      %2080 = vmatprep.subr.mxu0 %v1275
      %2081 = vmatpush1.msra.mxu0 %v1272
      %2082 = vmatprep.subr.mxu0 0.0
      %2083 = vmatpush1.msra.mxu0 0.0
      %2084 = vmatprep.subr.mxu0 0.0
      %2085 = vmatpush1.msra.mxu0 0.0
      %2086 = vmatprep.subr.mxu0 0.0
      %2087 = vmatpush1.msra.mxu0 0.0
      %2088 = vmatprep.subr.mxu0 0.0
      %2089 = vmatpush1.msra.mxu0 0.0
      %2090 = vmatprep.subr.mxu0 0.0
      %2091 = vmatpush1.msra.mxu0 0.0
      %2092 = vmatprep.subr.mxu0 0.0
      %2093 = vmatpush1.msra.mxu0 0.0
      %2094 = vmatprep.subr.mxu0 0.0
      %2095 = vmatpush1.msra.mxu0 0.0
      %2096 = vmatprep.subr.mxu0 0.0
      %2097 = vmatpush1.msra.mxu0 0.0
      %2098 = vmatprep.subr.mxu0 0.0
      %2099 = vmatpush1.msra.mxu0 0.0
      %2100 = vmatprep.subr.mxu0 0.0
      %2101 = vmatpush1.msra.mxu0 0.0
      %2102 = vmatprep.subr.mxu0 0.0
      %2103 = vmatpush1.msra.mxu0 0.0
      %2104 = vmatprep.subr.mxu0 0.0
      %2105 = vmatpush1.msra.mxu0 0.0
      %2106 = vmatprep.subr.mxu0 0.0
      %2107 = vmatpush1.msra.mxu0 0.0
      %2108 = vmatprep.subr.mxu0 0.0
      %2109 = vmatpush1.msra.mxu0 0.0
      %2110 = vmatprep.subr.mxu0 0.0
      %2111 = vmatpush1.msra.mxu0 0.0
      %2112 = vmatprep.subr.mxu0 0.0
      %2113 = vmatpush1.msra.mxu0 0.0
      %2114 = vmatprep.subr.mxu0 0.0
      %2115 = vmatpush1.msra.mxu0 0.0
      %2116 = vmatprep.subr.mxu0 0.0
      %2117 = vmatpush1.msra.mxu0 0.0
      %2118 = vmatprep.subr.mxu0 0.0
      %2119 = vmatpush1.msra.mxu0 0.0
      %2120 = vmatprep.subr.mxu0 0.0
      %2121 = vmatpush1.msra.mxu0 0.0
      %2122 = vmatprep.subr.mxu0 0.0
      %2123 = vmatpush1.msra.mxu0 0.0
      %2124 = vmatprep.subr.mxu0 0.0
      %2125 = vmatpush1.msra.mxu0 0.0
      %2126 = vmatprep.subr.mxu0 0.0
      %2127 = vmatpush1.msra.mxu0 0.0
      %2128 = vmatprep.subr.mxu0 0.0
      %2129 = vmatpush1.msra.mxu0 0.0
      %2130 = vmatprep.subr.mxu0 0.0
      %2131 = vmatpush1.msra.mxu0 0.0
      %2132 = vmatprep.subr.mxu0 0.0
      %2133 = vmatpush1.msra.mxu0 0.0
      %2134 = vmatprep.subr.mxu0 0.0
      %2135 = vmatpush1.msra.mxu0 0.0
      %2136 = vmatprep.subr.mxu0 0.0
      %2137 = vmatpush1.msra.mxu0 0.0
      %2138 = vmatprep.subr.mxu0 0.0
      %2139 = vmatpush1.msra.mxu0 0.0
      %2140 = vmatprep.subr.mxu0 0.0
      %2141 = vmatpush1.msra.mxu0 0.0
      %2142 = vmatprep.subr.mxu0 0.0
      %2143 = vmatpush1.msra.mxu0 0.0
      %2144 = vmatprep.mubr.f32.mxu0 0.0
      %2145 = vmatmul.mubr.f32.gmra.mrb[0].mxu0 %v2078
      %v2146 = vpop.f32.mrb[0].mxu0
      %v2147 = vadd.f32 0.0, %v2146
      %v2148 = vpop.f32.mrb[0].mxu0
      %v2149 = vadd.f32 0.0, %v2148
      %2150 = vdwg.mxu0
      %v2152 = vsel %vm1266, %v2074, 0
      %2154 = vmatprep.subr.mxu0 %v1355
      %2155 = vmatpush1.msra.mxu0 %v1352
      %2156 = vmatprep.subr.mxu0 0.0
      %2157 = vmatpush1.msra.mxu0 0.0
      %2158 = vmatprep.subr.mxu0 0.0
      %2159 = vmatpush1.msra.mxu0 0.0
      %2160 = vmatprep.subr.mxu0 0.0
      %2161 = vmatpush1.msra.mxu0 0.0
      %2162 = vmatprep.subr.mxu0 0.0
      %2163 = vmatpush1.msra.mxu0 0.0
      %2164 = vmatprep.subr.mxu0 0.0
      %2165 = vmatpush1.msra.mxu0 0.0
      %2166 = vmatprep.subr.mxu0 0.0
      %2167 = vmatpush1.msra.mxu0 0.0
      %2168 = vmatprep.subr.mxu0 0.0
      %2169 = vmatpush1.msra.mxu0 0.0
      %2170 = vmatprep.subr.mxu0 0.0
      %2171 = vmatpush1.msra.mxu0 0.0
      %2172 = vmatprep.subr.mxu0 0.0
      %2173 = vmatpush1.msra.mxu0 0.0
      %2174 = vmatprep.subr.mxu0 0.0
      %2175 = vmatpush1.msra.mxu0 0.0
      %2176 = vmatprep.subr.mxu0 0.0
      %2177 = vmatpush1.msra.mxu0 0.0
      %2178 = vmatprep.subr.mxu0 0.0
      %2179 = vmatpush1.msra.mxu0 0.0
      %2180 = vmatprep.subr.mxu0 0.0
      %2181 = vmatpush1.msra.mxu0 0.0
      %2182 = vmatprep.subr.mxu0 0.0
      %2183 = vmatpush1.msra.mxu0 0.0
      %2184 = vmatprep.subr.mxu0 0.0
      %2185 = vmatpush1.msra.mxu0 0.0
      %2186 = vmatprep.subr.mxu0 0.0
      %2187 = vmatpush1.msra.mxu0 0.0
      %2188 = vmatprep.subr.mxu0 0.0
      %2189 = vmatpush1.msra.mxu0 0.0
      %2190 = vmatprep.subr.mxu0 0.0
      %2191 = vmatpush1.msra.mxu0 0.0
      %2192 = vmatprep.subr.mxu0 0.0
      %2193 = vmatpush1.msra.mxu0 0.0
      %2194 = vmatprep.subr.mxu0 0.0
      %2195 = vmatpush1.msra.mxu0 0.0
      %2196 = vmatprep.subr.mxu0 0.0
      %2197 = vmatpush1.msra.mxu0 0.0
      %2198 = vmatprep.subr.mxu0 0.0
      %2199 = vmatpush1.msra.mxu0 0.0
      %2200 = vmatprep.subr.mxu0 0.0
      %2201 = vmatpush1.msra.mxu0 0.0
      %2202 = vmatprep.subr.mxu0 0.0
      %2203 = vmatpush1.msra.mxu0 0.0
      %2204 = vmatprep.subr.mxu0 0.0
      %2205 = vmatpush1.msra.mxu0 0.0
      %2206 = vmatprep.subr.mxu0 0.0
      %2207 = vmatpush1.msra.mxu0 0.0
      %2208 = vmatprep.subr.mxu0 0.0
      %2209 = vmatpush1.msra.mxu0 0.0
      %2210 = vmatprep.subr.mxu0 0.0
      %2211 = vmatpush1.msra.mxu0 0.0
      %2212 = vmatprep.subr.mxu0 0.0
      %2213 = vmatpush1.msra.mxu0 0.0
      %2214 = vmatprep.subr.mxu0 0.0
      %2215 = vmatpush1.msra.mxu0 0.0
      %2216 = vmatprep.subr.mxu0 0.0
      %2217 = vmatpush1.msra.mxu0 0.0
      %2218 = vmatprep.mubr.f32.mxu0 0.0
      %2219 = vmatmul.mubr.f32.gmra.mrb[0].mxu0 %v2152
      %v2220 = vpop.f32.mrb[0].mxu0
      %v2221 = vadd.f32 %v2147, %v2220
      %v2222 = vpop.f32.mrb[0].mxu0
      %v2223 = vadd.f32 %v2149, %v2222
      %2224 = vdwg.mxu0
      %s2225 = scalar_lea.vmem %s6, 4
      %v2226 = vld [vmem:[%s2225] sm:$0x3]
      %v2228 = vsel %vm1266, %v2226, 0
      %2230 = vmatprep.subr.mxu0 %v1445
      %2231 = vmatpush1.msra.mxu0 %v1442
      %2232 = vmatprep.subr.mxu0 0.0
      %2233 = vmatpush1.msra.mxu0 0.0
      %2234 = vmatprep.subr.mxu0 0.0
      %2235 = vmatpush1.msra.mxu0 0.0
      %2236 = vmatprep.subr.mxu0 0.0
      %2237 = vmatpush1.msra.mxu0 0.0
      %2238 = vmatprep.subr.mxu0 0.0
      %2239 = vmatpush1.msra.mxu0 0.0
      %2240 = vmatprep.subr.mxu0 0.0
      %2241 = vmatpush1.msra.mxu0 0.0
      %2242 = vmatprep.subr.mxu0 0.0
      %2243 = vmatpush1.msra.mxu0 0.0
      %2244 = vmatprep.subr.mxu0 0.0
      %2245 = vmatpush1.msra.mxu0 0.0
      %2246 = vmatprep.subr.mxu0 0.0
      %2247 = vmatpush1.msra.mxu0 0.0
      %2248 = vmatprep.subr.mxu0 0.0
      %2249 = vmatpush1.msra.mxu0 0.0
      %2250 = vmatprep.subr.mxu0 0.0
      %2251 = vmatpush1.msra.mxu0 0.0
      %2252 = vmatprep.subr.mxu0 0.0
      %2253 = vmatpush1.msra.mxu0 0.0
      %2254 = vmatprep.subr.mxu0 0.0
      %2255 = vmatpush1.msra.mxu0 0.0
      %2256 = vmatprep.subr.mxu0 0.0
      %2257 = vmatpush1.msra.mxu0 0.0
      %2258 = vmatprep.subr.mxu0 0.0
      %2259 = vmatpush1.msra.mxu0 0.0
      %2260 = vmatprep.subr.mxu0 0.0
      %2261 = vmatpush1.msra.mxu0 0.0
      %2262 = vmatprep.subr.mxu0 0.0
      %2263 = vmatpush1.msra.mxu0 0.0
      %2264 = vmatprep.subr.mxu0 0.0
      %2265 = vmatpush1.msra.mxu0 0.0
      %2266 = vmatprep.subr.mxu0 0.0
      %2267 = vmatpush1.msra.mxu0 0.0
      %2268 = vmatprep.subr.mxu0 0.0
      %2269 = vmatpush1.msra.mxu0 0.0
      %2270 = vmatprep.subr.mxu0 0.0
      %2271 = vmatpush1.msra.mxu0 0.0
      %2272 = vmatprep.subr.mxu0 0.0
      %2273 = vmatpush1.msra.mxu0 0.0
      %2274 = vmatprep.subr.mxu0 0.0
      %2275 = vmatpush1.msra.mxu0 0.0
      %2276 = vmatprep.subr.mxu0 0.0
      %2277 = vmatpush1.msra.mxu0 0.0
      %2278 = vmatprep.subr.mxu0 0.0
      %2279 = vmatpush1.msra.mxu0 0.0
      %2280 = vmatprep.subr.mxu0 0.0
      %2281 = vmatpush1.msra.mxu0 0.0
      %2282 = vmatprep.subr.mxu0 0.0
      %2283 = vmatpush1.msra.mxu0 0.0
      %2284 = vmatprep.subr.mxu0 0.0
      %2285 = vmatpush1.msra.mxu0 0.0
      %2286 = vmatprep.subr.mxu0 0.0
      %2287 = vmatpush1.msra.mxu0 0.0
      %2288 = vmatprep.subr.mxu0 0.0
      %2289 = vmatpush1.msra.mxu0 0.0
      %2290 = vmatprep.subr.mxu0 0.0
      %2291 = vmatpush1.msra.mxu0 0.0
      %2292 = vmatprep.subr.mxu0 0.0
      %2293 = vmatpush1.msra.mxu0 0.0
      %2294 = vmatprep.mubr.f32.mxu0 0.0
      %2295 = vmatmul.mubr.f32.gmra.mrb[0].mxu0 %v2228
      %v2296 = vpop.f32.mrb[0].mxu0
      %v2297 = vadd.f32 0.0, %v2296
      %v2298 = vpop.f32.mrb[0].mxu0
      %v2299 = vadd.f32 0.0, %v2298
      %2300 = vdwg.mxu0
      %v2301 = vadd.f32 %v2221, %v2297
      %v2302 = vadd.f32 %v2223, %v2299
      %s2303 = scalar_lea.vmem %s6, 6
      %v2304 = vld [vmem:[%s2303] sm:$0x3]
      %v2306 = vsel %vm1266, %v2304, 0
      %2308 = vmatprep.subr.mxu0 %v1537
      %2309 = vmatpush1.msra.mxu0 %v1534
      %2310 = vmatprep.subr.mxu0 0.0
      %2311 = vmatpush1.msra.mxu0 0.0
      %2312 = vmatprep.subr.mxu0 0.0
      %2313 = vmatpush1.msra.mxu0 0.0
      %2314 = vmatprep.subr.mxu0 0.0
      %2315 = vmatpush1.msra.mxu0 0.0
      %2316 = vmatprep.subr.mxu0 0.0
      %2317 = vmatpush1.msra.mxu0 0.0
      %2318 = vmatprep.subr.mxu0 0.0
      %2319 = vmatpush1.msra.mxu0 0.0
      %2320 = vmatprep.subr.mxu0 0.0
      %2321 = vmatpush1.msra.mxu0 0.0
      %2322 = vmatprep.subr.mxu0 0.0
      %2323 = vmatpush1.msra.mxu0 0.0
      %2324 = vmatprep.subr.mxu0 0.0
      %2325 = vmatpush1.msra.mxu0 0.0
      %2326 = vmatprep.subr.mxu0 0.0
      %2327 = vmatpush1.msra.mxu0 0.0
      %2328 = vmatprep.subr.mxu0 0.0
      %2329 = vmatpush1.msra.mxu0 0.0
      %2330 = vmatprep.subr.mxu0 0.0
      %2331 = vmatpush1.msra.mxu0 0.0
      %2332 = vmatprep.subr.mxu0 0.0
      %2333 = vmatpush1.msra.mxu0 0.0
      %2334 = vmatprep.subr.mxu0 0.0
      %2335 = vmatpush1.msra.mxu0 0.0
      %2336 = vmatprep.subr.mxu0 0.0
      %2337 = vmatpush1.msra.mxu0 0.0
      %2338 = vmatprep.subr.mxu0 0.0
      %2339 = vmatpush1.msra.mxu0 0.0
      %2340 = vmatprep.subr.mxu0 0.0
      %2341 = vmatpush1.msra.mxu0 0.0
      %2342 = vmatprep.subr.mxu0 0.0
      %2343 = vmatpush1.msra.mxu0 0.0
      %2344 = vmatprep.subr.mxu0 0.0
      %2345 = vmatpush1.msra.mxu0 0.0
      %2346 = vmatprep.subr.mxu0 0.0
      %2347 = vmatpush1.msra.mxu0 0.0
      %2348 = vmatprep.subr.mxu0 0.0
      %2349 = vmatpush1.msra.mxu0 0.0
      %2350 = vmatprep.subr.mxu0 0.0
      %2351 = vmatpush1.msra.mxu0 0.0
      %2352 = vmatprep.subr.mxu0 0.0
      %2353 = vmatpush1.msra.mxu0 0.0
      %2354 = vmatprep.subr.mxu0 0.0
      %2355 = vmatpush1.msra.mxu0 0.0
      %2356 = vmatprep.subr.mxu0 0.0
      %2357 = vmatpush1.msra.mxu0 0.0
      %2358 = vmatprep.subr.mxu0 0.0
      %2359 = vmatpush1.msra.mxu0 0.0
      %2360 = vmatprep.subr.mxu0 0.0
      %2361 = vmatpush1.msra.mxu0 0.0
      %2362 = vmatprep.subr.mxu0 0.0
      %2363 = vmatpush1.msra.mxu0 0.0
      %2364 = vmatprep.subr.mxu0 0.0
      %2365 = vmatpush1.msra.mxu0 0.0
      %2366 = vmatprep.subr.mxu0 0.0
      %2367 = vmatpush1.msra.mxu0 0.0
      %2368 = vmatprep.subr.mxu0 0.0
      %2369 = vmatpush1.msra.mxu0 0.0
      %2370 = vmatprep.subr.mxu0 0.0
      %2371 = vmatpush1.msra.mxu0 0.0
      %2372 = vmatprep.mubr.f32.mxu0 0.0
      %2373 = vmatmul.mubr.f32.gmra.mrb[0].mxu0 %v2306
      %v2374 = vpop.f32.mrb[0].mxu0
      %v2375 = vadd.f32 0.0, %v2374
      %v2376 = vpop.f32.mrb[0].mxu0
      %v2377 = vadd.f32 0.0, %v2376
      %2378 = vdwg.mxu0
      %v2379 = vadd.f32 %v2301, %v2375
      %v2380 = vadd.f32 %v2302, %v2377
      %s2381 = scalar_lea.vmem %s6, 8
      %v2382 = vld [vmem:[%s2381] sm:$0x3]
      %v2384 = vsel %vm1266, %v2382, 0
      %2386 = vmatprep.subr.mxu0 %v1621
      %2387 = vmatpush1.msra.mxu0 %v1618
      %2388 = vmatprep.subr.mxu0 0.0
      %2389 = vmatpush1.msra.mxu0 0.0
      %2390 = vmatprep.subr.mxu0 0.0
      %2391 = vmatpush1.msra.mxu0 0.0
      %2392 = vmatprep.subr.mxu0 0.0
      %2393 = vmatpush1.msra.mxu0 0.0
      %2394 = vmatprep.subr.mxu0 0.0
      %2395 = vmatpush1.msra.mxu0 0.0
      %2396 = vmatprep.subr.mxu0 0.0
      %2397 = vmatpush1.msra.mxu0 0.0
      %2398 = vmatprep.subr.mxu0 0.0
      %2399 = vmatpush1.msra.mxu0 0.0
      %2400 = vmatprep.subr.mxu0 0.0
      %2401 = vmatpush1.msra.mxu0 0.0
      %2402 = vmatprep.subr.mxu0 0.0
      %2403 = vmatpush1.msra.mxu0 0.0
      %2404 = vmatprep.subr.mxu0 0.0
      %2405 = vmatpush1.msra.mxu0 0.0
      %2406 = vmatprep.subr.mxu0 0.0
      %2407 = vmatpush1.msra.mxu0 0.0
      %2408 = vmatprep.subr.mxu0 0.0
      %2409 = vmatpush1.msra.mxu0 0.0
      %2410 = vmatprep.subr.mxu0 0.0
      %2411 = vmatpush1.msra.mxu0 0.0
      %2412 = vmatprep.subr.mxu0 0.0
      %2413 = vmatpush1.msra.mxu0 0.0
      %2414 = vmatprep.subr.mxu0 0.0
      %2415 = vmatpush1.msra.mxu0 0.0
      %2416 = vmatprep.subr.mxu0 0.0
      %2417 = vmatpush1.msra.mxu0 0.0
      %2418 = vmatprep.subr.mxu0 0.0
      %2419 = vmatpush1.msra.mxu0 0.0
      %2420 = vmatprep.subr.mxu0 0.0
      %2421 = vmatpush1.msra.mxu0 0.0
      %2422 = vmatprep.subr.mxu0 0.0
      %2423 = vmatpush1.msra.mxu0 0.0
      %2424 = vmatprep.subr.mxu0 0.0
      %2425 = vmatpush1.msra.mxu0 0.0
      %2426 = vmatprep.subr.mxu0 0.0
      %2427 = vmatpush1.msra.mxu0 0.0
      %2428 = vmatprep.subr.mxu0 0.0
      %2429 = vmatpush1.msra.mxu0 0.0
      %2430 = vmatprep.subr.mxu0 0.0
      %2431 = vmatpush1.msra.mxu0 0.0
      %2432 = vmatprep.subr.mxu0 0.0
      %2433 = vmatpush1.msra.mxu0 0.0
      %2434 = vmatprep.subr.mxu0 0.0
      %2435 = vmatpush1.msra.mxu0 0.0
      %2436 = vmatprep.subr.mxu0 0.0
      %2437 = vmatpush1.msra.mxu0 0.0
      %2438 = vmatprep.subr.mxu0 0.0
      %2439 = vmatpush1.msra.mxu0 0.0
      %2440 = vmatprep.subr.mxu0 0.0
      %2441 = vmatpush1.msra.mxu0 0.0
      %2442 = vmatprep.subr.mxu0 0.0
      %2443 = vmatpush1.msra.mxu0 0.0
      %2444 = vmatprep.subr.mxu0 0.0
      %2445 = vmatpush1.msra.mxu0 0.0
      %2446 = vmatprep.subr.mxu0 0.0
      %2447 = vmatpush1.msra.mxu0 0.0
      %2448 = vmatprep.subr.mxu0 0.0
      %2449 = vmatpush1.msra.mxu0 0.0
      %2450 = vmatprep.mubr.f32.mxu0 0.0
      %2451 = vmatmul.mubr.f32.gmra.mrb[0].mxu0 %v2384
      %v2452 = vpop.f32.mrb[0].mxu0
      %v2453 = vadd.f32 0.0, %v2452
      %v2454 = vpop.f32.mrb[0].mxu0
      %v2455 = vadd.f32 0.0, %v2454
      %2456 = vdwg.mxu0
      %v2457 = vadd.f32 %v2379, %v2453
      %v2458 = vadd.f32 %v2380, %v2455
      %s2459 = scalar_lea.vmem %s6, 10
      %v2460 = vld [vmem:[%s2459] sm:$0x3]
      %v2462 = vsel %vm1266, %v2460, 0
      %2464 = vmatprep.subr.mxu0 %v1713
      %2465 = vmatpush1.msra.mxu0 %v1710
      %2466 = vmatprep.subr.mxu0 0.0
      %2467 = vmatpush1.msra.mxu0 0.0
      %2468 = vmatprep.subr.mxu0 0.0
      %2469 = vmatpush1.msra.mxu0 0.0
      %2470 = vmatprep.subr.mxu0 0.0
      %2471 = vmatpush1.msra.mxu0 0.0
      %2472 = vmatprep.subr.mxu0 0.0
      %2473 = vmatpush1.msra.mxu0 0.0
      %2474 = vmatprep.subr.mxu0 0.0
      %2475 = vmatpush1.msra.mxu0 0.0
      %2476 = vmatprep.subr.mxu0 0.0
      %2477 = vmatpush1.msra.mxu0 0.0
      %2478 = vmatprep.subr.mxu0 0.0
      %2479 = vmatpush1.msra.mxu0 0.0
      %2480 = vmatprep.subr.mxu0 0.0
      %2481 = vmatpush1.msra.mxu0 0.0
      %2482 = vmatprep.subr.mxu0 0.0
      %2483 = vmatpush1.msra.mxu0 0.0
      %2484 = vmatprep.subr.mxu0 0.0
      %2485 = vmatpush1.msra.mxu0 0.0
      %2486 = vmatprep.subr.mxu0 0.0
      %2487 = vmatpush1.msra.mxu0 0.0
      %2488 = vmatprep.subr.mxu0 0.0
      %2489 = vmatpush1.msra.mxu0 0.0
      %2490 = vmatprep.subr.mxu0 0.0
      %2491 = vmatpush1.msra.mxu0 0.0
      %2492 = vmatprep.subr.mxu0 0.0
      %2493 = vmatpush1.msra.mxu0 0.0
      %2494 = vmatprep.subr.mxu0 0.0
      %2495 = vmatpush1.msra.mxu0 0.0
      %2496 = vmatprep.subr.mxu0 0.0
      %2497 = vmatpush1.msra.mxu0 0.0
      %2498 = vmatprep.subr.mxu0 0.0
      %2499 = vmatpush1.msra.mxu0 0.0
      %2500 = vmatprep.subr.mxu0 0.0
      %2501 = vmatpush1.msra.mxu0 0.0
      %2502 = vmatprep.subr.mxu0 0.0
      %2503 = vmatpush1.msra.mxu0 0.0
      %2504 = vmatprep.subr.mxu0 0.0
      %2505 = vmatpush1.msra.mxu0 0.0
      %2506 = vmatprep.subr.mxu0 0.0
      %2507 = vmatpush1.msra.mxu0 0.0
      %2508 = vmatprep.subr.mxu0 0.0
      %2509 = vmatpush1.msra.mxu0 0.0
      %2510 = vmatprep.subr.mxu0 0.0
      %2511 = vmatpush1.msra.mxu0 0.0
      %2512 = vmatprep.subr.mxu0 0.0
      %2513 = vmatpush1.msra.mxu0 0.0
      %2514 = vmatprep.subr.mxu0 0.0
      %2515 = vmatpush1.msra.mxu0 0.0
      %2516 = vmatprep.subr.mxu0 0.0
      %2517 = vmatpush1.msra.mxu0 0.0
      %2518 = vmatprep.subr.mxu0 0.0
      %2519 = vmatpush1.msra.mxu0 0.0
      %2520 = vmatprep.subr.mxu0 0.0
      %2521 = vmatpush1.msra.mxu0 0.0
      %2522 = vmatprep.subr.mxu0 0.0
      %2523 = vmatpush1.msra.mxu0 0.0
      %2524 = vmatprep.subr.mxu0 0.0
      %2525 = vmatpush1.msra.mxu0 0.0
      %2526 = vmatprep.subr.mxu0 0.0
      %2527 = vmatpush1.msra.mxu0 0.0
      %2528 = vmatprep.mubr.f32.mxu0 0.0
      %2529 = vmatmul.mubr.f32.gmra.mrb[0].mxu0 %v2462
      %v2530 = vpop.f32.mrb[0].mxu0
      %v2531 = vadd.f32 0.0, %v2530
      %v2532 = vpop.f32.mrb[0].mxu0
      %v2533 = vadd.f32 0.0, %v2532
      %2534 = vdwg.mxu0
      %v2535 = vadd.f32 %v2457, %v2531
      %v2536 = vadd.f32 %v2458, %v2533
      %s2537 = scalar_lea.vmem %s6, 12
      %v2538 = vld [vmem:[%s2537] sm:$0x3]
      %v2540 = vsel %vm1266, %v2538, 0
      %2542 = vmatprep.subr.mxu0 %v1805
      %2543 = vmatpush1.msra.mxu0 %v1802
      %2544 = vmatprep.subr.mxu0 0.0
      %2545 = vmatpush1.msra.mxu0 0.0
      %2546 = vmatprep.subr.mxu0 0.0
      %2547 = vmatpush1.msra.mxu0 0.0
      %2548 = vmatprep.subr.mxu0 0.0
      %2549 = vmatpush1.msra.mxu0 0.0
      %2550 = vmatprep.subr.mxu0 0.0
      %2551 = vmatpush1.msra.mxu0 0.0
      %2552 = vmatprep.subr.mxu0 0.0
      %2553 = vmatpush1.msra.mxu0 0.0
      %2554 = vmatprep.subr.mxu0 0.0
      %2555 = vmatpush1.msra.mxu0 0.0
      %2556 = vmatprep.subr.mxu0 0.0
      %2557 = vmatpush1.msra.mxu0 0.0
      %2558 = vmatprep.subr.mxu0 0.0
      %2559 = vmatpush1.msra.mxu0 0.0
      %2560 = vmatprep.subr.mxu0 0.0
      %2561 = vmatpush1.msra.mxu0 0.0
      %2562 = vmatprep.subr.mxu0 0.0
      %2563 = vmatpush1.msra.mxu0 0.0
      %2564 = vmatprep.subr.mxu0 0.0
      %2565 = vmatpush1.msra.mxu0 0.0
      %2566 = vmatprep.subr.mxu0 0.0
      %2567 = vmatpush1.msra.mxu0 0.0
      %2568 = vmatprep.subr.mxu0 0.0
      %2569 = vmatpush1.msra.mxu0 0.0
      %2570 = vmatprep.subr.mxu0 0.0
      %2571 = vmatpush1.msra.mxu0 0.0
      %2572 = vmatprep.subr.mxu0 0.0
      %2573 = vmatpush1.msra.mxu0 0.0
      %2574 = vmatprep.subr.mxu0 0.0
      %2575 = vmatpush1.msra.mxu0 0.0
      %2576 = vmatprep.subr.mxu0 0.0
      %2577 = vmatpush1.msra.mxu0 0.0
      %2578 = vmatprep.subr.mxu0 0.0
      %2579 = vmatpush1.msra.mxu0 0.0
      %2580 = vmatprep.subr.mxu0 0.0
      %2581 = vmatpush1.msra.mxu0 0.0
      %2582 = vmatprep.subr.mxu0 0.0
      %2583 = vmatpush1.msra.mxu0 0.0
      %2584 = vmatprep.subr.mxu0 0.0
      %2585 = vmatpush1.msra.mxu0 0.0
      %2586 = vmatprep.subr.mxu0 0.0
      %2587 = vmatpush1.msra.mxu0 0.0
      %2588 = vmatprep.subr.mxu0 0.0
      %2589 = vmatpush1.msra.mxu0 0.0
      %2590 = vmatprep.subr.mxu0 0.0
      %2591 = vmatpush1.msra.mxu0 0.0
      %2592 = vmatprep.subr.mxu0 0.0
      %2593 = vmatpush1.msra.mxu0 0.0
      %2594 = vmatprep.subr.mxu0 0.0
      %2595 = vmatpush1.msra.mxu0 0.0
      %2596 = vmatprep.subr.mxu0 0.0
      %2597 = vmatpush1.msra.mxu0 0.0
      %2598 = vmatprep.subr.mxu0 0.0
      %2599 = vmatpush1.msra.mxu0 0.0
      %2600 = vmatprep.subr.mxu0 0.0
      %2601 = vmatpush1.msra.mxu0 0.0
      %2602 = vmatprep.subr.mxu0 0.0
      %2603 = vmatpush1.msra.mxu0 0.0
      %2604 = vmatprep.subr.mxu0 0.0
      %2605 = vmatpush1.msra.mxu0 0.0
      %2606 = vmatprep.mubr.f32.mxu0 0.0
      %2607 = vmatmul.mubr.f32.gmra.mrb[0].mxu0 %v2540
      %v2608 = vpop.f32.mrb[0].mxu0
      %v2609 = vadd.f32 0.0, %v2608
      %v2610 = vpop.f32.mrb[0].mxu0
      %v2611 = vadd.f32 0.0, %v2610
      %2612 = vdwg.mxu0
      %v2613 = vadd.f32 %v2535, %v2609
      %v2614 = vadd.f32 %v2536, %v2611
      %s2615 = scalar_lea.vmem %s6, 14
      %v2616 = vld [vmem:[%s2615] sm:$0x3]
      %v2618 = vsel %vm1266, %v2616, 0
      %2620 = vmatprep.subr.mxu0 %v1897
      %2621 = vmatpush1.msra.mxu0 %v1894
      %2622 = vmatprep.subr.mxu0 0.0
      %2623 = vmatpush1.msra.mxu0 0.0
      %2624 = vmatprep.subr.mxu0 0.0
      %2625 = vmatpush1.msra.mxu0 0.0
      %2626 = vmatprep.subr.mxu0 0.0
      %2627 = vmatpush1.msra.mxu0 0.0
      %2628 = vmatprep.subr.mxu0 0.0
      %2629 = vmatpush1.msra.mxu0 0.0
      %2630 = vmatprep.subr.mxu0 0.0
      %2631 = vmatpush1.msra.mxu0 0.0
      %2632 = vmatprep.subr.mxu0 0.0
      %2633 = vmatpush1.msra.mxu0 0.0
      %2634 = vmatprep.subr.mxu0 0.0
      %2635 = vmatpush1.msra.mxu0 0.0
      %2636 = vmatprep.subr.mxu0 0.0
      %2637 = vmatpush1.msra.mxu0 0.0
      %2638 = vmatprep.subr.mxu0 0.0
      %2639 = vmatpush1.msra.mxu0 0.0
      %2640 = vmatprep.subr.mxu0 0.0
      %2641 = vmatpush1.msra.mxu0 0.0
      %2642 = vmatprep.subr.mxu0 0.0
      %2643 = vmatpush1.msra.mxu0 0.0
      %2644 = vmatprep.subr.mxu0 0.0
      %2645 = vmatpush1.msra.mxu0 0.0
      %2646 = vmatprep.subr.mxu0 0.0
      %2647 = vmatpush1.msra.mxu0 0.0
      %2648 = vmatprep.subr.mxu0 0.0
      %2649 = vmatpush1.msra.mxu0 0.0
      %2650 = vmatprep.subr.mxu0 0.0
      %2651 = vmatpush1.msra.mxu0 0.0
      %2652 = vmatprep.subr.mxu0 0.0
      %2653 = vmatpush1.msra.mxu0 0.0
      %2654 = vmatprep.subr.mxu0 0.0
      %2655 = vmatpush1.msra.mxu0 0.0
      %2656 = vmatprep.subr.mxu0 0.0
      %2657 = vmatpush1.msra.mxu0 0.0
      %2658 = vmatprep.subr.mxu0 0.0
      %2659 = vmatpush1.msra.mxu0 0.0
      %2660 = vmatprep.subr.mxu0 0.0
      %2661 = vmatpush1.msra.mxu0 0.0
      %2662 = vmatprep.subr.mxu0 0.0
      %2663 = vmatpush1.msra.mxu0 0.0
      %2664 = vmatprep.subr.mxu0 0.0
      %2665 = vmatpush1.msra.mxu0 0.0
      %2666 = vmatprep.subr.mxu0 0.0
      %2667 = vmatpush1.msra.mxu0 0.0
      %2668 = vmatprep.subr.mxu0 0.0
      %2669 = vmatpush1.msra.mxu0 0.0
      %2670 = vmatprep.subr.mxu0 0.0
      %2671 = vmatpush1.msra.mxu0 0.0
      %2672 = vmatprep.subr.mxu0 0.0
      %2673 = vmatpush1.msra.mxu0 0.0
      %2674 = vmatprep.subr.mxu0 0.0
      %2675 = vmatpush1.msra.mxu0 0.0
      %2676 = vmatprep.subr.mxu0 0.0
      %2677 = vmatpush1.msra.mxu0 0.0
      %2678 = vmatprep.subr.mxu0 0.0
      %2679 = vmatpush1.msra.mxu0 0.0
      %2680 = vmatprep.subr.mxu0 0.0
      %2681 = vmatpush1.msra.mxu0 0.0
      %2682 = vmatprep.subr.mxu0 0.0
      %2683 = vmatpush1.msra.mxu0 0.0
      %2684 = vmatprep.mubr.f32.mxu0 0.0
      %2685 = vmatmul.mubr.f32.gmra.mrb[0].mxu0 %v2618
      %v2686 = vpop.f32.mrb[0].mxu0
      %v2687 = vadd.f32 0.0, %v2686
      %v2688 = vpop.f32.mrb[0].mxu0
      %v2689 = vadd.f32 0.0, %v2688
      %2690 = vdwg.mxu0
      %v2691 = vadd.f32 %v2613, %v2687
      %v2692 = vadd.f32 %v2614, %v2689
      %s2693 = scalar_lea.vmem %s6, 16
      %v2694 = vld [vmem:[%s2693] sm:$0x3]
      %v2696 = vsel %vm1266, %v2694, 0
      %2698 = vmatprep.subr.mxu0 %v1989
      %2699 = vmatpush1.msra.mxu0 %v1986
      %2700 = vmatprep.subr.mxu0 0.0
      %2701 = vmatpush1.msra.mxu0 0.0
      %2702 = vmatprep.subr.mxu0 0.0
      %2703 = vmatpush1.msra.mxu0 0.0
      %2704 = vmatprep.subr.mxu0 0.0
      %2705 = vmatpush1.msra.mxu0 0.0
      %2706 = vmatprep.subr.mxu0 0.0
      %2707 = vmatpush1.msra.mxu0 0.0
      %2708 = vmatprep.subr.mxu0 0.0
      %2709 = vmatpush1.msra.mxu0 0.0
      %2710 = vmatprep.subr.mxu0 0.0
      %2711 = vmatpush1.msra.mxu0 0.0
      %2712 = vmatprep.subr.mxu0 0.0
      %2713 = vmatpush1.msra.mxu0 0.0
      %2714 = vmatprep.subr.mxu0 0.0
      %2715 = vmatpush1.msra.mxu0 0.0
      %2716 = vmatprep.subr.mxu0 0.0
      %2717 = vmatpush1.msra.mxu0 0.0
      %2718 = vmatprep.subr.mxu0 0.0
      %2719 = vmatpush1.msra.mxu0 0.0
      %2720 = vmatprep.subr.mxu0 0.0
      %2721 = vmatpush1.msra.mxu0 0.0
      %2722 = vmatprep.subr.mxu0 0.0
      %2723 = vmatpush1.msra.mxu0 0.0
      %2724 = vmatprep.subr.mxu0 0.0
      %2725 = vmatpush1.msra.mxu0 0.0
      %2726 = vmatprep.subr.mxu0 0.0
      %2727 = vmatpush1.msra.mxu0 0.0
      %2728 = vmatprep.subr.mxu0 0.0
      %2729 = vmatpush1.msra.mxu0 0.0
      %2730 = vmatprep.subr.mxu0 0.0
      %2731 = vmatpush1.msra.mxu0 0.0
      %2732 = vmatprep.subr.mxu0 0.0
      %2733 = vmatpush1.msra.mxu0 0.0
      %2734 = vmatprep.subr.mxu0 0.0
      %2735 = vmatpush1.msra.mxu0 0.0
      %2736 = vmatprep.subr.mxu0 0.0
      %2737 = vmatpush1.msra.mxu0 0.0
      %2738 = vmatprep.subr.mxu0 0.0
      %2739 = vmatpush1.msra.mxu0 0.0
      %2740 = vmatprep.subr.mxu0 0.0
      %2741 = vmatpush1.msra.mxu0 0.0
      %2742 = vmatprep.subr.mxu0 0.0
      %2743 = vmatpush1.msra.mxu0 0.0
      %2744 = vmatprep.subr.mxu0 0.0
      %2745 = vmatpush1.msra.mxu0 0.0
      %2746 = vmatprep.subr.mxu0 0.0
      %2747 = vmatpush1.msra.mxu0 0.0
      %2748 = vmatprep.subr.mxu0 0.0
      %2749 = vmatpush1.msra.mxu0 0.0
      %2750 = vmatprep.subr.mxu0 0.0
      %2751 = vmatpush1.msra.mxu0 0.0
      %2752 = vmatprep.subr.mxu0 0.0
      %2753 = vmatpush1.msra.mxu0 0.0
      %2754 = vmatprep.subr.mxu0 0.0
      %2755 = vmatpush1.msra.mxu0 0.0
      %2756 = vmatprep.subr.mxu0 0.0
      %2757 = vmatpush1.msra.mxu0 0.0
      %2758 = vmatprep.subr.mxu0 0.0
      %2759 = vmatpush1.msra.mxu0 0.0
      %2760 = vmatprep.subr.mxu0 0.0
      %2761 = vmatpush1.msra.mxu0 0.0
      %2762 = vmatprep.mubr.f32.mxu0 0.0
      %2763 = vmatmul.mubr.f32.gmra.mrb[0].mxu0 %v2696
      %v2764 = vpop.f32.mrb[0].mxu0
      %v2765 = vadd.f32 0.0, %v2764
      %v2766 = vpop.f32.mrb[0].mxu0
      %v2767 = vadd.f32 0.0, %v2766
      %2768 = vdwg.mxu0
      %v2769 = vadd.f32 %v2691, %v2765
      %v2770 = vadd.f32 %v2692, %v2767
      %v2771 = vld [vmem:[%s7] sm:$0x3]
      %2773 = vset.pattern.permute.xlu0 0
      %2774 = vperm.xlu0 %2773, %v2771
      %v2775 = vpop.permute.xlu0 %2774
      %v2777 = vadd.f32 %v2769, %v2775
      %v2778 = vadd.f32 %v2770, %v2775
      %v2779 = vmax.f32 %v2777, 0.0
      %v2780 = vmax.f32 %v2778, 0.0
      %2781 = vrot.lane.b32.xlu0 %v2779, 17
      %v2782 = vpop.permute.xlu0 %2781
      %2783 = vrot.lane.b32.xlu0 %v2780, 17
      %v2784 = vpop.permute.xlu0 %2783
      %v2785 = vsel %vm368, %v2782, %v2784
      %v2786 = vsel %vm368, %v2784, %v2782
      %v2787 = vmul.f32 %v2786, %v376
      %v2788 = vmul.f32 %v2785, %v380
      %v2789 = vld [vmem:[%s8] sm:$0x3]
      %2790 = vrot.lane.b32.xlu0 %v2779, 16
      %v2791 = vpop.permute.xlu0 %2790
      %2792 = vrot.lane.b32.xlu0 %v2780, 16
      %v2793 = vpop.permute.xlu0 %2792
      %v2794 = vsel %vm390, %v2791, %v2793
      %v2795 = vsel %vm390, %v2793, %v2791
      %v2796 = vmul.f32 %v2795, %v399
      %v2797 = vmul.f32 %v2794, %v403
      %s2798 = scalar_lea.vmem %s8, 2
      %v2799 = vld [vmem:[%s2798] sm:$0x3]
      %v2801 = vsel %vm1266, %v2799, 0
      %v2804 = vsel %vm1270, %v2796, 0
      %v2807 = vsel %vm1270, %v2797, 0
      %2809 = vmatprep.subr.mxu0 %v2807
      %2810 = vmatpush1.msra.mxu0 %v2804
      %2811 = vmatprep.subr.mxu0 0.0
      %2812 = vmatpush1.msra.mxu0 0.0
      %2813 = vmatprep.subr.mxu0 0.0
      %2814 = vmatpush1.msra.mxu0 0.0
      %2815 = vmatprep.subr.mxu0 0.0
      %2816 = vmatpush1.msra.mxu0 0.0
      %2817 = vmatprep.subr.mxu0 0.0
      %2818 = vmatpush1.msra.mxu0 0.0
      %2819 = vmatprep.subr.mxu0 0.0
      %2820 = vmatpush1.msra.mxu0 0.0
      %2821 = vmatprep.subr.mxu0 0.0
      %2822 = vmatpush1.msra.mxu0 0.0
      %2823 = vmatprep.subr.mxu0 0.0
      %2824 = vmatpush1.msra.mxu0 0.0
      %2825 = vmatprep.subr.mxu0 0.0
      %2826 = vmatpush1.msra.mxu0 0.0
      %2827 = vmatprep.subr.mxu0 0.0
      %2828 = vmatpush1.msra.mxu0 0.0
      %2829 = vmatprep.subr.mxu0 0.0
      %2830 = vmatpush1.msra.mxu0 0.0
      %2831 = vmatprep.subr.mxu0 0.0
      %2832 = vmatpush1.msra.mxu0 0.0
      %2833 = vmatprep.subr.mxu0 0.0
      %2834 = vmatpush1.msra.mxu0 0.0
      %2835 = vmatprep.subr.mxu0 0.0
      %2836 = vmatpush1.msra.mxu0 0.0
      %2837 = vmatprep.subr.mxu0 0.0
      %2838 = vmatpush1.msra.mxu0 0.0
      %2839 = vmatprep.subr.mxu0 0.0
      %2840 = vmatpush1.msra.mxu0 0.0
      %2841 = vmatprep.subr.mxu0 0.0
      %2842 = vmatpush1.msra.mxu0 0.0
      %2843 = vmatprep.subr.mxu0 0.0
      %2844 = vmatpush1.msra.mxu0 0.0
      %2845 = vmatprep.subr.mxu0 0.0
      %2846 = vmatpush1.msra.mxu0 0.0
      %2847 = vmatprep.subr.mxu0 0.0
      %2848 = vmatpush1.msra.mxu0 0.0
      %2849 = vmatprep.subr.mxu0 0.0
      %2850 = vmatpush1.msra.mxu0 0.0
      %2851 = vmatprep.subr.mxu0 0.0
      %2852 = vmatpush1.msra.mxu0 0.0
      %2853 = vmatprep.subr.mxu0 0.0
      %2854 = vmatpush1.msra.mxu0 0.0
      %2855 = vmatprep.subr.mxu0 0.0
      %2856 = vmatpush1.msra.mxu0 0.0
      %2857 = vmatprep.subr.mxu0 0.0
      %2858 = vmatpush1.msra.mxu0 0.0
      %2859 = vmatprep.subr.mxu0 0.0
      %2860 = vmatpush1.msra.mxu0 0.0
      %2861 = vmatprep.subr.mxu0 0.0
      %2862 = vmatpush1.msra.mxu0 0.0
      %2863 = vmatprep.subr.mxu0 0.0
      %2864 = vmatpush1.msra.mxu0 0.0
      %2865 = vmatprep.subr.mxu0 0.0
      %2866 = vmatpush1.msra.mxu0 0.0
      %2867 = vmatprep.subr.mxu0 0.0
      %2868 = vmatpush1.msra.mxu0 0.0
      %2869 = vmatprep.subr.mxu0 0.0
      %2870 = vmatpush1.msra.mxu0 0.0
      %2871 = vmatprep.subr.mxu0 0.0
      %2872 = vmatpush1.msra.mxu0 0.0
      %2873 = vmatprep.mubr.f32.mxu0 0.0
      %2874 = vmatmul.mubr.f32.gmra.mrb[0].mxu0 %v2801
      %v2875 = vpop.f32.mrb[0].mxu0
      %v2876 = vadd.f32 0.0, %v2875
      %v2877 = vpop.f32.mrb[0].mxu0
      %v2878 = vadd.f32 0.0, %v2877
      %2879 = vdwg.mxu0
      %v2881 = vsel %vm1266, %v2789, 0
      %v2884 = vsel %vm1270, %v2787, 0
      %v2887 = vsel %vm1270, %v2788, 0
      %2889 = vmatprep.subr.mxu0 %v2887
      %2890 = vmatpush1.msra.mxu0 %v2884
      %2891 = vmatprep.subr.mxu0 0.0
      %2892 = vmatpush1.msra.mxu0 0.0
      %2893 = vmatprep.subr.mxu0 0.0
      %2894 = vmatpush1.msra.mxu0 0.0
      %2895 = vmatprep.subr.mxu0 0.0
      %2896 = vmatpush1.msra.mxu0 0.0
      %2897 = vmatprep.subr.mxu0 0.0
      %2898 = vmatpush1.msra.mxu0 0.0
      %2899 = vmatprep.subr.mxu0 0.0
      %2900 = vmatpush1.msra.mxu0 0.0
      %2901 = vmatprep.subr.mxu0 0.0
      %2902 = vmatpush1.msra.mxu0 0.0
      %2903 = vmatprep.subr.mxu0 0.0
      %2904 = vmatpush1.msra.mxu0 0.0
      %2905 = vmatprep.subr.mxu0 0.0
      %2906 = vmatpush1.msra.mxu0 0.0
      %2907 = vmatprep.subr.mxu0 0.0
      %2908 = vmatpush1.msra.mxu0 0.0
      %2909 = vmatprep.subr.mxu0 0.0
      %2910 = vmatpush1.msra.mxu0 0.0
      %2911 = vmatprep.subr.mxu0 0.0
      %2912 = vmatpush1.msra.mxu0 0.0
      %2913 = vmatprep.subr.mxu0 0.0
      %2914 = vmatpush1.msra.mxu0 0.0
      %2915 = vmatprep.subr.mxu0 0.0
      %2916 = vmatpush1.msra.mxu0 0.0
      %2917 = vmatprep.subr.mxu0 0.0
      %2918 = vmatpush1.msra.mxu0 0.0
      %2919 = vmatprep.subr.mxu0 0.0
      %2920 = vmatpush1.msra.mxu0 0.0
      %2921 = vmatprep.subr.mxu0 0.0
      %2922 = vmatpush1.msra.mxu0 0.0
      %2923 = vmatprep.subr.mxu0 0.0
      %2924 = vmatpush1.msra.mxu0 0.0
      %2925 = vmatprep.subr.mxu0 0.0
      %2926 = vmatpush1.msra.mxu0 0.0
      %2927 = vmatprep.subr.mxu0 0.0
      %2928 = vmatpush1.msra.mxu0 0.0
      %2929 = vmatprep.subr.mxu0 0.0
      %2930 = vmatpush1.msra.mxu0 0.0
      %2931 = vmatprep.subr.mxu0 0.0
      %2932 = vmatpush1.msra.mxu0 0.0
      %2933 = vmatprep.subr.mxu0 0.0
      %2934 = vmatpush1.msra.mxu0 0.0
      %2935 = vmatprep.subr.mxu0 0.0
      %2936 = vmatpush1.msra.mxu0 0.0
      %2937 = vmatprep.subr.mxu0 0.0
      %2938 = vmatpush1.msra.mxu0 0.0
      %2939 = vmatprep.subr.mxu0 0.0
      %2940 = vmatpush1.msra.mxu0 0.0
      %2941 = vmatprep.subr.mxu0 0.0
      %2942 = vmatpush1.msra.mxu0 0.0
      %2943 = vmatprep.subr.mxu0 0.0
      %2944 = vmatpush1.msra.mxu0 0.0
      %2945 = vmatprep.subr.mxu0 0.0
      %2946 = vmatpush1.msra.mxu0 0.0
      %2947 = vmatprep.subr.mxu0 0.0
      %2948 = vmatpush1.msra.mxu0 0.0
      %2949 = vmatprep.subr.mxu0 0.0
      %2950 = vmatpush1.msra.mxu0 0.0
      %2951 = vmatprep.subr.mxu0 0.0
      %2952 = vmatpush1.msra.mxu0 0.0
      %2953 = vmatprep.mubr.f32.mxu0 0.0
      %2954 = vmatmul.mubr.f32.gmra.mrb[0].mxu0 %v2881
      %v2955 = vpop.f32.mrb[0].mxu0
      %v2956 = vadd.f32 %v2876, %v2955
      %v2957 = vpop.f32.mrb[0].mxu0
      %v2958 = vadd.f32 %v2878, %v2957
      %2959 = vdwg.mxu0
      %2960 = vrot.lane.b32.xlu0 %v2779, 15
      %v2961 = vpop.permute.xlu0 %2960
      %2962 = vrot.lane.b32.xlu0 %v2780, 15
      %v2963 = vpop.permute.xlu0 %2962
      %v2964 = vsel %vm563, %v2961, %v2963
      %v2965 = vsel %vm563, %v2963, %v2961
      %v2966 = vmul.f32 %v2965, %v572
      %v2967 = vmul.f32 %v2964, %v576
      %s2968 = scalar_lea.vmem %s8, 4
      %v2969 = vld [vmem:[%s2968] sm:$0x3]
      %v2971 = vsel %vm1266, %v2969, 0
      %v2974 = vsel %vm1270, %v2966, 0
      %v2977 = vsel %vm1270, %v2967, 0
      %2979 = vmatprep.subr.mxu0 %v2977
      %2980 = vmatpush1.msra.mxu0 %v2974
      %2981 = vmatprep.subr.mxu0 0.0
      %2982 = vmatpush1.msra.mxu0 0.0
      %2983 = vmatprep.subr.mxu0 0.0
      %2984 = vmatpush1.msra.mxu0 0.0
      %2985 = vmatprep.subr.mxu0 0.0
      %2986 = vmatpush1.msra.mxu0 0.0
      %2987 = vmatprep.subr.mxu0 0.0
      %2988 = vmatpush1.msra.mxu0 0.0
      %2989 = vmatprep.subr.mxu0 0.0
      %2990 = vmatpush1.msra.mxu0 0.0
      %2991 = vmatprep.subr.mxu0 0.0
      %2992 = vmatpush1.msra.mxu0 0.0
      %2993 = vmatprep.subr.mxu0 0.0
      %2994 = vmatpush1.msra.mxu0 0.0
      %2995 = vmatprep.subr.mxu0 0.0
      %2996 = vmatpush1.msra.mxu0 0.0
      %2997 = vmatprep.subr.mxu0 0.0
      %2998 = vmatpush1.msra.mxu0 0.0
      %2999 = vmatprep.subr.mxu0 0.0
      %3000 = vmatpush1.msra.mxu0 0.0
      %3001 = vmatprep.subr.mxu0 0.0
      %3002 = vmatpush1.msra.mxu0 0.0
      %3003 = vmatprep.subr.mxu0 0.0
      %3004 = vmatpush1.msra.mxu0 0.0
      %3005 = vmatprep.subr.mxu0 0.0
      %3006 = vmatpush1.msra.mxu0 0.0
      %3007 = vmatprep.subr.mxu0 0.0
      %3008 = vmatpush1.msra.mxu0 0.0
      %3009 = vmatprep.subr.mxu0 0.0
      %3010 = vmatpush1.msra.mxu0 0.0
      %3011 = vmatprep.subr.mxu0 0.0
      %3012 = vmatpush1.msra.mxu0 0.0
      %3013 = vmatprep.subr.mxu0 0.0
      %3014 = vmatpush1.msra.mxu0 0.0
      %3015 = vmatprep.subr.mxu0 0.0
      %3016 = vmatpush1.msra.mxu0 0.0
      %3017 = vmatprep.subr.mxu0 0.0
      %3018 = vmatpush1.msra.mxu0 0.0
      %3019 = vmatprep.subr.mxu0 0.0
      %3020 = vmatpush1.msra.mxu0 0.0
      %3021 = vmatprep.subr.mxu0 0.0
      %3022 = vmatpush1.msra.mxu0 0.0
      %3023 = vmatprep.subr.mxu0 0.0
      %3024 = vmatpush1.msra.mxu0 0.0
      %3025 = vmatprep.subr.mxu0 0.0
      %3026 = vmatpush1.msra.mxu0 0.0
      %3027 = vmatprep.subr.mxu0 0.0
      %3028 = vmatpush1.msra.mxu0 0.0
      %3029 = vmatprep.subr.mxu0 0.0
      %3030 = vmatpush1.msra.mxu0 0.0
      %3031 = vmatprep.subr.mxu0 0.0
      %3032 = vmatpush1.msra.mxu0 0.0
      %3033 = vmatprep.subr.mxu0 0.0
      %3034 = vmatpush1.msra.mxu0 0.0
      %3035 = vmatprep.subr.mxu0 0.0
      %3036 = vmatpush1.msra.mxu0 0.0
      %3037 = vmatprep.subr.mxu0 0.0
      %3038 = vmatpush1.msra.mxu0 0.0
      %3039 = vmatprep.subr.mxu0 0.0
      %3040 = vmatpush1.msra.mxu0 0.0
      %3041 = vmatprep.subr.mxu0 0.0
      %3042 = vmatpush1.msra.mxu0 0.0
      %3043 = vmatprep.mubr.f32.mxu0 0.0
      %3044 = vmatmul.mubr.f32.gmra.mrb[0].mxu0 %v2971
      %v3045 = vpop.f32.mrb[0].mxu0
      %v3046 = vadd.f32 0.0, %v3045
      %v3047 = vpop.f32.mrb[0].mxu0
      %v3048 = vadd.f32 0.0, %v3047
      %3049 = vdwg.mxu0
      %v3050 = vadd.f32 %v2956, %v3046
      %v3051 = vadd.f32 %v2958, %v3048
      %3052 = vrot.lane.b32.xlu0 %v2779, 1
      %v3053 = vpop.permute.xlu0 %3052
      %3054 = vrot.lane.b32.xlu0 %v2780, 1
      %v3055 = vpop.permute.xlu0 %3054
      %v3056 = vsel %vm663, %v3053, %v3055
      %v3057 = vsel %vm663, %v3055, %v3053
      %v3058 = vmul.f32 %v3057, %v672
      %v3059 = vmul.f32 %v3056, %v676
      %s3060 = scalar_lea.vmem %s8, 6
      %v3061 = vld [vmem:[%s3060] sm:$0x3]
      %v3063 = vsel %vm1266, %v3061, 0
      %v3066 = vsel %vm1270, %v3058, 0
      %v3069 = vsel %vm1270, %v3059, 0
      %3071 = vmatprep.subr.mxu0 %v3069
      %3072 = vmatpush1.msra.mxu0 %v3066
      %3073 = vmatprep.subr.mxu0 0.0
      %3074 = vmatpush1.msra.mxu0 0.0
      %3075 = vmatprep.subr.mxu0 0.0
      %3076 = vmatpush1.msra.mxu0 0.0
      %3077 = vmatprep.subr.mxu0 0.0
      %3078 = vmatpush1.msra.mxu0 0.0
      %3079 = vmatprep.subr.mxu0 0.0
      %3080 = vmatpush1.msra.mxu0 0.0
      %3081 = vmatprep.subr.mxu0 0.0
      %3082 = vmatpush1.msra.mxu0 0.0
      %3083 = vmatprep.subr.mxu0 0.0
      %3084 = vmatpush1.msra.mxu0 0.0
      %3085 = vmatprep.subr.mxu0 0.0
      %3086 = vmatpush1.msra.mxu0 0.0
      %3087 = vmatprep.subr.mxu0 0.0
      %3088 = vmatpush1.msra.mxu0 0.0
      %3089 = vmatprep.subr.mxu0 0.0
      %3090 = vmatpush1.msra.mxu0 0.0
      %3091 = vmatprep.subr.mxu0 0.0
      %3092 = vmatpush1.msra.mxu0 0.0
      %3093 = vmatprep.subr.mxu0 0.0
      %3094 = vmatpush1.msra.mxu0 0.0
      %3095 = vmatprep.subr.mxu0 0.0
      %3096 = vmatpush1.msra.mxu0 0.0
      %3097 = vmatprep.subr.mxu0 0.0
      %3098 = vmatpush1.msra.mxu0 0.0
      %3099 = vmatprep.subr.mxu0 0.0
      %3100 = vmatpush1.msra.mxu0 0.0
      %3101 = vmatprep.subr.mxu0 0.0
      %3102 = vmatpush1.msra.mxu0 0.0
      %3103 = vmatprep.subr.mxu0 0.0
      %3104 = vmatpush1.msra.mxu0 0.0
      %3105 = vmatprep.subr.mxu0 0.0
      %3106 = vmatpush1.msra.mxu0 0.0
      %3107 = vmatprep.subr.mxu0 0.0
      %3108 = vmatpush1.msra.mxu0 0.0
      %3109 = vmatprep.subr.mxu0 0.0
      %3110 = vmatpush1.msra.mxu0 0.0
      %3111 = vmatprep.subr.mxu0 0.0
      %3112 = vmatpush1.msra.mxu0 0.0
      %3113 = vmatprep.subr.mxu0 0.0
      %3114 = vmatpush1.msra.mxu0 0.0
      %3115 = vmatprep.subr.mxu0 0.0
      %3116 = vmatpush1.msra.mxu0 0.0
      %3117 = vmatprep.subr.mxu0 0.0
      %3118 = vmatpush1.msra.mxu0 0.0
      %3119 = vmatprep.subr.mxu0 0.0
      %3120 = vmatpush1.msra.mxu0 0.0
      %3121 = vmatprep.subr.mxu0 0.0
      %3122 = vmatpush1.msra.mxu0 0.0
      %3123 = vmatprep.subr.mxu0 0.0
      %3124 = vmatpush1.msra.mxu0 0.0
      %3125 = vmatprep.subr.mxu0 0.0
      %3126 = vmatpush1.msra.mxu0 0.0
      %3127 = vmatprep.subr.mxu0 0.0
      %3128 = vmatpush1.msra.mxu0 0.0
      %3129 = vmatprep.subr.mxu0 0.0
      %3130 = vmatpush1.msra.mxu0 0.0
      %3131 = vmatprep.subr.mxu0 0.0
      %3132 = vmatpush1.msra.mxu0 0.0
      %3133 = vmatprep.subr.mxu0 0.0
      %3134 = vmatpush1.msra.mxu0 0.0
      %3135 = vmatprep.mubr.f32.mxu0 0.0
      %3136 = vmatmul.mubr.f32.gmra.mrb[0].mxu0 %v3063
      %v3137 = vpop.f32.mrb[0].mxu0
      %v3138 = vadd.f32 0.0, %v3137
      %v3139 = vpop.f32.mrb[0].mxu0
      %v3140 = vadd.f32 0.0, %v3139
      %3141 = vdwg.mxu0
      %v3142 = vadd.f32 %v3050, %v3138
      %v3143 = vadd.f32 %v3051, %v3140
      %s3144 = scalar_lea.vmem %s8, 8
      %v3145 = vld [vmem:[%s3144] sm:$0x3]
      %v3147 = vsel %vm1266, %v3145, 0
      %v3150 = vsel %vm1270, %v2779, 0
      %v3153 = vsel %vm1270, %v2780, 0
      %3155 = vmatprep.subr.mxu0 %v3153
      %3156 = vmatpush1.msra.mxu0 %v3150
      %3157 = vmatprep.subr.mxu0 0.0
      %3158 = vmatpush1.msra.mxu0 0.0
      %3159 = vmatprep.subr.mxu0 0.0
      %3160 = vmatpush1.msra.mxu0 0.0
      %3161 = vmatprep.subr.mxu0 0.0
      %3162 = vmatpush1.msra.mxu0 0.0
      %3163 = vmatprep.subr.mxu0 0.0
      %3164 = vmatpush1.msra.mxu0 0.0
      %3165 = vmatprep.subr.mxu0 0.0
      %3166 = vmatpush1.msra.mxu0 0.0
      %3167 = vmatprep.subr.mxu0 0.0
      %3168 = vmatpush1.msra.mxu0 0.0
      %3169 = vmatprep.subr.mxu0 0.0
      %3170 = vmatpush1.msra.mxu0 0.0
      %3171 = vmatprep.subr.mxu0 0.0
      %3172 = vmatpush1.msra.mxu0 0.0
      %3173 = vmatprep.subr.mxu0 0.0
      %3174 = vmatpush1.msra.mxu0 0.0
      %3175 = vmatprep.subr.mxu0 0.0
      %3176 = vmatpush1.msra.mxu0 0.0
      %3177 = vmatprep.subr.mxu0 0.0
      %3178 = vmatpush1.msra.mxu0 0.0
      %3179 = vmatprep.subr.mxu0 0.0
      %3180 = vmatpush1.msra.mxu0 0.0
      %3181 = vmatprep.subr.mxu0 0.0
      %3182 = vmatpush1.msra.mxu0 0.0
      %3183 = vmatprep.subr.mxu0 0.0
      %3184 = vmatpush1.msra.mxu0 0.0
      %3185 = vmatprep.subr.mxu0 0.0
      %3186 = vmatpush1.msra.mxu0 0.0
      %3187 = vmatprep.subr.mxu0 0.0
      %3188 = vmatpush1.msra.mxu0 0.0
      %3189 = vmatprep.subr.mxu0 0.0
      %3190 = vmatpush1.msra.mxu0 0.0
      %3191 = vmatprep.subr.mxu0 0.0
      %3192 = vmatpush1.msra.mxu0 0.0
      %3193 = vmatprep.subr.mxu0 0.0
      %3194 = vmatpush1.msra.mxu0 0.0
      %3195 = vmatprep.subr.mxu0 0.0
      %3196 = vmatpush1.msra.mxu0 0.0
      %3197 = vmatprep.subr.mxu0 0.0
      %3198 = vmatpush1.msra.mxu0 0.0
      %3199 = vmatprep.subr.mxu0 0.0
      %3200 = vmatpush1.msra.mxu0 0.0
      %3201 = vmatprep.subr.mxu0 0.0
      %3202 = vmatpush1.msra.mxu0 0.0
      %3203 = vmatprep.subr.mxu0 0.0
      %3204 = vmatpush1.msra.mxu0 0.0
      %3205 = vmatprep.subr.mxu0 0.0
      %3206 = vmatpush1.msra.mxu0 0.0
      %3207 = vmatprep.subr.mxu0 0.0
      %3208 = vmatpush1.msra.mxu0 0.0
      %3209 = vmatprep.subr.mxu0 0.0
      %3210 = vmatpush1.msra.mxu0 0.0
      %3211 = vmatprep.subr.mxu0 0.0
      %3212 = vmatpush1.msra.mxu0 0.0
      %3213 = vmatprep.subr.mxu0 0.0
      %3214 = vmatpush1.msra.mxu0 0.0
      %3215 = vmatprep.subr.mxu0 0.0
      %3216 = vmatpush1.msra.mxu0 0.0
      %3217 = vmatprep.subr.mxu0 0.0
      %3218 = vmatpush1.msra.mxu0 0.0
      %3219 = vmatprep.mubr.f32.mxu0 0.0
      %3220 = vmatmul.mubr.f32.gmra.mrb[0].mxu0 %v3147
      %v3221 = vpop.f32.mrb[0].mxu0
      %v3222 = vadd.f32 0.0, %v3221
      %v3223 = vpop.f32.mrb[0].mxu0
      %v3224 = vadd.f32 0.0, %v3223
      %3225 = vdwg.mxu0
      %v3226 = vadd.f32 %v3142, %v3222
      %v3227 = vadd.f32 %v3143, %v3224
      %3228 = vrot.lane.b32.xlu0 %v2779, 127
      %v3229 = vpop.permute.xlu0 %3228
      %3230 = vrot.lane.b32.xlu0 %v2780, 127
      %v3231 = vpop.permute.xlu0 %3230
      %v3232 = vsel %vm841, %v3229, %v3231
      %v3233 = vsel %vm841, %v3231, %v3229
      %v3234 = vmul.f32 %v3232, %v850
      %v3235 = vmul.f32 %v3233, %v854
      %s3236 = scalar_lea.vmem %s8, 10
      %v3237 = vld [vmem:[%s3236] sm:$0x3]
      %v3239 = vsel %vm1266, %v3237, 0
      %v3242 = vsel %vm1270, %v3234, 0
      %v3245 = vsel %vm1270, %v3235, 0
      %3247 = vmatprep.subr.mxu0 %v3245
      %3248 = vmatpush1.msra.mxu0 %v3242
      %3249 = vmatprep.subr.mxu0 0.0
      %3250 = vmatpush1.msra.mxu0 0.0
      %3251 = vmatprep.subr.mxu0 0.0
      %3252 = vmatpush1.msra.mxu0 0.0
      %3253 = vmatprep.subr.mxu0 0.0
      %3254 = vmatpush1.msra.mxu0 0.0
      %3255 = vmatprep.subr.mxu0 0.0
      %3256 = vmatpush1.msra.mxu0 0.0
      %3257 = vmatprep.subr.mxu0 0.0
      %3258 = vmatpush1.msra.mxu0 0.0
      %3259 = vmatprep.subr.mxu0 0.0
      %3260 = vmatpush1.msra.mxu0 0.0
      %3261 = vmatprep.subr.mxu0 0.0
      %3262 = vmatpush1.msra.mxu0 0.0
      %3263 = vmatprep.subr.mxu0 0.0
      %3264 = vmatpush1.msra.mxu0 0.0
      %3265 = vmatprep.subr.mxu0 0.0
      %3266 = vmatpush1.msra.mxu0 0.0
      %3267 = vmatprep.subr.mxu0 0.0
      %3268 = vmatpush1.msra.mxu0 0.0
      %3269 = vmatprep.subr.mxu0 0.0
      %3270 = vmatpush1.msra.mxu0 0.0
      %3271 = vmatprep.subr.mxu0 0.0
      %3272 = vmatpush1.msra.mxu0 0.0
      %3273 = vmatprep.subr.mxu0 0.0
      %3274 = vmatpush1.msra.mxu0 0.0
      %3275 = vmatprep.subr.mxu0 0.0
      %3276 = vmatpush1.msra.mxu0 0.0
      %3277 = vmatprep.subr.mxu0 0.0
      %3278 = vmatpush1.msra.mxu0 0.0
      %3279 = vmatprep.subr.mxu0 0.0
      %3280 = vmatpush1.msra.mxu0 0.0
      %3281 = vmatprep.subr.mxu0 0.0
      %3282 = vmatpush1.msra.mxu0 0.0
      %3283 = vmatprep.subr.mxu0 0.0
      %3284 = vmatpush1.msra.mxu0 0.0
      %3285 = vmatprep.subr.mxu0 0.0
      %3286 = vmatpush1.msra.mxu0 0.0
      %3287 = vmatprep.subr.mxu0 0.0
      %3288 = vmatpush1.msra.mxu0 0.0
      %3289 = vmatprep.subr.mxu0 0.0
      %3290 = vmatpush1.msra.mxu0 0.0
      %3291 = vmatprep.subr.mxu0 0.0
      %3292 = vmatpush1.msra.mxu0 0.0
      %3293 = vmatprep.subr.mxu0 0.0
      %3294 = vmatpush1.msra.mxu0 0.0
      %3295 = vmatprep.subr.mxu0 0.0
      %3296 = vmatpush1.msra.mxu0 0.0
      %3297 = vmatprep.subr.mxu0 0.0
      %3298 = vmatpush1.msra.mxu0 0.0
      %3299 = vmatprep.subr.mxu0 0.0
      %3300 = vmatpush1.msra.mxu0 0.0
      %3301 = vmatprep.subr.mxu0 0.0
      %3302 = vmatpush1.msra.mxu0 0.0
      %3303 = vmatprep.subr.mxu0 0.0
      %3304 = vmatpush1.msra.mxu0 0.0
      %3305 = vmatprep.subr.mxu0 0.0
      %3306 = vmatpush1.msra.mxu0 0.0
      %3307 = vmatprep.subr.mxu0 0.0
      %3308 = vmatpush1.msra.mxu0 0.0
      %3309 = vmatprep.subr.mxu0 0.0
      %3310 = vmatpush1.msra.mxu0 0.0
      %3311 = vmatprep.mubr.f32.mxu0 0.0
      %3312 = vmatmul.mubr.f32.gmra.mrb[0].mxu0 %v3239
      %v3313 = vpop.f32.mrb[0].mxu0
      %v3314 = vadd.f32 0.0, %v3313
      %v3315 = vpop.f32.mrb[0].mxu0
      %v3316 = vadd.f32 0.0, %v3315
      %3317 = vdwg.mxu0
      %v3318 = vadd.f32 %v3226, %v3314
      %v3319 = vadd.f32 %v3227, %v3316
      %3320 = vrot.lane.b32.xlu0 %v2779, 113
      %v3321 = vpop.permute.xlu0 %3320
      %3322 = vrot.lane.b32.xlu0 %v2780, 113
      %v3323 = vpop.permute.xlu0 %3322
      %v3324 = vsel %vm941, %v3321, %v3323
      %v3325 = vsel %vm941, %v3323, %v3321
      %v3326 = vmul.f32 %v3324, %v950
      %v3327 = vmul.f32 %v3325, %v954
      %s3328 = scalar_lea.vmem %s8, 12
      %v3329 = vld [vmem:[%s3328] sm:$0x3]
      %v3331 = vsel %vm1266, %v3329, 0
      %v3334 = vsel %vm1270, %v3326, 0
      %v3337 = vsel %vm1270, %v3327, 0
      %3339 = vmatprep.subr.mxu0 %v3337
      %3340 = vmatpush1.msra.mxu0 %v3334
      %3341 = vmatprep.subr.mxu0 0.0
      %3342 = vmatpush1.msra.mxu0 0.0
      %3343 = vmatprep.subr.mxu0 0.0
      %3344 = vmatpush1.msra.mxu0 0.0
      %3345 = vmatprep.subr.mxu0 0.0
      %3346 = vmatpush1.msra.mxu0 0.0
      %3347 = vmatprep.subr.mxu0 0.0
      %3348 = vmatpush1.msra.mxu0 0.0
      %3349 = vmatprep.subr.mxu0 0.0
      %3350 = vmatpush1.msra.mxu0 0.0
      %3351 = vmatprep.subr.mxu0 0.0
      %3352 = vmatpush1.msra.mxu0 0.0
      %3353 = vmatprep.subr.mxu0 0.0
      %3354 = vmatpush1.msra.mxu0 0.0
      %3355 = vmatprep.subr.mxu0 0.0
      %3356 = vmatpush1.msra.mxu0 0.0
      %3357 = vmatprep.subr.mxu0 0.0
      %3358 = vmatpush1.msra.mxu0 0.0
      %3359 = vmatprep.subr.mxu0 0.0
      %3360 = vmatpush1.msra.mxu0 0.0
      %3361 = vmatprep.subr.mxu0 0.0
      %3362 = vmatpush1.msra.mxu0 0.0
      %3363 = vmatprep.subr.mxu0 0.0
      %3364 = vmatpush1.msra.mxu0 0.0
      %3365 = vmatprep.subr.mxu0 0.0
      %3366 = vmatpush1.msra.mxu0 0.0
      %3367 = vmatprep.subr.mxu0 0.0
      %3368 = vmatpush1.msra.mxu0 0.0
      %3369 = vmatprep.subr.mxu0 0.0
      %3370 = vmatpush1.msra.mxu0 0.0
      %3371 = vmatprep.subr.mxu0 0.0
      %3372 = vmatpush1.msra.mxu0 0.0
      %3373 = vmatprep.subr.mxu0 0.0
      %3374 = vmatpush1.msra.mxu0 0.0
      %3375 = vmatprep.subr.mxu0 0.0
      %3376 = vmatpush1.msra.mxu0 0.0
      %3377 = vmatprep.subr.mxu0 0.0
      %3378 = vmatpush1.msra.mxu0 0.0
      %3379 = vmatprep.subr.mxu0 0.0
      %3380 = vmatpush1.msra.mxu0 0.0
      %3381 = vmatprep.subr.mxu0 0.0
      %3382 = vmatpush1.msra.mxu0 0.0
      %3383 = vmatprep.subr.mxu0 0.0
      %3384 = vmatpush1.msra.mxu0 0.0
      %3385 = vmatprep.subr.mxu0 0.0
      %3386 = vmatpush1.msra.mxu0 0.0
      %3387 = vmatprep.subr.mxu0 0.0
      %3388 = vmatpush1.msra.mxu0 0.0
      %3389 = vmatprep.subr.mxu0 0.0
      %3390 = vmatpush1.msra.mxu0 0.0
      %3391 = vmatprep.subr.mxu0 0.0
      %3392 = vmatpush1.msra.mxu0 0.0
      %3393 = vmatprep.subr.mxu0 0.0
      %3394 = vmatpush1.msra.mxu0 0.0
      %3395 = vmatprep.subr.mxu0 0.0
      %3396 = vmatpush1.msra.mxu0 0.0
      %3397 = vmatprep.subr.mxu0 0.0
      %3398 = vmatpush1.msra.mxu0 0.0
      %3399 = vmatprep.subr.mxu0 0.0
      %3400 = vmatpush1.msra.mxu0 0.0
      %3401 = vmatprep.subr.mxu0 0.0
      %3402 = vmatpush1.msra.mxu0 0.0
      %3403 = vmatprep.mubr.f32.mxu0 0.0
      %3404 = vmatmul.mubr.f32.gmra.mrb[0].mxu0 %v3331
      %v3405 = vpop.f32.mrb[0].mxu0
      %v3406 = vadd.f32 0.0, %v3405
      %v3407 = vpop.f32.mrb[0].mxu0
      %v3408 = vadd.f32 0.0, %v3407
      %3409 = vdwg.mxu0
      %v3410 = vadd.f32 %v3318, %v3406
      %v3411 = vadd.f32 %v3319, %v3408
      %3412 = vrot.lane.b32.xlu0 %v2779, 112
      %v3413 = vpop.permute.xlu0 %3412
      %3414 = vrot.lane.b32.xlu0 %v2780, 112
      %v3415 = vpop.permute.xlu0 %3414
      %v3416 = vsel %vm1041, %v3413, %v3415
      %v3417 = vsel %vm1041, %v3415, %v3413
      %v3418 = vmul.f32 %v3416, %v1050
      %v3419 = vmul.f32 %v3417, %v1054
      %s3420 = scalar_lea.vmem %s8, 14
      %v3421 = vld [vmem:[%s3420] sm:$0x3]
      %v3423 = vsel %vm1266, %v3421, 0
      %v3426 = vsel %vm1270, %v3418, 0
      %v3429 = vsel %vm1270, %v3419, 0
      %3431 = vmatprep.subr.mxu0 %v3429
      %3432 = vmatpush1.msra.mxu0 %v3426
      %3433 = vmatprep.subr.mxu0 0.0
      %3434 = vmatpush1.msra.mxu0 0.0
      %3435 = vmatprep.subr.mxu0 0.0
      %3436 = vmatpush1.msra.mxu0 0.0
      %3437 = vmatprep.subr.mxu0 0.0
      %3438 = vmatpush1.msra.mxu0 0.0
      %3439 = vmatprep.subr.mxu0 0.0
      %3440 = vmatpush1.msra.mxu0 0.0
      %3441 = vmatprep.subr.mxu0 0.0
      %3442 = vmatpush1.msra.mxu0 0.0
      %3443 = vmatprep.subr.mxu0 0.0
      %3444 = vmatpush1.msra.mxu0 0.0
      %3445 = vmatprep.subr.mxu0 0.0
      %3446 = vmatpush1.msra.mxu0 0.0
      %3447 = vmatprep.subr.mxu0 0.0
      %3448 = vmatpush1.msra.mxu0 0.0
      %3449 = vmatprep.subr.mxu0 0.0
      %3450 = vmatpush1.msra.mxu0 0.0
      %3451 = vmatprep.subr.mxu0 0.0
      %3452 = vmatpush1.msra.mxu0 0.0
      %3453 = vmatprep.subr.mxu0 0.0
      %3454 = vmatpush1.msra.mxu0 0.0
      %3455 = vmatprep.subr.mxu0 0.0
      %3456 = vmatpush1.msra.mxu0 0.0
      %3457 = vmatprep.subr.mxu0 0.0
      %3458 = vmatpush1.msra.mxu0 0.0
      %3459 = vmatprep.subr.mxu0 0.0
      %3460 = vmatpush1.msra.mxu0 0.0
      %3461 = vmatprep.subr.mxu0 0.0
      %3462 = vmatpush1.msra.mxu0 0.0
      %3463 = vmatprep.subr.mxu0 0.0
      %3464 = vmatpush1.msra.mxu0 0.0
      %3465 = vmatprep.subr.mxu0 0.0
      %3466 = vmatpush1.msra.mxu0 0.0
      %3467 = vmatprep.subr.mxu0 0.0
      %3468 = vmatpush1.msra.mxu0 0.0
      %3469 = vmatprep.subr.mxu0 0.0
      %3470 = vmatpush1.msra.mxu0 0.0
      %3471 = vmatprep.subr.mxu0 0.0
      %3472 = vmatpush1.msra.mxu0 0.0
      %3473 = vmatprep.subr.mxu0 0.0
      %3474 = vmatpush1.msra.mxu0 0.0
      %3475 = vmatprep.subr.mxu0 0.0
      %3476 = vmatpush1.msra.mxu0 0.0
      %3477 = vmatprep.subr.mxu0 0.0
      %3478 = vmatpush1.msra.mxu0 0.0
      %3479 = vmatprep.subr.mxu0 0.0
      %3480 = vmatpush1.msra.mxu0 0.0
      %3481 = vmatprep.subr.mxu0 0.0
      %3482 = vmatpush1.msra.mxu0 0.0
      %3483 = vmatprep.subr.mxu0 0.0
      %3484 = vmatpush1.msra.mxu0 0.0
      %3485 = vmatprep.subr.mxu0 0.0
      %3486 = vmatpush1.msra.mxu0 0.0
      %3487 = vmatprep.subr.mxu0 0.0
      %3488 = vmatpush1.msra.mxu0 0.0
      %3489 = vmatprep.subr.mxu0 0.0
      %3490 = vmatpush1.msra.mxu0 0.0
      %3491 = vmatprep.subr.mxu0 0.0
      %3492 = vmatpush1.msra.mxu0 0.0
      %3493 = vmatprep.subr.mxu0 0.0
      %3494 = vmatpush1.msra.mxu0 0.0
      %3495 = vmatprep.mubr.f32.mxu0 0.0
      %3496 = vmatmul.mubr.f32.gmra.mrb[0].mxu0 %v3423
      %v3497 = vpop.f32.mrb[0].mxu0
      %v3498 = vadd.f32 0.0, %v3497
      %v3499 = vpop.f32.mrb[0].mxu0
      %v3500 = vadd.f32 0.0, %v3499
      %3501 = vdwg.mxu0
      %v3502 = vadd.f32 %v3410, %v3498
      %v3503 = vadd.f32 %v3411, %v3500
      %3504 = vrot.lane.b32.xlu0 %v2779, 111
      %v3505 = vpop.permute.xlu0 %3504
      %3506 = vrot.lane.b32.xlu0 %v2780, 111
      %v3507 = vpop.permute.xlu0 %3506
      %v3508 = vsel %vm1141, %v3505, %v3507
      %v3509 = vsel %vm1141, %v3507, %v3505
      %v3510 = vmul.f32 %v3508, %v1150
      %v3511 = vmul.f32 %v3509, %v1154
      %s3512 = scalar_lea.vmem %s8, 16
      %v3513 = vld [vmem:[%s3512] sm:$0x3]
      %v3515 = vsel %vm1266, %v3513, 0
      %v3518 = vsel %vm1270, %v3510, 0
      %v3521 = vsel %vm1270, %v3511, 0
      %3523 = vmatprep.subr.mxu0 %v3521
      %3524 = vmatpush1.msra.mxu0 %v3518
      %3525 = vmatprep.subr.mxu0 0.0
      %3526 = vmatpush1.msra.mxu0 0.0
      %3527 = vmatprep.subr.mxu0 0.0
      %3528 = vmatpush1.msra.mxu0 0.0
      %3529 = vmatprep.subr.mxu0 0.0
      %3530 = vmatpush1.msra.mxu0 0.0
      %3531 = vmatprep.subr.mxu0 0.0
      %3532 = vmatpush1.msra.mxu0 0.0
      %3533 = vmatprep.subr.mxu0 0.0
      %3534 = vmatpush1.msra.mxu0 0.0
      %3535 = vmatprep.subr.mxu0 0.0
      %3536 = vmatpush1.msra.mxu0 0.0
      %3537 = vmatprep.subr.mxu0 0.0
      %3538 = vmatpush1.msra.mxu0 0.0
      %3539 = vmatprep.subr.mxu0 0.0
      %3540 = vmatpush1.msra.mxu0 0.0
      %3541 = vmatprep.subr.mxu0 0.0
      %3542 = vmatpush1.msra.mxu0 0.0
      %3543 = vmatprep.subr.mxu0 0.0
      %3544 = vmatpush1.msra.mxu0 0.0
      %3545 = vmatprep.subr.mxu0 0.0
      %3546 = vmatpush1.msra.mxu0 0.0
      %3547 = vmatprep.subr.mxu0 0.0
      %3548 = vmatpush1.msra.mxu0 0.0
      %3549 = vmatprep.subr.mxu0 0.0
      %3550 = vmatpush1.msra.mxu0 0.0
      %3551 = vmatprep.subr.mxu0 0.0
      %3552 = vmatpush1.msra.mxu0 0.0
      %3553 = vmatprep.subr.mxu0 0.0
      %3554 = vmatpush1.msra.mxu0 0.0
      %3555 = vmatprep.subr.mxu0 0.0
      %3556 = vmatpush1.msra.mxu0 0.0
      %3557 = vmatprep.subr.mxu0 0.0
      %3558 = vmatpush1.msra.mxu0 0.0
      %3559 = vmatprep.subr.mxu0 0.0
      %3560 = vmatpush1.msra.mxu0 0.0
      %3561 = vmatprep.subr.mxu0 0.0
      %3562 = vmatpush1.msra.mxu0 0.0
      %3563 = vmatprep.subr.mxu0 0.0
      %3564 = vmatpush1.msra.mxu0 0.0
      %3565 = vmatprep.subr.mxu0 0.0
      %3566 = vmatpush1.msra.mxu0 0.0
      %3567 = vmatprep.subr.mxu0 0.0
      %3568 = vmatpush1.msra.mxu0 0.0
      %3569 = vmatprep.subr.mxu0 0.0
      %3570 = vmatpush1.msra.mxu0 0.0
      %3571 = vmatprep.subr.mxu0 0.0
      %3572 = vmatpush1.msra.mxu0 0.0
      %3573 = vmatprep.subr.mxu0 0.0
      %3574 = vmatpush1.msra.mxu0 0.0
      %3575 = vmatprep.subr.mxu0 0.0
      %3576 = vmatpush1.msra.mxu0 0.0
      %3577 = vmatprep.subr.mxu0 0.0
      %3578 = vmatpush1.msra.mxu0 0.0
      %3579 = vmatprep.subr.mxu0 0.0
      %3580 = vmatpush1.msra.mxu0 0.0
      %3581 = vmatprep.subr.mxu0 0.0
      %3582 = vmatpush1.msra.mxu0 0.0
      %3583 = vmatprep.subr.mxu0 0.0
      %3584 = vmatpush1.msra.mxu0 0.0
      %3585 = vmatprep.subr.mxu0 0.0
      %3586 = vmatpush1.msra.mxu0 0.0
      %3587 = vmatprep.mubr.f32.mxu0 0.0
      %3588 = vmatmul.mubr.f32.gmra.mrb[0].mxu0 %v3515
      %v3589 = vpop.f32.mrb[0].mxu0
      %v3590 = vadd.f32 0.0, %v3589
      %v3591 = vpop.f32.mrb[0].mxu0
      %v3592 = vadd.f32 0.0, %v3591
      %3593 = vdwg.mxu0
      %v3594 = vadd.f32 %v3502, %v3590
      %v3595 = vadd.f32 %v3503, %v3592
      %v3596 = vld [vmem:[%s9] sm:$0x3]
      %3598 = vset.pattern.permute.xlu0 0
      %3599 = vperm.xlu0 %3598, %v3596
      %v3600 = vpop.permute.xlu0 %3599
      %v3602 = vadd.f32 %v3594, %v3600
      %v3603 = vadd.f32 %v3595, %v3600
      %v3604 = vmax.f32 %v3602, 0.0
      %v3605 = vmax.f32 %v3603, 0.0
      %v3608 = vcombine.low %v2072, %v2073
      %3610 = vst [vmem:[%s359] sm:$0x33] %v3608
      %v3613 = vcombine.low %v3604, %v3605
      %v3614 = vrot.slane %v3613, 6
      %3616 = vst [vmem:[%s359] sm:$0xcc] %v3614
      %p3617 = scmp.lt.s32.totalorder %s21, 1
      %s3618 = scalar_select %p3617, %s21, 1
      %s3619 = smul.addr %s3618, 2
      %s3620 = smul.addr %s3619, 4
      %s3621 = scalar_lea.vmem %s10, %s3620
      // Predicated region
      $region61: #{context_module_pallas.1} parent=59 // pred_check
        %p3622 = pneg %p254
      $region62: #{context_module_pallas.1} parent=59 // pred_check_branch
        %3624 = sbr.rel (%p3622) target = $region64
      $region63: #{context_module_pallas.1} parent=59 // pred_region
        _
      $region64: #{context_module_pallas.1} parent=59 // pred_fallthru
        _
    $region60: #{context_module_pallas.1} parent=5 // pred_fallthru
      _
    %p3625 = scmp.le.s32.totalorder 2, %s16
    // Predicated region
    $region65: #{context_module_pallas.1} parent=5 // pred_check
      %p3626 = pneg %p3625
    $region66: #{context_module_pallas.1} parent=5 // pred_check_branch
      %3628 = sbr.rel (%p3626) target = $region68
    $region67: #{context_module_pallas.1} parent=5 // pred_region
      %s3629 = ssub.s32 %s16, 2
      // Predicated region
      $region69: #{context_module_pallas.1} parent=67 // pred_check
        %p3630 = pneg %p260
      $region70: #{context_module_pallas.1} parent=67 // pred_check_branch
        %3632 = sbr.rel (%p3630) target = $region72
      $region71: #{context_module_pallas.1} parent=67 // pred_region
        %p3633 = scmp.lt.s32.totalorder %s22, 1
        %s3634 = scalar_select %p3633, %s22, 1
        %s3635 = smul.addr %s3634, 2
        %s3636 = smul.addr %s3635, 4
        %s3637 = scalar_lea.vmem %s10, %s3636
      $region72: #{context_module_pallas.1} parent=67 // pred_fallthru
        _
    $region68: #{context_module_pallas.1} parent=5 // pred_fallthru
      _
  $region6: #{context_module_pallas.1} parent=0 // loop_footer
    %s20 = sadd.s32 1, %s16
  $region7: #{context_module_pallas.1} parent=0 // loop_footer_branch
    %15 = sbr.rel target = $region3
  $region8: #{context_module_pallas.1} parent=0 // loop_exit
    _

</llo_original>
